<compile_context>
chip_gen: v6e
topology: v6e:2x2x1
jax: 0.10.0
libtpu: 0.0.40
codegen_flags: <defaults>
</compile_context>

<pallas_src>
import jax
import jax.numpy as jnp
from jax.experimental import pallas as pl
from jax.experimental.pallas import tpu as pltpu

# ---- problem sizes (small, consistent with the module's conv forward) -------
N, C_IN, S, HID, Z = 2, 4, 16, 32, 8
K = 3                   # conv kernel size
SP = S + 2              # spatial size after pad=1
P = S * S               # pixels per image
KL_LANES = 128          # lane-dense KL output row


# ----------------------------- in-kernel helpers ------------------------------
def _pad1(x, c):
    """Zero-pad an (S, S, c) value to (SP, SP, c) (pad=1) via concatenation."""
    zr = jnp.zeros((1, S, c), jnp.float32)
    zc = jnp.zeros((SP, 1, c), jnp.float32)
    x = jnp.concatenate([zr, x, zr], axis=0)          # (SP, S, c)
    return jnp.concatenate([zc, x, zc], axis=1)       # (SP, SP, c)


def _im2col(xp, c):
    """(SP, SP, c) padded value -> (P, K*K*c) patch matrix (tap-major, chan-minor)."""
    taps = [xp[dy:dy + S, dx:dx + S, :].reshape(P, c)
            for dy in range(K) for dx in range(K)]
    return jnp.concatenate(taps, axis=1)              # (P, K*K*c)


# ----------------------------- fused Pallas kernel ----------------------------
def _vaegan_kernel(x_ref, eps_ref, w1_ref, b1_ref, wh_ref, bh_ref,
                   w2_ref, b2_ref, w3_ref, b3_ref,
                   recon_ref, kl_ref):
    f32 = jnp.float32

    # -- encoder: 3x3 conv (pad=1) as ONE im2col matmul + ReLU -----------------
    x_hwc = x_ref[0].reshape(S, S, C_IN)                          # NHWC tile
    patches = _im2col(_pad1(x_hwc, C_IN), C_IN)                   # (P, 9*C_IN)
    h = jnp.dot(patches, w1_ref[...], preferred_element_type=f32) + b1_ref[...]
    h = jnp.maximum(h, 0.0)                                       # (P, HID)

    # -- fused [mu | logvar] head, reparameterized sample, analytic KL ---------
    heads = jnp.dot(h, wh_ref[...], preferred_element_type=f32) + bh_ref[...]
    mu = heads[:, :Z]                                             # (P, Z)
    lv = heads[:, Z:]                                             # (P, Z)
    std = jnp.exp(0.5 * lv)                                       # EUP
    code = mu + std * eps_ref[0]                                  # rsample()
    kl_elem = 0.5 * (mu * mu + std * std - lv - 1.0)              # KL vs N(0,1)
    kl_ref[...] = jnp.broadcast_to(jnp.sum(kl_elem, keepdims=True),
                                   (1, 1, KL_LANES))

    # -- decoder: pad code in-register, 3x3 conv as ONE im2col matmul + ReLU ---
    dpatches = _im2col(_pad1(code.reshape(S, S, Z), Z), Z)        # (P, 9*Z)
    h2 = jnp.dot(dpatches, w2_ref[...], preferred_element_type=f32) + b2_ref[...]
    h2 = jnp.maximum(h2, 0.0)                                     # (P, HID)

    # -- 1x1 conv + tanh, emitted lane-dense as (C_IN, P): no transpose needed -
    out_t = jax.lax.dot_general(w3_ref[...], h2,
                                dimension_numbers=(((1,), (1,)), ((), ())),
                                preferred_element_type=f32)       # (C_IN, P)
    recon_ref[0] = jnp.tanh(out_t + b3_ref[...])


# ----------------------------- pallas_call glue -------------------------------
def _batch_spec(shape):
    # block = (1, *trailing), indexed by the batch grid axis
    return pl.BlockSpec((1,) + tuple(shape[1:]), lambda n: (n, 0, 0))


def _full_spec(shape):
    nd = len(shape)
    return pl.BlockSpec(tuple(shape), lambda n, _nd=nd: (0,) * _nd)


def _fused_call(x_flat, eps, params):
    out_shape = (jax.ShapeDtypeStruct((N, C_IN, P), jnp.float32),   # recon (lane-dense)
                 jax.ShapeDtypeStruct((N, 1, KL_LANES), jnp.float32))
    return pl.pallas_call(
        _vaegan_kernel,
        out_shape=out_shape,
        grid=(N,),
        in_specs=[
            _batch_spec(x_flat.shape),
            _batch_spec(eps.shape),
            _full_spec(params["w1"].shape),
            _full_spec(params["b1"].shape),
            _full_spec(params["wh"].shape),
            _full_spec(params["bh"].shape),
            _full_spec(params["w2"].shape),
            _full_spec(params["b2"].shape),
            _full_spec(params["w3"].shape),
            _full_spec(params["b3"].shape),
        ],
        out_specs=(_batch_spec((N, C_IN, P)),
                   _batch_spec((N, 1, KL_LANES))),
        compiler_params=pltpu.CompilerParams(dimension_semantics=("parallel",)),
    )(x_flat, eps, params["w1"], params["b1"], params["wh"], params["bh"],
      params["w2"], params["b2"], params["w3"], params["b3"])


def init_params(key):
    ks = jax.random.split(key, 4)
    sc = 0.1
    return {
        # encoder: im2col weight, column order = (dy, dx, c)
        "w1": sc * jax.random.normal(ks[0], (K * K * C_IN, HID), jnp.float32),
        "b1": jnp.zeros((1, HID), jnp.float32),
        # fused [mu | logvar] head
        "wh": sc * jax.random.normal(ks[1], (HID, 2 * Z), jnp.float32),
        "bh": jnp.zeros((1, 2 * Z), jnp.float32),
        # decoder: im2col weight, column order = (dy, dx, c)
        "w2": sc * jax.random.normal(ks[2], (K * K * Z, HID), jnp.float32),
        "b2": jnp.zeros((1, HID), jnp.float32),
        # 1x1 output conv, stored (C_IN, HID) so the last matmul emits (C_IN, P)
        "w3": sc * jax.random.normal(ks[3], (C_IN, HID), jnp.float32),
        "b3": jnp.zeros((C_IN, 1), jnp.float32),
    }


def vaegan_generator_forward(x_nchw, params, sample_key):
    """Mirrors VAEGANGenerator.forward: returns (reconstruction, kl_loss).

    The PyTorch module stashes the KL in `self.store` (read via `.loss`);
    here we return it alongside the reconstruction.
    """
    # NCHW -> NHWC flattened pixels (single small fused XLA copy); everything
    # else (pad, both convs, rsample, KL, decode) happens inside one Pallas
    # kernel.
    x_flat = jnp.transpose(x_nchw, (0, 2, 3, 1)).reshape(N, P, C_IN).astype(jnp.float32)
    eps = jax.random.normal(sample_key, (N, P, Z), jnp.float32)   # rsample noise

    recon_cp, kl_rows = _fused_call(x_flat, eps, params)
    recon = recon_cp.reshape(N, C_IN, S, S)                       # metadata-only
    kl_loss = jnp.sum(kl_rows[:, 0, 0]) / N                       # batch-mean KL
    return recon, kl_loss


if __name__ == "__main__":
    key = jax.random.PRNGKey(0)
    k_x, k_p, k_s = jax.random.split(key, 3)

    x = jax.random.normal(k_x, (N, C_IN, S, S), jnp.float32)
    params = init_params(k_p)

    recon, kl = jax.jit(vaegan_generator_forward)(x, params, k_s)
    recon = jax.block_until_ready(recon)
    kl = jax.block_until_ready(kl)

    assert recon.shape == (N, C_IN, S, S)
    assert bool(jnp.all(jnp.isfinite(recon))) and bool(jnp.isfinite(kl))
    print("KERNEL_OK")
</pallas_src>

<mosaic_0001>
module attributes {stable_mosaic.version = 11 : i64} {
  func.func @_vaegan_kernel(%arg0: i32, %arg1: memref<1x256x4xf32, #tpu.memory_space<vmem>>, %arg2: memref<1x256x8xf32, #tpu.memory_space<vmem>>, %arg3: memref<36x32xf32, #tpu.memory_space<vmem>>, %arg4: memref<1x32xf32, #tpu.memory_space<vmem>>, %arg5: memref<32x16xf32, #tpu.memory_space<vmem>>, %arg6: memref<1x16xf32, #tpu.memory_space<vmem>>, %arg7: memref<72x32xf32, #tpu.memory_space<vmem>>, %arg8: memref<1x32xf32, #tpu.memory_space<vmem>>, %arg9: memref<4x32xf32, #tpu.memory_space<vmem>>, %arg10: memref<4x1xf32, #tpu.memory_space<vmem>>, %arg11: memref<1x4x256xf32, #tpu.memory_space<vmem>>, %arg12: memref<1x1x128xf32, #tpu.memory_space<vmem>>) attributes {dimension_semantics = [#tpu.dimension_semantics<parallel>], iteration_bounds = array<i64: 2>, scalar_prefetch = 0 : i64, scratch_operands = 0 : i64, tpu.core_type = #tpu.core_type<tc>, window_params = [{transform_indices = @transform_0, window_bounds = array<i64: 1, 256, 4>}, {transform_indices = @transform_1, window_bounds = array<i64: 1, 256, 8>}, {pipeline_mode = #tpu.pipeline_mode<synchronous>, transform_indices = @transform_2, window_bounds = array<i64: 36, 32>}, {pipeline_mode = #tpu.pipeline_mode<synchronous>, transform_indices = @transform_3, window_bounds = array<i64: 1, 32>}, {pipeline_mode = #tpu.pipeline_mode<synchronous>, transform_indices = @transform_4, window_bounds = array<i64: 32, 16>}, {pipeline_mode = #tpu.pipeline_mode<synchronous>, transform_indices = @transform_5, window_bounds = array<i64: 1, 16>}, {pipeline_mode = #tpu.pipeline_mode<synchronous>, transform_indices = @transform_6, window_bounds = array<i64: 72, 32>}, {pipeline_mode = #tpu.pipeline_mode<synchronous>, transform_indices = @transform_7, window_bounds = array<i64: 1, 32>}, {pipeline_mode = #tpu.pipeline_mode<synchronous>, transform_indices = @transform_8, window_bounds = array<i64: 4, 32>}, {pipeline_mode = #tpu.pipeline_mode<synchronous>, transform_indices = @transform_9, window_bounds = array<i64: 4, 1>}, {transform_indices = @transform_10, window_bounds = array<i64: 1, 4, 256>}, {transform_indices = @transform_11, window_bounds = array<i64: 1, 1, 128>}]} {
    %c0 = arith.constant 0 : index
    %c0_0 = arith.constant 0 : index
    %c0_1 = arith.constant 0 : index
    %0 = vector.load %arg1[%c0, %c0_0, %c0_1] : memref<1x256x4xf32, #tpu.memory_space<vmem>>, vector<1x256x4xf32>
    %1 = vector.shape_cast %0 : vector<1x256x4xf32> to vector<256x4xf32>
    %2 = vector.shape_cast %1 : vector<256x4xf32> to vector<16x16x4xf32>
    %cst = arith.constant 0.000000e+00 : f32
    %3 = vector.broadcast %cst : f32 to vector<1x16x4xf32>
    %cst_2 = arith.constant 0.000000e+00 : f32
    %4 = vector.broadcast %cst_2 : f32 to vector<18x1x4xf32>
    %5 = tpu.concatenate %3, %2, %3 in 0 : vector<1x16x4xf32>, vector<16x16x4xf32>, vector<1x16x4xf32> -> vector<18x16x4xf32>
    %6 = tpu.concatenate %4, %5, %4 in 1 : vector<18x1x4xf32>, vector<18x16x4xf32>, vector<18x1x4xf32> -> vector<18x18x4xf32>
    %7 = vector.extract_strided_slice %6 {offsets = [0, 0, 0], sizes = [16, 16, 4], strides = [1, 1, 1]} : vector<18x18x4xf32> to vector<16x16x4xf32>
    %8 = vector.shape_cast %7 : vector<16x16x4xf32> to vector<256x4xf32>
    %9 = vector.extract_strided_slice %6 {offsets = [0, 1, 0], sizes = [16, 16, 4], strides = [1, 1, 1]} : vector<18x18x4xf32> to vector<16x16x4xf32>
    %10 = vector.shape_cast %9 : vector<16x16x4xf32> to vector<256x4xf32>
    %11 = vector.extract_strided_slice %6 {offsets = [0, 2, 0], sizes = [16, 16, 4], strides = [1, 1, 1]} : vector<18x18x4xf32> to vector<16x16x4xf32>
    %12 = vector.shape_cast %11 : vector<16x16x4xf32> to vector<256x4xf32>
    %13 = vector.extract_strided_slice %6 {offsets = [1, 0, 0], sizes = [16, 16, 4], strides = [1, 1, 1]} : vector<18x18x4xf32> to vector<16x16x4xf32>
    %14 = vector.shape_cast %13 : vector<16x16x4xf32> to vector<256x4xf32>
    %15 = vector.extract_strided_slice %6 {offsets = [1, 1, 0], sizes = [16, 16, 4], strides = [1, 1, 1]} : vector<18x18x4xf32> to vector<16x16x4xf32>
    %16 = vector.shape_cast %15 : vector<16x16x4xf32> to vector<256x4xf32>
    %17 = vector.extract_strided_slice %6 {offsets = [1, 2, 0], sizes = [16, 16, 4], strides = [1, 1, 1]} : vector<18x18x4xf32> to vector<16x16x4xf32>
    %18 = vector.shape_cast %17 : vector<16x16x4xf32> to vector<256x4xf32>
    %19 = vector.extract_strided_slice %6 {offsets = [2, 0, 0], sizes = [16, 16, 4], strides = [1, 1, 1]} : vector<18x18x4xf32> to vector<16x16x4xf32>
    %20 = vector.shape_cast %19 : vector<16x16x4xf32> to vector<256x4xf32>
    %21 = vector.extract_strided_slice %6 {offsets = [2, 1, 0], sizes = [16, 16, 4], strides = [1, 1, 1]} : vector<18x18x4xf32> to vector<16x16x4xf32>
    %22 = vector.shape_cast %21 : vector<16x16x4xf32> to vector<256x4xf32>
    %23 = vector.extract_strided_slice %6 {offsets = [2, 2, 0], sizes = [16, 16, 4], strides = [1, 1, 1]} : vector<18x18x4xf32> to vector<16x16x4xf32>
    %24 = vector.shape_cast %23 : vector<16x16x4xf32> to vector<256x4xf32>
    %25 = tpu.concatenate %8, %10, %12, %14, %16, %18, %20, %22, %24 in 1 : vector<256x4xf32>, vector<256x4xf32>, vector<256x4xf32>, vector<256x4xf32>, vector<256x4xf32>, vector<256x4xf32>, vector<256x4xf32>, vector<256x4xf32>, vector<256x4xf32> -> vector<256x36xf32>
    %c0_3 = arith.constant 0 : index
    %c0_4 = arith.constant 0 : index
    %26 = vector.load %arg3[%c0_3, %c0_4] : memref<36x32xf32, #tpu.memory_space<vmem>>, vector<36x32xf32>
    %cst_5 = arith.constant dense<0.000000e+00> : vector<256x32xf32>
    %27 = tpu.matmul %25, %26, %cst_5 {dimension_numbers = #tpu.dot_dimension_numbers<[1], [0], [0], [1], [0, 0, 1, 1], [], []>} : vector<256x36xf32>, vector<36x32xf32>, vector<256x32xf32> -> vector<256x32xf32>
    %c0_6 = arith.constant 0 : index
    %c0_7 = arith.constant 0 : index
    %28 = vector.load %arg4[%c0_6, %c0_7] : memref<1x32xf32, #tpu.memory_space<vmem>>, vector<1x32xf32>
    %29 = vector.broadcast %28 : vector<1x32xf32> to vector<256x32xf32>
    %30 = arith.addf %27, %29 : vector<256x32xf32>
    %cst_8 = arith.constant 0.000000e+00 : f32
    %31 = vector.broadcast %cst_8 : f32 to vector<256x32xf32>
    %32 = arith.maximumf %30, %31 : vector<256x32xf32>
    %c0_9 = arith.constant 0 : index
    %c0_10 = arith.constant 0 : index
    %33 = vector.load %arg5[%c0_9, %c0_10] : memref<32x16xf32, #tpu.memory_space<vmem>>, vector<32x16xf32>
    %cst_11 = arith.constant dense<0.000000e+00> : vector<256x16xf32>
    %34 = tpu.matmul %32, %33, %cst_11 {dimension_numbers = #tpu.dot_dimension_numbers<[1], [0], [0], [1], [0, 0, 1, 1], [], []>} : vector<256x32xf32>, vector<32x16xf32>, vector<256x16xf32> -> vector<256x16xf32>
    %c0_12 = arith.constant 0 : index
    %c0_13 = arith.constant 0 : index
    %35 = vector.load %arg6[%c0_12, %c0_13] : memref<1x16xf32, #tpu.memory_space<vmem>>, vector<1x16xf32>
    %36 = vector.broadcast %35 : vector<1x16xf32> to vector<256x16xf32>
    %37 = arith.addf %34, %36 : vector<256x16xf32>
    %38 = vector.extract_strided_slice %37 {offsets = [0, 0], sizes = [256, 8], strides = [1, 1]} : vector<256x16xf32> to vector<256x8xf32>
    %39 = vector.extract_strided_slice %37 {offsets = [0, 8], sizes = [256, 8], strides = [1, 1]} : vector<256x16xf32> to vector<256x8xf32>
    %cst_14 = arith.constant 5.000000e-01 : f32
    %40 = vector.broadcast %cst_14 : f32 to vector<256x8xf32>
    %41 = arith.mulf %40, %39 : vector<256x8xf32>
    %42 = math.exp %41 : vector<256x8xf32>
    %c0_15 = arith.constant 0 : index
    %c0_16 = arith.constant 0 : index
    %c0_17 = arith.constant 0 : index
    %43 = vector.load %arg2[%c0_15, %c0_16, %c0_17] : memref<1x256x8xf32, #tpu.memory_space<vmem>>, vector<1x256x8xf32>
    %44 = vector.shape_cast %43 : vector<1x256x8xf32> to vector<256x8xf32>
    %45 = arith.mulf %42, %44 : vector<256x8xf32>
    %46 = arith.addf %38, %45 : vector<256x8xf32>
    %47 = arith.mulf %38, %38 : vector<256x8xf32>
    %48 = arith.mulf %42, %42 : vector<256x8xf32>
    %49 = arith.addf %47, %48 : vector<256x8xf32>
    %50 = arith.subf %49, %39 : vector<256x8xf32>
    %cst_18 = arith.constant 1.000000e+00 : f32
    %51 = vector.broadcast %cst_18 : f32 to vector<256x8xf32>
    %52 = arith.subf %50, %51 : vector<256x8xf32>
    %cst_19 = arith.constant 5.000000e-01 : f32
    %53 = vector.broadcast %cst_19 : f32 to vector<256x8xf32>
    %54 = arith.mulf %53, %52 : vector<256x8xf32>
    %55 = vector.shape_cast %54 : vector<256x8xf32> to vector<1x256x8xf32>
    %cst_20 = arith.constant dense<0.000000e+00> : vector<1xf32>
    %56 = vector.multi_reduction <add>, %55, %cst_20 [1, 2] : vector<1x256x8xf32> to vector<1xf32>
    %57 = vector.shape_cast %56 : vector<1xf32> to vector<1x1x1xf32>
    %58 = vector.extract %57[0, 0, 0] : f32 from vector<1x1x1xf32>
    %59 = vector.broadcast %58 : f32 to vector<1x1xf32>
    %60 = vector.shape_cast %59 : vector<1x1xf32> to vector<1x1x1xf32>
    %61 = vector.broadcast %60 : vector<1x1x1xf32> to vector<1x1x128xf32>
    %c0_21 = arith.constant 0 : index
    %c0_22 = arith.constant 0 : index
    %c0_23 = arith.constant 0 : index
    %62 = vector.load %arg12[%c0_21, %c0_22, %c0_23] : memref<1x1x128xf32, #tpu.memory_space<vmem>>, vector<1x1x128xf32>
    tpu.vector_store %arg12[%c0_21, %c0_22, %c0_23], %61 {strides = array<i32>} : memref<1x1x128xf32, #tpu.memory_space<vmem>>, vector<1x1x128xf32>,
    %63 = vector.shape_cast %46 : vector<256x8xf32> to vector<16x16x8xf32>
    %cst_24 = arith.constant 0.000000e+00 : f32
    %64 = vector.broadcast %cst_24 : f32 to vector<1x16x8xf32>
    %cst_25 = arith.constant 0.000000e+00 : f32
    %65 = vector.broadcast %cst_25 : f32 to vector<18x1x8xf32>
    %66 = tpu.concatenate %64, %63, %64 in 0 : vector<1x16x8xf32>, vector<16x16x8xf32>, vector<1x16x8xf32> -> vector<18x16x8xf32>
    %67 = tpu.concatenate %65, %66, %65 in 1 : vector<18x1x8xf32>, vector<18x16x8xf32>, vector<18x1x8xf32> -> vector<18x18x8xf32>
    %68 = vector.extract_strided_slice %67 {offsets = [0, 0, 0], sizes = [16, 16, 8], strides = [1, 1, 1]} : vector<18x18x8xf32> to vector<16x16x8xf32>
    %69 = vector.shape_cast %68 : vector<16x16x8xf32> to vector<256x8xf32>
    %70 = vector.extract_strided_slice %67 {offsets = [0, 1, 0], sizes = [16, 16, 8], strides = [1, 1, 1]} : vector<18x18x8xf32> to vector<16x16x8xf32>
    %71 = vector.shape_cast %70 : vector<16x16x8xf32> to vector<256x8xf32>
    %72 = vector.extract_strided_slice %67 {offsets = [0, 2, 0], sizes = [16, 16, 8], strides = [1, 1, 1]} : vector<18x18x8xf32> to vector<16x16x8xf32>
    %73 = vector.shape_cast %72 : vector<16x16x8xf32> to vector<256x8xf32>
    %74 = vector.extract_strided_slice %67 {offsets = [1, 0, 0], sizes = [16, 16, 8], strides = [1, 1, 1]} : vector<18x18x8xf32> to vector<16x16x8xf32>
    %75 = vector.shape_cast %74 : vector<16x16x8xf32> to vector<256x8xf32>
    %76 = vector.extract_strided_slice %67 {offsets = [1, 1, 0], sizes = [16, 16, 8], strides = [1, 1, 1]} : vector<18x18x8xf32> to vector<16x16x8xf32>
    %77 = vector.shape_cast %76 : vector<16x16x8xf32> to vector<256x8xf32>
    %78 = vector.extract_strided_slice %67 {offsets = [1, 2, 0], sizes = [16, 16, 8], strides = [1, 1, 1]} : vector<18x18x8xf32> to vector<16x16x8xf32>
    %79 = vector.shape_cast %78 : vector<16x16x8xf32> to vector<256x8xf32>
    %80 = vector.extract_strided_slice %67 {offsets = [2, 0, 0], sizes = [16, 16, 8], strides = [1, 1, 1]} : vector<18x18x8xf32> to vector<16x16x8xf32>
    %81 = vector.shape_cast %80 : vector<16x16x8xf32> to vector<256x8xf32>
    %82 = vector.extract_strided_slice %67 {offsets = [2, 1, 0], sizes = [16, 16, 8], strides = [1, 1, 1]} : vector<18x18x8xf32> to vector<16x16x8xf32>
    %83 = vector.shape_cast %82 : vector<16x16x8xf32> to vector<256x8xf32>
    %84 = vector.extract_strided_slice %67 {offsets = [2, 2, 0], sizes = [16, 16, 8], strides = [1, 1, 1]} : vector<18x18x8xf32> to vector<16x16x8xf32>
    %85 = vector.shape_cast %84 : vector<16x16x8xf32> to vector<256x8xf32>
    %86 = tpu.concatenate %69, %71, %73, %75, %77, %79, %81, %83, %85 in 1 : vector<256x8xf32>, vector<256x8xf32>, vector<256x8xf32>, vector<256x8xf32>, vector<256x8xf32>, vector<256x8xf32>, vector<256x8xf32>, vector<256x8xf32>, vector<256x8xf32> -> vector<256x72xf32>
    %c0_26 = arith.constant 0 : index
    %c0_27 = arith.constant 0 : index
    %87 = vector.load %arg7[%c0_26, %c0_27] : memref<72x32xf32, #tpu.memory_space<vmem>>, vector<72x32xf32>
    %cst_28 = arith.constant dense<0.000000e+00> : vector<256x32xf32>
    %88 = tpu.matmul %86, %87, %cst_28 {dimension_numbers = #tpu.dot_dimension_numbers<[1], [0], [0], [1], [0, 0, 1, 1], [], []>} : vector<256x72xf32>, vector<72x32xf32>, vector<256x32xf32> -> vector<256x32xf32>
    %c0_29 = arith.constant 0 : index
    %c0_30 = arith.constant 0 : index
    %89 = vector.load %arg8[%c0_29, %c0_30] : memref<1x32xf32, #tpu.memory_space<vmem>>, vector<1x32xf32>
    %90 = vector.broadcast %89 : vector<1x32xf32> to vector<256x32xf32>
    %91 = arith.addf %88, %90 : vector<256x32xf32>
    %cst_31 = arith.constant 0.000000e+00 : f32
    %92 = vector.broadcast %cst_31 : f32 to vector<256x32xf32>
    %93 = arith.maximumf %91, %92 : vector<256x32xf32>
    %c0_32 = arith.constant 0 : index
    %c0_33 = arith.constant 0 : index
    %94 = vector.load %arg9[%c0_32, %c0_33] : memref<4x32xf32, #tpu.memory_space<vmem>>, vector<4x32xf32>
    %cst_34 = arith.constant dense<0.000000e+00> : vector<4x256xf32>
    %95 = tpu.matmul %94, %93, %cst_34 {dimension_numbers = #tpu.dot_dimension_numbers<[1], [1], [0], [0], [0, 0, 1, 0], [], []>} : vector<4x32xf32>, vector<256x32xf32>, vector<4x256xf32> -> vector<4x256xf32>
    %c0_35 = arith.constant 0 : index
    %c0_36 = arith.constant 0 : index
    %96 = vector.load %arg10[%c0_35, %c0_36] : memref<4x1xf32, #tpu.memory_space<vmem>>, vector<4x1xf32>
    %97 = vector.broadcast %96 : vector<4x1xf32> to vector<4x256xf32>
    %98 = arith.addf %95, %97 : vector<4x256xf32>
    %99 = math.tanh %98 : vector<4x256xf32>
    %c0_37 = arith.constant 0 : index
    %c0_38 = arith.constant 0 : index
    %c0_39 = arith.constant 0 : index
    %100 = vector.load %arg11[%c0_37, %c0_38, %c0_39] : memref<1x4x256xf32, #tpu.memory_space<vmem>>, vector<1x4x256xf32>
    %101 = vector.shape_cast %100 : vector<1x4x256xf32> to vector<4x256xf32>
    %102 = vector.shape_cast %99 : vector<4x256xf32> to vector<1x4x256xf32>
    tpu.vector_store %arg11[%c0_37, %c0_38, %c0_39], %102 {strides = array<i32>} : memref<1x4x256xf32, #tpu.memory_space<vmem>>, vector<1x4x256xf32>,
    return
  }
  func.func @transform_0(%arg0: i32) -> (i32, i32, i32) {
    %c0_i32 = arith.constant 0 : i32
    %c0_i32_0 = arith.constant 0 : i32
    %c0_i32_1 = arith.constant 0 : i32
    return %arg0, %c0_i32, %c0_i32_0 : i32, i32, i32
  }
  func.func @transform_1(%arg0: i32) -> (i32, i32, i32) {
    %c0_i32 = arith.constant 0 : i32
    %c0_i32_0 = arith.constant 0 : i32
    %c0_i32_1 = arith.constant 0 : i32
    return %arg0, %c0_i32, %c0_i32_0 : i32, i32, i32
  }
  func.func @transform_2(%arg0: i32) -> (i32, i32) {
    %c0_i32 = arith.constant 0 : i32
    %c0_i32_0 = arith.constant 0 : i32
    %c0_i32_1 = arith.constant 0 : i32
    return %c0_i32, %c0_i32_0 : i32, i32
  }
  func.func @transform_3(%arg0: i32) -> (i32, i32) {
    %c0_i32 = arith.constant 0 : i32
    %c0_i32_0 = arith.constant 0 : i32
    %c0_i32_1 = arith.constant 0 : i32
    return %c0_i32, %c0_i32_0 : i32, i32
  }
  func.func @transform_4(%arg0: i32) -> (i32, i32) {
    %c0_i32 = arith.constant 0 : i32
    %c0_i32_0 = arith.constant 0 : i32
    %c0_i32_1 = arith.constant 0 : i32
    return %c0_i32, %c0_i32_0 : i32, i32
  }
  func.func @transform_5(%arg0: i32) -> (i32, i32) {
    %c0_i32 = arith.constant 0 : i32
    %c0_i32_0 = arith.constant 0 : i32
    %c0_i32_1 = arith.constant 0 : i32
    return %c0_i32, %c0_i32_0 : i32, i32
  }
  func.func @transform_6(%arg0: i32) -> (i32, i32) {
    %c0_i32 = arith.constant 0 : i32
    %c0_i32_0 = arith.constant 0 : i32
    %c0_i32_1 = arith.constant 0 : i32
    return %c0_i32, %c0_i32_0 : i32, i32
  }
  func.func @transform_7(%arg0: i32) -> (i32, i32) {
    %c0_i32 = arith.constant 0 : i32
    %c0_i32_0 = arith.constant 0 : i32
    %c0_i32_1 = arith.constant 0 : i32
    return %c0_i32, %c0_i32_0 : i32, i32
  }
  func.func @transform_8(%arg0: i32) -> (i32, i32) {
    %c0_i32 = arith.constant 0 : i32
    %c0_i32_0 = arith.constant 0 : i32
    %c0_i32_1 = arith.constant 0 : i32
    return %c0_i32, %c0_i32_0 : i32, i32
  }
  func.func @transform_9(%arg0: i32) -> (i32, i32) {
    %c0_i32 = arith.constant 0 : i32
    %c0_i32_0 = arith.constant 0 : i32
    %c0_i32_1 = arith.constant 0 : i32
    return %c0_i32, %c0_i32_0 : i32, i32
  }
  func.func @transform_10(%arg0: i32) -> (i32, i32, i32) {
    %c0_i32 = arith.constant 0 : i32
    %c0_i32_0 = arith.constant 0 : i32
    %c0_i32_1 = arith.constant 0 : i32
    return %arg0, %c0_i32, %c0_i32_0 : i32, i32, i32
  }
  func.func @transform_11(%arg0: i32) -> (i32, i32, i32) {
    %c0_i32 = arith.constant 0 : i32
    %c0_i32_0 = arith.constant 0 : i32
    %c0_i32_1 = arith.constant 0 : i32
    return %arg0, %c0_i32, %c0_i32_0 : i32, i32, i32
  }
}

</mosaic_0001>

<llo_original>
// kernel: vaegan_generator_forward.1
$region0: #{vaegan_generator_forward.1}
  #allocation0 [shape = 'u32[]', space=smem, size = 0x4, offset = 0x4, fixed_abs, tag = 'smem constant byte address 0x4 - core index']
  #allocation1 [shape = 'u32[144,128]{1,0:T(1,128)}', space=vmem, size = 0x12000, scoped, tag = 'internal scratch']
  %s0 = inlined_call_operand.vmem [shape: f32[2,256,4], index: 0, kind: input, shape index: {}]
  %s1 = inlined_call_operand.vmem [shape: f32[2,256,8], index: 1, kind: input, shape index: {}]
  %s2 = inlined_call_operand.vmem [shape: f32[36,32], index: 2, kind: input, shape index: {}]
  %s3 = inlined_call_operand.vmem [shape: f32[1,32], index: 3, kind: input, shape index: {}]
  %s4 = inlined_call_operand.vmem [shape: f32[32,16], index: 4, kind: input, shape index: {}]
  %s5 = inlined_call_operand.vmem [shape: f32[1,16], index: 5, kind: input, shape index: {}]
  %s6 = inlined_call_operand.vmem [shape: f32[72,32], index: 6, kind: input, shape index: {}]
  %s7 = inlined_call_operand.vmem [shape: f32[1,32], index: 7, kind: input, shape index: {}]
  %s8 = inlined_call_operand.vmem [shape: f32[4,32], index: 8, kind: input, shape index: {}]
  %s9 = inlined_call_operand.vmem [shape: f32[4,1], index: 9, kind: input, shape index: {}]
  %s10 = inlined_call_operand.vmem [shape: f32[2,4,256], index: 10, kind: output, shape index: {0}]
  %s11 = inlined_call_operand.vmem [shape: f32[2,1,128], index: 11, kind: output, shape index: {1}]
  %12 = xla_tuple %s10, %s11
  %s13 = sld [smem:[#allocation0]]
  $region81: #{vaegan_generator_forward.1} parent=0
    _
  %s15 = ssub.s32 1, %s13
  %s16 = scalar_select 0, %s15, %s13
  loop: start=0, step=1, limit=4
  $region2: #{vaegan_generator_forward.1} parent=0 // loop_pre_header
    _
  $region3: #{vaegan_generator_forward.1} parent=0 // loop_header
    %s18 = sphi 0, %s22
    %p19 = scmp.ge.s32.totalorder %s18, 4
    %s28 = sphi 0, %s30
    %s31 = sphi 0, %s28
    %s32 = sphi 0, %s31
    %s48 = sphi 0, %s32
    %s54 = sphi 0, %s56
    %s57 = sphi 0, %s54
    %s58 = sphi 0, %s57
    %s74 = sphi 0, %s58
    %s78 = sphi 0, %s78
    %s80 = sphi 0, %s78
    %s81 = sphi 0, %s80
    %s95 = sphi 0, %s81
    %s99 = sphi 0, %s99
    %s101 = sphi 0, %s99
    %s102 = sphi 0, %s101
    %s116 = sphi 0, %s102
    %s120 = sphi 0, %s120
    %s122 = sphi 0, %s120
    %s123 = sphi 0, %s122
    %s137 = sphi 0, %s123
    %s141 = sphi 0, %s141
    %s143 = sphi 0, %s141
    %s144 = sphi 0, %s143
    %s158 = sphi 0, %s144
    %s162 = sphi 0, %s162
    %s164 = sphi 0, %s162
    %s165 = sphi 0, %s164
    %s179 = sphi 0, %s165
    %s183 = sphi 0, %s183
    %s185 = sphi 0, %s183
    %s186 = sphi 0, %s185
    %s200 = sphi 0, %s186
    %s204 = sphi 0, %s204
    %s206 = sphi 0, %s204
    %s207 = sphi 0, %s206
    %s221 = sphi 0, %s207
    %s225 = sphi 0, %s225
    %s227 = sphi 0, %s225
    %s228 = sphi 0, %s227
    %s242 = sphi 0, %s228
    %s248 = sphi 0, %s250
    %s251 = sphi 0, %s248
    %s252 = sphi 0, %s251
    %s268 = sphi 0, %s252
    %s274 = sphi 0, %s276
    %s277 = sphi 0, %s274
    %s278 = sphi 0, %s277
    %s294 = sphi 0, %s278
  $region4: #{vaegan_generator_forward.1} parent=0 // loop_header_branch
    %21 = sbr.rel (%p19) target = $region8
  $region5: #{vaegan_generator_forward.1} parent=0 // loop_body
    %s23 = ssub.s32 %s18, 1
    %s24 = ssub.s32 %s18, 2
    %s25 = sadd.s32 %s18, 1
    %s26 = ssub.s32 %s18, %s25
    %p27 = scmp.eq.s32.totalorder %s26, 0
    %s29 = sadd.s32 %s28, 1
    %s30 = scalar_select %p27, %s28, %s29
    %p33 = pneg %p27
    %p34 = scmp.eq.s32.totalorder %s18, 1
    %p35 = por %p33, %p34
    %p36 = scmp.ne.s32.totalorder %s28, %s31
    %p37 = scmp.eq.s32.totalorder %s18, 0
    %p38 = por %p36, %p37
    %p39 = scmp.ne.s32.totalorder %s28, %s31
    %p40 = scmp.eq.s32.totalorder %s23, 1
    %p41 = por %p39, %p40
    %p42 = scmp.ne.s32.totalorder %s31, %s32
    %p43 = scmp.eq.s32.totalorder %s23, 0
    %p44 = por %p42, %p43
    %p45 = scmp.ne.s32.totalorder %s31, %s32
    %p46 = scmp.eq.s32.totalorder %s24, 1
    %p47 = por %p45, %p46
    %p49 = scmp.ne.s32.totalorder %s32, %s48
    %p50 = scmp.eq.s32.totalorder %s24, 0
    %p51 = por %p49, %p50
    %s52 = ssub.s32 %s18, %s25
    %p53 = scmp.eq.s32.totalorder %s52, 0
    %s55 = sadd.s32 %s54, 1
    %s56 = scalar_select %p53, %s54, %s55
    %p59 = pneg %p53
    %p60 = scmp.eq.s32.totalorder %s18, 1
    %p61 = por %p59, %p60
    %p62 = scmp.ne.s32.totalorder %s54, %s57
    %p63 = scmp.eq.s32.totalorder %s18, 0
    %p64 = por %p62, %p63
    %p65 = scmp.ne.s32.totalorder %s54, %s57
    %p66 = scmp.eq.s32.totalorder %s23, 1
    %p67 = por %p65, %p66
    %p68 = scmp.ne.s32.totalorder %s57, %s58
    %p69 = scmp.eq.s32.totalorder %s23, 0
    %p70 = por %p68, %p69
    %p71 = scmp.ne.s32.totalorder %s57, %s58
    %p72 = scmp.eq.s32.totalorder %s24, 1
    %p73 = por %p71, %p72
    %p75 = scmp.ne.s32.totalorder %s58, %s74
    %p76 = scmp.eq.s32.totalorder %s24, 0
    %p77 = por %p75, %p76
    %s79 = sadd.s32 %s78, 1
    %p82 = scmp.eq.s32.totalorder %s18, 1
    %p83 = scmp.ne.s32.totalorder %s78, %s80
    %p84 = scmp.eq.s32.totalorder %s18, 0
    %p85 = por %p83, %p84
    %p86 = scmp.ne.s32.totalorder %s78, %s80
    %p87 = scmp.eq.s32.totalorder %s23, 1
    %p88 = por %p86, %p87
    %p89 = scmp.ne.s32.totalorder %s80, %s81
    %p90 = scmp.eq.s32.totalorder %s23, 0
    %p91 = por %p89, %p90
    %p92 = scmp.ne.s32.totalorder %s80, %s81
    %p93 = scmp.eq.s32.totalorder %s24, 1
    %p94 = por %p92, %p93
    %p96 = scmp.ne.s32.totalorder %s81, %s95
    %p97 = scmp.eq.s32.totalorder %s24, 0
    %p98 = por %p96, %p97
    %s100 = sadd.s32 %s99, 1
    %p103 = scmp.eq.s32.totalorder %s18, 1
    %p104 = scmp.ne.s32.totalorder %s99, %s101
    %p105 = scmp.eq.s32.totalorder %s18, 0
    %p106 = por %p104, %p105
    %p107 = scmp.ne.s32.totalorder %s99, %s101
    %p108 = scmp.eq.s32.totalorder %s23, 1
    %p109 = por %p107, %p108
    %p110 = scmp.ne.s32.totalorder %s101, %s102
    %p111 = scmp.eq.s32.totalorder %s23, 0
    %p112 = por %p110, %p111
    %p113 = scmp.ne.s32.totalorder %s101, %s102
    %p114 = scmp.eq.s32.totalorder %s24, 1
    %p115 = por %p113, %p114
    %p117 = scmp.ne.s32.totalorder %s102, %s116
    %p118 = scmp.eq.s32.totalorder %s24, 0
    %p119 = por %p117, %p118
    %s121 = sadd.s32 %s120, 1
    %p124 = scmp.eq.s32.totalorder %s18, 1
    %p125 = scmp.ne.s32.totalorder %s120, %s122
    %p126 = scmp.eq.s32.totalorder %s18, 0
    %p127 = por %p125, %p126
    %p128 = scmp.ne.s32.totalorder %s120, %s122
    %p129 = scmp.eq.s32.totalorder %s23, 1
    %p130 = por %p128, %p129
    %p131 = scmp.ne.s32.totalorder %s122, %s123
    %p132 = scmp.eq.s32.totalorder %s23, 0
    %p133 = por %p131, %p132
    %p134 = scmp.ne.s32.totalorder %s122, %s123
    %p135 = scmp.eq.s32.totalorder %s24, 1
    %p136 = por %p134, %p135
    %p138 = scmp.ne.s32.totalorder %s123, %s137
    %p139 = scmp.eq.s32.totalorder %s24, 0
    %p140 = por %p138, %p139
    %s142 = sadd.s32 %s141, 1
    %p145 = scmp.eq.s32.totalorder %s18, 1
    %p146 = scmp.ne.s32.totalorder %s141, %s143
    %p147 = scmp.eq.s32.totalorder %s18, 0
    %p148 = por %p146, %p147
    %p149 = scmp.ne.s32.totalorder %s141, %s143
    %p150 = scmp.eq.s32.totalorder %s23, 1
    %p151 = por %p149, %p150
    %p152 = scmp.ne.s32.totalorder %s143, %s144
    %p153 = scmp.eq.s32.totalorder %s23, 0
    %p154 = por %p152, %p153
    %p155 = scmp.ne.s32.totalorder %s143, %s144
    %p156 = scmp.eq.s32.totalorder %s24, 1
    %p157 = por %p155, %p156
    %p159 = scmp.ne.s32.totalorder %s144, %s158
    %p160 = scmp.eq.s32.totalorder %s24, 0
    %p161 = por %p159, %p160
    %s163 = sadd.s32 %s162, 1
    %p166 = scmp.eq.s32.totalorder %s18, 1
    %p167 = scmp.ne.s32.totalorder %s162, %s164
    %p168 = scmp.eq.s32.totalorder %s18, 0
    %p169 = por %p167, %p168
    %p170 = scmp.ne.s32.totalorder %s162, %s164
    %p171 = scmp.eq.s32.totalorder %s23, 1
    %p172 = por %p170, %p171
    %p173 = scmp.ne.s32.totalorder %s164, %s165
    %p174 = scmp.eq.s32.totalorder %s23, 0
    %p175 = por %p173, %p174
    %p176 = scmp.ne.s32.totalorder %s164, %s165
    %p177 = scmp.eq.s32.totalorder %s24, 1
    %p178 = por %p176, %p177
    %p180 = scmp.ne.s32.totalorder %s165, %s179
    %p181 = scmp.eq.s32.totalorder %s24, 0
    %p182 = por %p180, %p181
    %s184 = sadd.s32 %s183, 1
    %p187 = scmp.eq.s32.totalorder %s18, 1
    %p188 = scmp.ne.s32.totalorder %s183, %s185
    %p189 = scmp.eq.s32.totalorder %s18, 0
    %p190 = por %p188, %p189
    %p191 = scmp.ne.s32.totalorder %s183, %s185
    %p192 = scmp.eq.s32.totalorder %s23, 1
    %p193 = por %p191, %p192
    %p194 = scmp.ne.s32.totalorder %s185, %s186
    %p195 = scmp.eq.s32.totalorder %s23, 0
    %p196 = por %p194, %p195
    %p197 = scmp.ne.s32.totalorder %s185, %s186
    %p198 = scmp.eq.s32.totalorder %s24, 1
    %p199 = por %p197, %p198
    %p201 = scmp.ne.s32.totalorder %s186, %s200
    %p202 = scmp.eq.s32.totalorder %s24, 0
    %p203 = por %p201, %p202
    %s205 = sadd.s32 %s204, 1
    %p208 = scmp.eq.s32.totalorder %s18, 1
    %p209 = scmp.ne.s32.totalorder %s204, %s206
    %p210 = scmp.eq.s32.totalorder %s18, 0
    %p211 = por %p209, %p210
    %p212 = scmp.ne.s32.totalorder %s204, %s206
    %p213 = scmp.eq.s32.totalorder %s23, 1
    %p214 = por %p212, %p213
    %p215 = scmp.ne.s32.totalorder %s206, %s207
    %p216 = scmp.eq.s32.totalorder %s23, 0
    %p217 = por %p215, %p216
    %p218 = scmp.ne.s32.totalorder %s206, %s207
    %p219 = scmp.eq.s32.totalorder %s24, 1
    %p220 = por %p218, %p219
    %p222 = scmp.ne.s32.totalorder %s207, %s221
    %p223 = scmp.eq.s32.totalorder %s24, 0
    %p224 = por %p222, %p223
    %s226 = sadd.s32 %s225, 1
    %p229 = scmp.eq.s32.totalorder %s18, 1
    %p230 = scmp.ne.s32.totalorder %s225, %s227
    %p231 = scmp.eq.s32.totalorder %s18, 0
    %p232 = por %p230, %p231
    %p233 = scmp.ne.s32.totalorder %s225, %s227
    %p234 = scmp.eq.s32.totalorder %s23, 1
    %p235 = por %p233, %p234
    %p236 = scmp.ne.s32.totalorder %s227, %s228
    %p237 = scmp.eq.s32.totalorder %s23, 0
    %p238 = por %p236, %p237
    %p239 = scmp.ne.s32.totalorder %s227, %s228
    %p240 = scmp.eq.s32.totalorder %s24, 1
    %p241 = por %p239, %p240
    %p243 = scmp.ne.s32.totalorder %s228, %s242
    %p244 = scmp.eq.s32.totalorder %s24, 0
    %p245 = por %p243, %p244
    %s246 = ssub.s32 %s18, %s25
    %p247 = scmp.eq.s32.totalorder %s246, 0
    %s249 = sadd.s32 %s248, 1
    %s250 = scalar_select %p247, %s248, %s249
    %p253 = pneg %p247
    %p254 = scmp.eq.s32.totalorder %s18, 1
    %p255 = por %p253, %p254
    %p256 = scmp.ne.s32.totalorder %s248, %s251
    %p257 = scmp.eq.s32.totalorder %s18, 0
    %p258 = por %p256, %p257
    %p259 = scmp.ne.s32.totalorder %s248, %s251
    %p260 = scmp.eq.s32.totalorder %s23, 1
    %p261 = por %p259, %p260
    %p262 = scmp.ne.s32.totalorder %s251, %s252
    %p263 = scmp.eq.s32.totalorder %s23, 0
    %p264 = por %p262, %p263
    %p265 = scmp.ne.s32.totalorder %s251, %s252
    %p266 = scmp.eq.s32.totalorder %s24, 1
    %p267 = por %p265, %p266
    %p269 = scmp.ne.s32.totalorder %s252, %s268
    %p270 = scmp.eq.s32.totalorder %s24, 0
    %p271 = por %p269, %p270
    %s272 = ssub.s32 %s18, %s25
    %p273 = scmp.eq.s32.totalorder %s272, 0
    %s275 = sadd.s32 %s274, 1
    %s276 = scalar_select %p273, %s274, %s275
    %p279 = pneg %p273
    %p280 = scmp.eq.s32.totalorder %s18, 1
    %p281 = por %p279, %p280
    %p282 = scmp.ne.s32.totalorder %s274, %s277
    %p283 = scmp.eq.s32.totalorder %s18, 0
    %p284 = por %p282, %p283
    %p285 = scmp.ne.s32.totalorder %s274, %s277
    %p286 = scmp.eq.s32.totalorder %s23, 1
    %p287 = por %p285, %p286
    %p288 = scmp.ne.s32.totalorder %s277, %s278
    %p289 = scmp.eq.s32.totalorder %s23, 0
    %p290 = por %p288, %p289
    %p291 = scmp.ne.s32.totalorder %s277, %s278
    %p292 = scmp.eq.s32.totalorder %s24, 1
    %p293 = por %p291, %p292
    %p295 = scmp.ne.s32.totalorder %s278, %s294
    %p296 = scmp.eq.s32.totalorder %s24, 0
    %p297 = por %p295, %p296
    %p298 = scmp.le.s32.totalorder 1, %s18
    %p299 = scmp.lt.s32.totalorder %s18, 3
    %p300 = pnand %p298, %p299
    %p301 = pneg %p300
    // Predicated region
    $region9: #{vaegan_generator_forward.1} parent=5 // pred_check
      _
    $region10: #{vaegan_generator_forward.1} parent=5 // pred_check_branch
      %303 = sbr.rel (%p300) target = $region12
    $region11: #{vaegan_generator_forward.1} parent=5 // pred_region
      %s304 = ssub.s32 %s18, 1
      // Predicated region
      $region13: #{vaegan_generator_forward.1} parent=11 // pred_check
        %p305 = pneg %p91
      $region14: #{vaegan_generator_forward.1} parent=11 // pred_check_branch
        %307 = sbr.rel (%p305) target = $region16
      $region15: #{vaegan_generator_forward.1} parent=11 // pred_region
        _
      $region16: #{vaegan_generator_forward.1} parent=11 // pred_fallthru
        _
      // Predicated region
      $region17: #{vaegan_generator_forward.1} parent=11 // pred_check
        %p308 = pneg %p112
      $region18: #{vaegan_generator_forward.1} parent=11 // pred_check_branch
        %310 = sbr.rel (%p308) target = $region20
      $region19: #{vaegan_generator_forward.1} parent=11 // pred_region
        _
      $region20: #{vaegan_generator_forward.1} parent=11 // pred_fallthru
        _
      // Predicated region
      $region21: #{vaegan_generator_forward.1} parent=11 // pred_check
        %p311 = pneg %p133
      $region22: #{vaegan_generator_forward.1} parent=11 // pred_check_branch
        %313 = sbr.rel (%p311) target = $region24
      $region23: #{vaegan_generator_forward.1} parent=11 // pred_region
        _
      $region24: #{vaegan_generator_forward.1} parent=11 // pred_fallthru
        _
      // Predicated region
      $region25: #{vaegan_generator_forward.1} parent=11 // pred_check
        %p314 = pneg %p154
      $region26: #{vaegan_generator_forward.1} parent=11 // pred_check_branch
        %316 = sbr.rel (%p314) target = $region28
      $region27: #{vaegan_generator_forward.1} parent=11 // pred_region
        _
      $region28: #{vaegan_generator_forward.1} parent=11 // pred_fallthru
        _
      // Predicated region
      $region29: #{vaegan_generator_forward.1} parent=11 // pred_check
        %p317 = pneg %p175
      $region30: #{vaegan_generator_forward.1} parent=11 // pred_check_branch
        %319 = sbr.rel (%p317) target = $region32
      $region31: #{vaegan_generator_forward.1} parent=11 // pred_region
        _
      $region32: #{vaegan_generator_forward.1} parent=11 // pred_fallthru
        _
      // Predicated region
      $region33: #{vaegan_generator_forward.1} parent=11 // pred_check
        %p320 = pneg %p196
      $region34: #{vaegan_generator_forward.1} parent=11 // pred_check_branch
        %322 = sbr.rel (%p320) target = $region36
      $region35: #{vaegan_generator_forward.1} parent=11 // pred_region
        _
      $region36: #{vaegan_generator_forward.1} parent=11 // pred_fallthru
        _
      // Predicated region
      $region37: #{vaegan_generator_forward.1} parent=11 // pred_check
        %p323 = pneg %p217
      $region38: #{vaegan_generator_forward.1} parent=11 // pred_check_branch
        %325 = sbr.rel (%p323) target = $region40
      $region39: #{vaegan_generator_forward.1} parent=11 // pred_region
        _
      $region40: #{vaegan_generator_forward.1} parent=11 // pred_fallthru
        _
      // Predicated region
      $region41: #{vaegan_generator_forward.1} parent=11 // pred_check
        %p326 = pneg %p238
      $region42: #{vaegan_generator_forward.1} parent=11 // pred_check_branch
        %328 = sbr.rel (%p326) target = $region44
      $region43: #{vaegan_generator_forward.1} parent=11 // pred_region
        _
      $region44: #{vaegan_generator_forward.1} parent=11 // pred_fallthru
        _
    $region12: #{vaegan_generator_forward.1} parent=5 // pred_fallthru
      _
    %p329 = scmp.lt.s32.totalorder %s18, 2
    // Predicated region
    $region45: #{vaegan_generator_forward.1} parent=5 // pred_check
      %p330 = pneg %p329
    $region46: #{vaegan_generator_forward.1} parent=5 // pred_check_branch
      %332 = sbr.rel (%p330) target = $region48
    $region47: #{vaegan_generator_forward.1} parent=5 // pred_region
      // Predicated region
      $region49: #{vaegan_generator_forward.1} parent=47 // pred_check
        %p333 = pneg %p38
      $region50: #{vaegan_generator_forward.1} parent=47 // pred_check_branch
        %335 = sbr.rel (%p333) target = $region52
      $region51: #{vaegan_generator_forward.1} parent=47 // pred_region
        %p336 = scmp.lt.s32.totalorder %s18, 1
        %s337 = scalar_select %p336, %s18, 1
        %s338 = smul.addr %s337, 32
        %s339 = smul.addr %s338, 8
        %s340 = scalar_lea.vmem %s0, %s339
      $region52: #{vaegan_generator_forward.1} parent=47 // pred_fallthru
        _
      // Predicated region
      $region53: #{vaegan_generator_forward.1} parent=47 // pred_check
        %p341 = pneg %p64
      $region54: #{vaegan_generator_forward.1} parent=47 // pred_check_branch
        %343 = sbr.rel (%p341) target = $region56
      $region55: #{vaegan_generator_forward.1} parent=47 // pred_region
        %p344 = scmp.lt.s32.totalorder %s18, 1
        %s345 = scalar_select %p344, %s18, 1
        %s346 = smul.addr %s345, 32
        %s347 = smul.addr %s346, 8
        %s348 = scalar_lea.vmem %s1, %s347
      $region56: #{vaegan_generator_forward.1} parent=47 // pred_fallthru
        _
    $region48: #{vaegan_generator_forward.1} parent=5 // pred_fallthru
      _
    %p349 = scmp.le.s32.totalorder 1, %s18
    %p350 = scmp.lt.s32.totalorder %s18, 3
    %p351 = pnand %p349, %p350
    %p352 = pneg %p351
    // Predicated region
    $region57: #{vaegan_generator_forward.1} parent=5 // pred_check
      _
    $region58: #{vaegan_generator_forward.1} parent=5 // pred_check_branch
      %354 = sbr.rel (%p351) target = $region60
    $region59: #{vaegan_generator_forward.1} parent=5 // pred_region
      %s355 = ssub.s32 %s18, 1
      %p356 = scmp.lt.s32.totalorder %s23, 1
      %s357 = scalar_select %p356, %s23, 1
      %s358 = smul.addr %s357, 32
      %s359 = smul.addr %s358, 8
      %s360 = scalar_lea.vmem %s0, %s359
      %p361 = pneg %p44
      %p362 = pneg %p41
      %p363 = scmp.lt.s32.totalorder %s23, 1
      %s364 = scalar_select %p363, %s23, 1
      %s365 = smul.addr %s364, 32
      %s366 = smul.addr %s365, 8
      %s367 = scalar_lea.vmem %s1, %s366
      %p368 = pneg %p70
      %p369 = pneg %p67
      %p370 = pneg %p91
      %p371 = pneg %p88
      %p372 = pneg %p112
      %p373 = pneg %p109
      %p374 = pneg %p133
      %p375 = pneg %p130
      %p376 = pneg %p154
      %p377 = pneg %p151
      %p378 = pneg %p175
      %p379 = pneg %p172
      %p380 = pneg %p196
      %p381 = pneg %p193
      %p382 = pneg %p217
      %p383 = pneg %p214
      %p384 = pneg %p238
      %p385 = pneg %p235
      %p386 = pneg %p264
      %p387 = pneg %p261
      %p388 = scmp.lt.s32.totalorder %s23, 1
      %s389 = scalar_select %p388, %s23, 1
      %s390 = smul.addr %s389, 2
      %s391 = smul.addr %s390, 4
      %s392 = scalar_lea.vmem %s10, %s391
      %p393 = pneg %p290
      %p394 = pneg %p287
      %p395 = scmp.lt.s32.totalorder %s23, 1
      %s396 = scalar_select %p395, %s23, 1
      %s397 = scalar_lea.vmem %s11, %s396
      %p398 = scmp.lt.s32.totalorder %s23, 1
      %s399 = scalar_select %p398, %s23, 1
      %s400 = smul.addr %s399, 32
      %s401 = smul.addr %s400, 8
      %s402 = scalar_lea.vmem %s0, %s401
      %p403 = scmp.lt.s32.totalorder %s23, 1
      %s404 = scalar_select %p403, %s23, 1
      %s405 = smul.addr %s404, 32
      %s406 = smul.addr %s405, 8
      %s407 = scalar_lea.vmem %s1, %s406
      %p408 = scmp.lt.s32.totalorder %s23, 1
      %s409 = scalar_select %p408, %s23, 1
      %s410 = smul.addr %s409, 2
      %s411 = smul.addr %s410, 4
      %s412 = scalar_lea.vmem %s10, %s411
      %p413 = scmp.lt.s32.totalorder %s23, 1
      %s414 = scalar_select %p413, %s23, 1
      %s415 = scalar_lea.vmem %s11, %s414
      %v416 = vld [vmem:[%s402] sm:$0xff]
      %v417 = vld [vmem:[%s402 + $0x8] sm:$0xff]
      %v418 = vld [vmem:[%s402 + $0x10] sm:$0xff]
      %v419 = vld [vmem:[%s402 + $0x18] sm:$0xff]
      %v420 = vld [vmem:[%s402 + $0x20] sm:$0xff]
      %v421 = vld [vmem:[%s402 + $0x28] sm:$0xff]
      %v422 = vld [vmem:[%s402 + $0x30] sm:$0xff]
      %v423 = vld [vmem:[%s402 + $0x38] sm:$0xff]
      %v424 = vld [vmem:[%s402 + $0x40] sm:$0xff]
      %v425 = vld [vmem:[%s402 + $0x48] sm:$0xff]
      %v426 = vld [vmem:[%s402 + $0x50] sm:$0xff]
      %v427 = vld [vmem:[%s402 + $0x58] sm:$0xff]
      %v428 = vld [vmem:[%s402 + $0x60] sm:$0xff]
      %v429 = vld [vmem:[%s402 + $0x68] sm:$0xff]
      %v430 = vld [vmem:[%s402 + $0x70] sm:$0xff]
      %v431 = vld [vmem:[%s402 + $0x78] sm:$0xff]
      %v432 = vld [vmem:[%s402 + $0x80] sm:$0xff]
      %v433 = vld [vmem:[%s402 + $0x88] sm:$0xff]
      %v434 = vld [vmem:[%s402 + $0x90] sm:$0xff]
      %v435 = vld [vmem:[%s402 + $0x98] sm:$0xff]
      %v436 = vld [vmem:[%s402 + $0xa0] sm:$0xff]
      %v437 = vld [vmem:[%s402 + $0xa8] sm:$0xff]
      %v438 = vld [vmem:[%s402 + $0xb0] sm:$0xff]
      %v439 = vld [vmem:[%s402 + $0xb8] sm:$0xff]
      %v440 = vld [vmem:[%s402 + $0xc0] sm:$0xff]
      %v441 = vld [vmem:[%s402 + $0xc8] sm:$0xff]
      %v442 = vld [vmem:[%s402 + $0xd0] sm:$0xff]
      %v443 = vld [vmem:[%s402 + $0xd8] sm:$0xff]
      %v444 = vld [vmem:[%s402 + $0xe0] sm:$0xff]
      %v445 = vld [vmem:[%s402 + $0xe8] sm:$0xff]
      %v446 = vld [vmem:[%s402 + $0xf0] sm:$0xff]
      %v447 = vld [vmem:[%s402 + $0xf8] sm:$0xff]
      %vm481 = vcmask 1040384
      %v482 = vrot.slane 0.0, 7
      %v483 = vsel %vm481, %v482, %v482
      %v484 = vrot.slane %v416, 7
      %v485 = vrot.slane %v417, 7
      %v486 = vsel %vm481, %v484, %v485
      %v487 = vrot.slane %v418, 7
      %v488 = vrot.slane %v419, 7
      %v489 = vsel %vm481, %v487, %v488
      %v490 = vrot.slane %v420, 7
      %v491 = vrot.slane %v421, 7
      %v492 = vsel %vm481, %v490, %v491
      %v493 = vrot.slane %v422, 7
      %v494 = vrot.slane %v423, 7
      %v495 = vsel %vm481, %v493, %v494
      %v496 = vrot.slane %v424, 7
      %v497 = vrot.slane %v425, 7
      %v498 = vsel %vm481, %v496, %v497
      %v499 = vrot.slane %v426, 7
      %v500 = vrot.slane %v427, 7
      %v501 = vsel %vm481, %v499, %v500
      %v502 = vrot.slane %v428, 7
      %v503 = vrot.slane %v429, 7
      %v504 = vsel %vm481, %v502, %v503
      %v505 = vrot.slane %v430, 7
      %v506 = vrot.slane %v431, 7
      %v507 = vsel %vm481, %v505, %v506
      %v508 = vrot.slane %v432, 7
      %v509 = vrot.slane %v433, 7
      %v510 = vsel %vm481, %v508, %v509
      %v511 = vrot.slane %v434, 7
      %v512 = vrot.slane %v435, 7
      %v513 = vsel %vm481, %v511, %v512
      %v514 = vrot.slane %v436, 7
      %v515 = vrot.slane %v437, 7
      %v516 = vsel %vm481, %v514, %v515
      %v517 = vrot.slane %v438, 7
      %v518 = vrot.slane %v439, 7
      %v519 = vsel %vm481, %v517, %v518
      %v520 = vrot.slane %v440, 7
      %v521 = vrot.slane %v441, 7
      %v522 = vsel %vm481, %v520, %v521
      %v523 = vrot.slane %v442, 7
      %v524 = vrot.slane %v443, 7
      %v525 = vsel %vm481, %v523, %v524
      %v526 = vrot.slane %v444, 7
      %v527 = vrot.slane %v445, 7
      %v528 = vsel %vm481, %v526, %v527
      %v529 = vrot.slane %v446, 7
      %v530 = vrot.slane %v447, 7
      %v531 = vsel %vm481, %v529, %v530
      %v581 = vsel %vm481, 0.0, %v482
      %v582 = vsel %vm481, 0.0, %v484
      %v583 = vsel %vm481, 0.0, %v487
      %v584 = vsel %vm481, 0.0, %v490
      %v585 = vsel %vm481, 0.0, %v493
      %v586 = vsel %vm481, 0.0, %v496
      %v587 = vsel %vm481, 0.0, %v499
      %v588 = vsel %vm481, 0.0, %v502
      %v589 = vsel %vm481, 0.0, %v505
      %v590 = vsel %vm481, 0.0, %v508
      %v591 = vsel %vm481, 0.0, %v511
      %v592 = vsel %vm481, 0.0, %v514
      %v593 = vsel %vm481, 0.0, %v517
      %v594 = vsel %vm481, 0.0, %v520
      %v595 = vsel %vm481, 0.0, %v523
      %v596 = vsel %vm481, 0.0, %v526
      %v597 = vsel %vm481, 0.0, %v529
      %v598 = vsel %vm481, %v482, 0.0
      %v599 = vsel %vm481, %v485, 0.0
      %v600 = vsel %vm481, %v488, 0.0
      %v601 = vsel %vm481, %v491, 0.0
      %v602 = vsel %vm481, %v494, 0.0
      %v603 = vsel %vm481, %v497, 0.0
      %v604 = vsel %vm481, %v500, 0.0
      %v605 = vsel %vm481, %v503, 0.0
      %v606 = vsel %vm481, %v506, 0.0
      %v607 = vsel %vm481, %v509, 0.0
      %v608 = vsel %vm481, %v512, 0.0
      %v609 = vsel %vm481, %v515, 0.0
      %v610 = vsel %vm481, %v518, 0.0
      %v611 = vsel %vm481, %v521, 0.0
      %v612 = vsel %vm481, %v524, 0.0
      %v613 = vsel %vm481, %v527, 0.0
      %v614 = vsel %vm481, %v530, 0.0
      %vm647 = vcmask 1046528
      %v648 = vrot.slane %v581, 1
      %v649 = vrot.slane %v483, 1
      %v650 = vsel %vm647, %v648, %v649
      %v651 = vrot.slane %v598, 1
      %v652 = vsel %vm647, %v649, %v651
      %v653 = vrot.slane %v582, 1
      %v654 = vrot.slane %v486, 1
      %v655 = vsel %vm647, %v653, %v654
      %v656 = vrot.slane %v599, 1
      %v657 = vsel %vm647, %v654, %v656
      %v658 = vrot.slane %v583, 1
      %v659 = vrot.slane %v489, 1
      %v660 = vsel %vm647, %v658, %v659
      %v661 = vrot.slane %v600, 1
      %v662 = vsel %vm647, %v659, %v661
      %v663 = vrot.slane %v584, 1
      %v664 = vrot.slane %v492, 1
      %v665 = vsel %vm647, %v663, %v664
      %v666 = vrot.slane %v601, 1
      %v667 = vsel %vm647, %v664, %v666
      %v668 = vrot.slane %v585, 1
      %v669 = vrot.slane %v495, 1
      %v670 = vsel %vm647, %v668, %v669
      %v671 = vrot.slane %v602, 1
      %v672 = vsel %vm647, %v669, %v671
      %v673 = vrot.slane %v586, 1
      %v674 = vrot.slane %v498, 1
      %v675 = vsel %vm647, %v673, %v674
      %v676 = vrot.slane %v603, 1
      %v677 = vsel %vm647, %v674, %v676
      %v678 = vrot.slane %v587, 1
      %v679 = vrot.slane %v501, 1
      %v680 = vsel %vm647, %v678, %v679
      %v681 = vrot.slane %v604, 1
      %v682 = vsel %vm647, %v679, %v681
      %v683 = vrot.slane %v588, 1
      %v684 = vrot.slane %v504, 1
      %v685 = vsel %vm647, %v683, %v684
      %v686 = vrot.slane %v605, 1
      %v687 = vsel %vm647, %v684, %v686
      %v688 = vrot.slane %v589, 1
      %v689 = vrot.slane %v507, 1
      %v690 = vsel %vm647, %v688, %v689
      %v691 = vrot.slane %v606, 1
      %v692 = vsel %vm647, %v689, %v691
      %v693 = vrot.slane %v590, 1
      %v694 = vrot.slane %v510, 1
      %v695 = vsel %vm647, %v693, %v694
      %v696 = vrot.slane %v607, 1
      %v697 = vsel %vm647, %v694, %v696
      %v698 = vrot.slane %v591, 1
      %v699 = vrot.slane %v513, 1
      %v700 = vsel %vm647, %v698, %v699
      %v701 = vrot.slane %v608, 1
      %v702 = vsel %vm647, %v699, %v701
      %v703 = vrot.slane %v592, 1
      %v704 = vrot.slane %v516, 1
      %v705 = vsel %vm647, %v703, %v704
      %v706 = vrot.slane %v609, 1
      %v707 = vsel %vm647, %v704, %v706
      %v708 = vrot.slane %v593, 1
      %v709 = vrot.slane %v519, 1
      %v710 = vsel %vm647, %v708, %v709
      %v711 = vrot.slane %v610, 1
      %v712 = vsel %vm647, %v709, %v711
      %v713 = vrot.slane %v594, 1
      %v714 = vrot.slane %v522, 1
      %v715 = vsel %vm647, %v713, %v714
      %v716 = vrot.slane %v611, 1
      %v717 = vsel %vm647, %v714, %v716
      %v718 = vrot.slane %v595, 1
      %v719 = vrot.slane %v525, 1
      %v720 = vsel %vm647, %v718, %v719
      %v721 = vrot.slane %v612, 1
      %v722 = vsel %vm647, %v719, %v721
      %v723 = vrot.slane %v596, 1
      %v724 = vrot.slane %v528, 1
      %v725 = vsel %vm647, %v723, %v724
      %v726 = vrot.slane %v613, 1
      %v727 = vsel %vm647, %v724, %v726
      %vm728 = vcmask 1045504
      %v729 = vrot.slane %v581, 2
      %v730 = vrot.slane %v483, 2
      %v731 = vsel %vm728, %v729, %v730
      %v732 = vrot.slane %v598, 2
      %v733 = vsel %vm728, %v730, %v732
      %v734 = vrot.slane %v582, 2
      %v735 = vrot.slane %v486, 2
      %v736 = vsel %vm728, %v734, %v735
      %v737 = vrot.slane %v599, 2
      %v738 = vsel %vm728, %v735, %v737
      %v739 = vrot.slane %v583, 2
      %v740 = vrot.slane %v489, 2
      %v741 = vsel %vm728, %v739, %v740
      %v742 = vrot.slane %v600, 2
      %v743 = vsel %vm728, %v740, %v742
      %v744 = vrot.slane %v584, 2
      %v745 = vrot.slane %v492, 2
      %v746 = vsel %vm728, %v744, %v745
      %v747 = vrot.slane %v601, 2
      %v748 = vsel %vm728, %v745, %v747
      %v749 = vrot.slane %v585, 2
      %v750 = vrot.slane %v495, 2
      %v751 = vsel %vm728, %v749, %v750
      %v752 = vrot.slane %v602, 2
      %v753 = vsel %vm728, %v750, %v752
      %v754 = vrot.slane %v586, 2
      %v755 = vrot.slane %v498, 2
      %v756 = vsel %vm728, %v754, %v755
      %v757 = vrot.slane %v603, 2
      %v758 = vsel %vm728, %v755, %v757
      %v759 = vrot.slane %v587, 2
      %v760 = vrot.slane %v501, 2
      %v761 = vsel %vm728, %v759, %v760
      %v762 = vrot.slane %v604, 2
      %v763 = vsel %vm728, %v760, %v762
      %v764 = vrot.slane %v588, 2
      %v765 = vrot.slane %v504, 2
      %v766 = vsel %vm728, %v764, %v765
      %v767 = vrot.slane %v605, 2
      %v768 = vsel %vm728, %v765, %v767
      %v769 = vrot.slane %v589, 2
      %v770 = vrot.slane %v507, 2
      %v771 = vsel %vm728, %v769, %v770
      %v772 = vrot.slane %v606, 2
      %v773 = vsel %vm728, %v770, %v772
      %v774 = vrot.slane %v590, 2
      %v775 = vrot.slane %v510, 2
      %v776 = vsel %vm728, %v774, %v775
      %v777 = vrot.slane %v607, 2
      %v778 = vsel %vm728, %v775, %v777
      %v779 = vrot.slane %v591, 2
      %v780 = vrot.slane %v513, 2
      %v781 = vsel %vm728, %v779, %v780
      %v782 = vrot.slane %v608, 2
      %v783 = vsel %vm728, %v780, %v782
      %v784 = vrot.slane %v592, 2
      %v785 = vrot.slane %v516, 2
      %v786 = vsel %vm728, %v784, %v785
      %v787 = vrot.slane %v609, 2
      %v788 = vsel %vm728, %v785, %v787
      %v789 = vrot.slane %v593, 2
      %v790 = vrot.slane %v519, 2
      %v791 = vsel %vm728, %v789, %v790
      %v792 = vrot.slane %v610, 2
      %v793 = vsel %vm728, %v790, %v792
      %v794 = vrot.slane %v594, 2
      %v795 = vrot.slane %v522, 2
      %v796 = vsel %vm728, %v794, %v795
      %v797 = vrot.slane %v611, 2
      %v798 = vsel %vm728, %v795, %v797
      %v799 = vrot.slane %v595, 2
      %v800 = vrot.slane %v525, 2
      %v801 = vsel %vm728, %v799, %v800
      %v802 = vrot.slane %v612, 2
      %v803 = vsel %vm728, %v800, %v802
      %v804 = vrot.slane %v596, 2
      %v805 = vrot.slane %v528, 2
      %v806 = vsel %vm728, %v804, %v805
      %v807 = vrot.slane %v613, 2
      %v808 = vsel %vm728, %v805, %v807
      %v811 = vrot.slane %v597, 1
      %v812 = vrot.slane %v531, 1
      %v813 = vsel %vm647, %v811, %v812
      %v814 = vrot.slane %v614, 1
      %v815 = vsel %vm647, %v812, %v814
      %v816 = vrot.slane %v597, 2
      %v817 = vrot.slane %v531, 2
      %v818 = vsel %vm728, %v816, %v817
      %v819 = vrot.slane %v614, 2
      %v820 = vsel %vm728, %v817, %v819
      %821 = vrot.lane.b32.xlu0 %v650, 4
      %v822 = vpop.permute.xlu0 %821
      %823 = vrot.lane.b32.xlu0 %v652, 4
      %v824 = vpop.permute.xlu0 %823
      %825 = vrot.lane.b32.xlu0 %v655, 4
      %v826 = vpop.permute.xlu0 %825
      %827 = vrot.lane.b32.xlu0 %v657, 4
      %v828 = vpop.permute.xlu0 %827
      %829 = vrot.lane.b32.xlu0 %v660, 4
      %v830 = vpop.permute.xlu0 %829
      %831 = vrot.lane.b32.xlu0 %v662, 4
      %v832 = vpop.permute.xlu0 %831
      %833 = vrot.lane.b32.xlu0 %v665, 4
      %v834 = vpop.permute.xlu0 %833
      %835 = vrot.lane.b32.xlu0 %v667, 4
      %v836 = vpop.permute.xlu0 %835
      %837 = vrot.lane.b32.xlu0 %v670, 4
      %v838 = vpop.permute.xlu0 %837
      %839 = vrot.lane.b32.xlu0 %v672, 4
      %v840 = vpop.permute.xlu0 %839
      %841 = vrot.lane.b32.xlu0 %v675, 4
      %v842 = vpop.permute.xlu0 %841
      %843 = vrot.lane.b32.xlu0 %v677, 4
      %v844 = vpop.permute.xlu0 %843
      %845 = vrot.lane.b32.xlu0 %v680, 4
      %v846 = vpop.permute.xlu0 %845
      %847 = vrot.lane.b32.xlu0 %v682, 4
      %v848 = vpop.permute.xlu0 %847
      %849 = vrot.lane.b32.xlu0 %v685, 4
      %v850 = vpop.permute.xlu0 %849
      %851 = vrot.lane.b32.xlu0 %v687, 4
      %v852 = vpop.permute.xlu0 %851
      %853 = vrot.lane.b32.xlu0 %v690, 4
      %v854 = vpop.permute.xlu0 %853
      %855 = vrot.lane.b32.xlu0 %v692, 4
      %v856 = vpop.permute.xlu0 %855
      %857 = vrot.lane.b32.xlu0 %v695, 4
      %v858 = vpop.permute.xlu0 %857
      %859 = vrot.lane.b32.xlu0 %v697, 4
      %v860 = vpop.permute.xlu0 %859
      %861 = vrot.lane.b32.xlu0 %v700, 4
      %v862 = vpop.permute.xlu0 %861
      %863 = vrot.lane.b32.xlu0 %v702, 4
      %v864 = vpop.permute.xlu0 %863
      %865 = vrot.lane.b32.xlu0 %v705, 4
      %v866 = vpop.permute.xlu0 %865
      %867 = vrot.lane.b32.xlu0 %v707, 4
      %v868 = vpop.permute.xlu0 %867
      %869 = vrot.lane.b32.xlu0 %v710, 4
      %v870 = vpop.permute.xlu0 %869
      %871 = vrot.lane.b32.xlu0 %v712, 4
      %v872 = vpop.permute.xlu0 %871
      %873 = vrot.lane.b32.xlu0 %v715, 4
      %v874 = vpop.permute.xlu0 %873
      %875 = vrot.lane.b32.xlu0 %v717, 4
      %v876 = vpop.permute.xlu0 %875
      %877 = vrot.lane.b32.xlu0 %v720, 4
      %v878 = vpop.permute.xlu0 %877
      %879 = vrot.lane.b32.xlu0 %v722, 4
      %v880 = vpop.permute.xlu0 %879
      %881 = vrot.lane.b32.xlu0 %v725, 4
      %v882 = vpop.permute.xlu0 %881
      %883 = vrot.lane.b32.xlu0 %v727, 4
      %v884 = vpop.permute.xlu0 %883
      %917 = vrot.lane.b32.xlu0 %v731, 8
      %v918 = vpop.permute.xlu0 %917
      %919 = vrot.lane.b32.xlu0 %v733, 8
      %v920 = vpop.permute.xlu0 %919
      %921 = vrot.lane.b32.xlu0 %v736, 8
      %v922 = vpop.permute.xlu0 %921
      %923 = vrot.lane.b32.xlu0 %v738, 8
      %v924 = vpop.permute.xlu0 %923
      %925 = vrot.lane.b32.xlu0 %v741, 8
      %v926 = vpop.permute.xlu0 %925
      %927 = vrot.lane.b32.xlu0 %v743, 8
      %v928 = vpop.permute.xlu0 %927
      %929 = vrot.lane.b32.xlu0 %v746, 8
      %v930 = vpop.permute.xlu0 %929
      %931 = vrot.lane.b32.xlu0 %v748, 8
      %v932 = vpop.permute.xlu0 %931
      %933 = vrot.lane.b32.xlu0 %v751, 8
      %v934 = vpop.permute.xlu0 %933
      %935 = vrot.lane.b32.xlu0 %v753, 8
      %v936 = vpop.permute.xlu0 %935
      %937 = vrot.lane.b32.xlu0 %v756, 8
      %v938 = vpop.permute.xlu0 %937
      %939 = vrot.lane.b32.xlu0 %v758, 8
      %v940 = vpop.permute.xlu0 %939
      %941 = vrot.lane.b32.xlu0 %v761, 8
      %v942 = vpop.permute.xlu0 %941
      %943 = vrot.lane.b32.xlu0 %v763, 8
      %v944 = vpop.permute.xlu0 %943
      %945 = vrot.lane.b32.xlu0 %v766, 8
      %v946 = vpop.permute.xlu0 %945
      %947 = vrot.lane.b32.xlu0 %v768, 8
      %v948 = vpop.permute.xlu0 %947
      %949 = vrot.lane.b32.xlu0 %v771, 8
      %v950 = vpop.permute.xlu0 %949
      %951 = vrot.lane.b32.xlu0 %v773, 8
      %v952 = vpop.permute.xlu0 %951
      %953 = vrot.lane.b32.xlu0 %v776, 8
      %v954 = vpop.permute.xlu0 %953
      %955 = vrot.lane.b32.xlu0 %v778, 8
      %v956 = vpop.permute.xlu0 %955
      %957 = vrot.lane.b32.xlu0 %v781, 8
      %v958 = vpop.permute.xlu0 %957
      %959 = vrot.lane.b32.xlu0 %v783, 8
      %v960 = vpop.permute.xlu0 %959
      %961 = vrot.lane.b32.xlu0 %v786, 8
      %v962 = vpop.permute.xlu0 %961
      %963 = vrot.lane.b32.xlu0 %v788, 8
      %v964 = vpop.permute.xlu0 %963
      %965 = vrot.lane.b32.xlu0 %v791, 8
      %v966 = vpop.permute.xlu0 %965
      %967 = vrot.lane.b32.xlu0 %v793, 8
      %v968 = vpop.permute.xlu0 %967
      %969 = vrot.lane.b32.xlu0 %v796, 8
      %v970 = vpop.permute.xlu0 %969
      %971 = vrot.lane.b32.xlu0 %v798, 8
      %v972 = vpop.permute.xlu0 %971
      %973 = vrot.lane.b32.xlu0 %v801, 8
      %v974 = vpop.permute.xlu0 %973
      %975 = vrot.lane.b32.xlu0 %v803, 8
      %v976 = vpop.permute.xlu0 %975
      %977 = vrot.lane.b32.xlu0 %v806, 8
      %v978 = vpop.permute.xlu0 %977
      %979 = vrot.lane.b32.xlu0 %v808, 8
      %v980 = vpop.permute.xlu0 %979
      %1013 = vrot.lane.b32.xlu0 %v582, 12
      %v1014 = vpop.permute.xlu0 %1013
      %1015 = vrot.lane.b32.xlu0 %v486, 12
      %v1016 = vpop.permute.xlu0 %1015
      %1017 = vrot.lane.b32.xlu0 %v583, 12
      %v1018 = vpop.permute.xlu0 %1017
      %1019 = vrot.lane.b32.xlu0 %v489, 12
      %v1020 = vpop.permute.xlu0 %1019
      %1021 = vrot.lane.b32.xlu0 %v584, 12
      %v1022 = vpop.permute.xlu0 %1021
      %1023 = vrot.lane.b32.xlu0 %v492, 12
      %v1024 = vpop.permute.xlu0 %1023
      %1025 = vrot.lane.b32.xlu0 %v585, 12
      %v1026 = vpop.permute.xlu0 %1025
      %1027 = vrot.lane.b32.xlu0 %v495, 12
      %v1028 = vpop.permute.xlu0 %1027
      %1029 = vrot.lane.b32.xlu0 %v586, 12
      %v1030 = vpop.permute.xlu0 %1029
      %1031 = vrot.lane.b32.xlu0 %v498, 12
      %v1032 = vpop.permute.xlu0 %1031
      %1033 = vrot.lane.b32.xlu0 %v587, 12
      %v1034 = vpop.permute.xlu0 %1033
      %1035 = vrot.lane.b32.xlu0 %v501, 12
      %v1036 = vpop.permute.xlu0 %1035
      %1037 = vrot.lane.b32.xlu0 %v588, 12
      %v1038 = vpop.permute.xlu0 %1037
      %1039 = vrot.lane.b32.xlu0 %v504, 12
      %v1040 = vpop.permute.xlu0 %1039
      %1041 = vrot.lane.b32.xlu0 %v589, 12
      %v1042 = vpop.permute.xlu0 %1041
      %1043 = vrot.lane.b32.xlu0 %v507, 12
      %v1044 = vpop.permute.xlu0 %1043
      %1045 = vrot.lane.b32.xlu0 %v590, 12
      %v1046 = vpop.permute.xlu0 %1045
      %1047 = vrot.lane.b32.xlu0 %v510, 12
      %v1048 = vpop.permute.xlu0 %1047
      %1049 = vrot.lane.b32.xlu0 %v591, 12
      %v1050 = vpop.permute.xlu0 %1049
      %1051 = vrot.lane.b32.xlu0 %v513, 12
      %v1052 = vpop.permute.xlu0 %1051
      %1053 = vrot.lane.b32.xlu0 %v592, 12
      %v1054 = vpop.permute.xlu0 %1053
      %1055 = vrot.lane.b32.xlu0 %v516, 12
      %v1056 = vpop.permute.xlu0 %1055
      %1057 = vrot.lane.b32.xlu0 %v593, 12
      %v1058 = vpop.permute.xlu0 %1057
      %1059 = vrot.lane.b32.xlu0 %v519, 12
      %v1060 = vpop.permute.xlu0 %1059
      %1061 = vrot.lane.b32.xlu0 %v594, 12
      %v1062 = vpop.permute.xlu0 %1061
      %1063 = vrot.lane.b32.xlu0 %v522, 12
      %v1064 = vpop.permute.xlu0 %1063
      %1065 = vrot.lane.b32.xlu0 %v595, 12
      %v1066 = vpop.permute.xlu0 %1065
      %1067 = vrot.lane.b32.xlu0 %v525, 12
      %v1068 = vpop.permute.xlu0 %1067
      %1069 = vrot.lane.b32.xlu0 %v596, 12
      %v1070 = vpop.permute.xlu0 %1069
      %1071 = vrot.lane.b32.xlu0 %v528, 12
      %v1072 = vpop.permute.xlu0 %1071
      %1073 = vrot.lane.b32.xlu0 %v597, 12
      %v1074 = vpop.permute.xlu0 %1073
      %1075 = vrot.lane.b32.xlu0 %v531, 12
      %v1076 = vpop.permute.xlu0 %1075
      %1109 = vrot.lane.b32.xlu0 %v655, 16
      %v1110 = vpop.permute.xlu0 %1109
      %1111 = vrot.lane.b32.xlu0 %v657, 16
      %v1112 = vpop.permute.xlu0 %1111
      %1113 = vrot.lane.b32.xlu0 %v660, 16
      %v1114 = vpop.permute.xlu0 %1113
      %1115 = vrot.lane.b32.xlu0 %v662, 16
      %v1116 = vpop.permute.xlu0 %1115
      %1117 = vrot.lane.b32.xlu0 %v665, 16
      %v1118 = vpop.permute.xlu0 %1117
      %1119 = vrot.lane.b32.xlu0 %v667, 16
      %v1120 = vpop.permute.xlu0 %1119
      %1121 = vrot.lane.b32.xlu0 %v670, 16
      %v1122 = vpop.permute.xlu0 %1121
      %1123 = vrot.lane.b32.xlu0 %v672, 16
      %v1124 = vpop.permute.xlu0 %1123
      %1125 = vrot.lane.b32.xlu0 %v675, 16
      %v1126 = vpop.permute.xlu0 %1125
      %1127 = vrot.lane.b32.xlu0 %v677, 16
      %v1128 = vpop.permute.xlu0 %1127
      %1129 = vrot.lane.b32.xlu0 %v680, 16
      %v1130 = vpop.permute.xlu0 %1129
      %1131 = vrot.lane.b32.xlu0 %v682, 16
      %v1132 = vpop.permute.xlu0 %1131
      %1133 = vrot.lane.b32.xlu0 %v685, 16
      %v1134 = vpop.permute.xlu0 %1133
      %1135 = vrot.lane.b32.xlu0 %v687, 16
      %v1136 = vpop.permute.xlu0 %1135
      %1137 = vrot.lane.b32.xlu0 %v690, 16
      %v1138 = vpop.permute.xlu0 %1137
      %1139 = vrot.lane.b32.xlu0 %v692, 16
      %v1140 = vpop.permute.xlu0 %1139
      %1141 = vrot.lane.b32.xlu0 %v695, 16
      %v1142 = vpop.permute.xlu0 %1141
      %1143 = vrot.lane.b32.xlu0 %v697, 16
      %v1144 = vpop.permute.xlu0 %1143
      %1145 = vrot.lane.b32.xlu0 %v700, 16
      %v1146 = vpop.permute.xlu0 %1145
      %1147 = vrot.lane.b32.xlu0 %v702, 16
      %v1148 = vpop.permute.xlu0 %1147
      %1149 = vrot.lane.b32.xlu0 %v705, 16
      %v1150 = vpop.permute.xlu0 %1149
      %1151 = vrot.lane.b32.xlu0 %v707, 16
      %v1152 = vpop.permute.xlu0 %1151
      %1153 = vrot.lane.b32.xlu0 %v710, 16
      %v1154 = vpop.permute.xlu0 %1153
      %1155 = vrot.lane.b32.xlu0 %v712, 16
      %v1156 = vpop.permute.xlu0 %1155
      %1157 = vrot.lane.b32.xlu0 %v715, 16
      %v1158 = vpop.permute.xlu0 %1157
      %1159 = vrot.lane.b32.xlu0 %v717, 16
      %v1160 = vpop.permute.xlu0 %1159
      %1161 = vrot.lane.b32.xlu0 %v720, 16
      %v1162 = vpop.permute.xlu0 %1161
      %1163 = vrot.lane.b32.xlu0 %v722, 16
      %v1164 = vpop.permute.xlu0 %1163
      %1165 = vrot.lane.b32.xlu0 %v725, 16
      %v1166 = vpop.permute.xlu0 %1165
      %1167 = vrot.lane.b32.xlu0 %v727, 16
      %v1168 = vpop.permute.xlu0 %1167
      %1169 = vrot.lane.b32.xlu0 %v813, 16
      %v1170 = vpop.permute.xlu0 %1169
      %1171 = vrot.lane.b32.xlu0 %v815, 16
      %v1172 = vpop.permute.xlu0 %1171
      %1205 = vrot.lane.b32.xlu0 %v736, 20
      %v1206 = vpop.permute.xlu0 %1205
      %1207 = vrot.lane.b32.xlu0 %v738, 20
      %v1208 = vpop.permute.xlu0 %1207
      %1209 = vrot.lane.b32.xlu0 %v741, 20
      %v1210 = vpop.permute.xlu0 %1209
      %1211 = vrot.lane.b32.xlu0 %v743, 20
      %v1212 = vpop.permute.xlu0 %1211
      %1213 = vrot.lane.b32.xlu0 %v746, 20
      %v1214 = vpop.permute.xlu0 %1213
      %1215 = vrot.lane.b32.xlu0 %v748, 20
      %v1216 = vpop.permute.xlu0 %1215
      %1217 = vrot.lane.b32.xlu0 %v751, 20
      %v1218 = vpop.permute.xlu0 %1217
      %1219 = vrot.lane.b32.xlu0 %v753, 20
      %v1220 = vpop.permute.xlu0 %1219
      %1221 = vrot.lane.b32.xlu0 %v756, 20
      %v1222 = vpop.permute.xlu0 %1221
      %1223 = vrot.lane.b32.xlu0 %v758, 20
      %v1224 = vpop.permute.xlu0 %1223
      %1225 = vrot.lane.b32.xlu0 %v761, 20
      %v1226 = vpop.permute.xlu0 %1225
      %1227 = vrot.lane.b32.xlu0 %v763, 20
      %v1228 = vpop.permute.xlu0 %1227
      %1229 = vrot.lane.b32.xlu0 %v766, 20
      %v1230 = vpop.permute.xlu0 %1229
      %1231 = vrot.lane.b32.xlu0 %v768, 20
      %v1232 = vpop.permute.xlu0 %1231
      %1233 = vrot.lane.b32.xlu0 %v771, 20
      %v1234 = vpop.permute.xlu0 %1233
      %1235 = vrot.lane.b32.xlu0 %v773, 20
      %v1236 = vpop.permute.xlu0 %1235
      %1237 = vrot.lane.b32.xlu0 %v776, 20
      %v1238 = vpop.permute.xlu0 %1237
      %1239 = vrot.lane.b32.xlu0 %v778, 20
      %v1240 = vpop.permute.xlu0 %1239
      %1241 = vrot.lane.b32.xlu0 %v781, 20
      %v1242 = vpop.permute.xlu0 %1241
      %1243 = vrot.lane.b32.xlu0 %v783, 20
      %v1244 = vpop.permute.xlu0 %1243
      %1245 = vrot.lane.b32.xlu0 %v786, 20
      %v1246 = vpop.permute.xlu0 %1245
      %1247 = vrot.lane.b32.xlu0 %v788, 20
      %v1248 = vpop.permute.xlu0 %1247
      %1249 = vrot.lane.b32.xlu0 %v791, 20
      %v1250 = vpop.permute.xlu0 %1249
      %1251 = vrot.lane.b32.xlu0 %v793, 20
      %v1252 = vpop.permute.xlu0 %1251
      %1253 = vrot.lane.b32.xlu0 %v796, 20
      %v1254 = vpop.permute.xlu0 %1253
      %1255 = vrot.lane.b32.xlu0 %v798, 20
      %v1256 = vpop.permute.xlu0 %1255
      %1257 = vrot.lane.b32.xlu0 %v801, 20
      %v1258 = vpop.permute.xlu0 %1257
      %1259 = vrot.lane.b32.xlu0 %v803, 20
      %v1260 = vpop.permute.xlu0 %1259
      %1261 = vrot.lane.b32.xlu0 %v806, 20
      %v1262 = vpop.permute.xlu0 %1261
      %1263 = vrot.lane.b32.xlu0 %v808, 20
      %v1264 = vpop.permute.xlu0 %1263
      %1265 = vrot.lane.b32.xlu0 %v818, 20
      %v1266 = vpop.permute.xlu0 %1265
      %1267 = vrot.lane.b32.xlu0 %v820, 20
      %v1268 = vpop.permute.xlu0 %1267
      %1301 = vrot.lane.b32.xlu0 %v583, 24
      %v1302 = vpop.permute.xlu0 %1301
      %1303 = vrot.lane.b32.xlu0 %v489, 24
      %v1304 = vpop.permute.xlu0 %1303
      %1305 = vrot.lane.b32.xlu0 %v584, 24
      %v1306 = vpop.permute.xlu0 %1305
      %1307 = vrot.lane.b32.xlu0 %v492, 24
      %v1308 = vpop.permute.xlu0 %1307
      %1309 = vrot.lane.b32.xlu0 %v585, 24
      %v1310 = vpop.permute.xlu0 %1309
      %1311 = vrot.lane.b32.xlu0 %v495, 24
      %v1312 = vpop.permute.xlu0 %1311
      %1313 = vrot.lane.b32.xlu0 %v586, 24
      %v1314 = vpop.permute.xlu0 %1313
      %1315 = vrot.lane.b32.xlu0 %v498, 24
      %v1316 = vpop.permute.xlu0 %1315
      %1317 = vrot.lane.b32.xlu0 %v587, 24
      %v1318 = vpop.permute.xlu0 %1317
      %1319 = vrot.lane.b32.xlu0 %v501, 24
      %v1320 = vpop.permute.xlu0 %1319
      %1321 = vrot.lane.b32.xlu0 %v588, 24
      %v1322 = vpop.permute.xlu0 %1321
      %1323 = vrot.lane.b32.xlu0 %v504, 24
      %v1324 = vpop.permute.xlu0 %1323
      %1325 = vrot.lane.b32.xlu0 %v589, 24
      %v1326 = vpop.permute.xlu0 %1325
      %1327 = vrot.lane.b32.xlu0 %v507, 24
      %v1328 = vpop.permute.xlu0 %1327
      %1329 = vrot.lane.b32.xlu0 %v590, 24
      %v1330 = vpop.permute.xlu0 %1329
      %1331 = vrot.lane.b32.xlu0 %v510, 24
      %v1332 = vpop.permute.xlu0 %1331
      %1333 = vrot.lane.b32.xlu0 %v591, 24
      %v1334 = vpop.permute.xlu0 %1333
      %1335 = vrot.lane.b32.xlu0 %v513, 24
      %v1336 = vpop.permute.xlu0 %1335
      %1337 = vrot.lane.b32.xlu0 %v592, 24
      %v1338 = vpop.permute.xlu0 %1337
      %1339 = vrot.lane.b32.xlu0 %v516, 24
      %v1340 = vpop.permute.xlu0 %1339
      %1341 = vrot.lane.b32.xlu0 %v593, 24
      %v1342 = vpop.permute.xlu0 %1341
      %1343 = vrot.lane.b32.xlu0 %v519, 24
      %v1344 = vpop.permute.xlu0 %1343
      %1345 = vrot.lane.b32.xlu0 %v594, 24
      %v1346 = vpop.permute.xlu0 %1345
      %1347 = vrot.lane.b32.xlu0 %v522, 24
      %v1348 = vpop.permute.xlu0 %1347
      %1349 = vrot.lane.b32.xlu0 %v595, 24
      %v1350 = vpop.permute.xlu0 %1349
      %1351 = vrot.lane.b32.xlu0 %v525, 24
      %v1352 = vpop.permute.xlu0 %1351
      %1353 = vrot.lane.b32.xlu0 %v596, 24
      %v1354 = vpop.permute.xlu0 %1353
      %1355 = vrot.lane.b32.xlu0 %v528, 24
      %v1356 = vpop.permute.xlu0 %1355
      %1357 = vrot.lane.b32.xlu0 %v597, 24
      %v1358 = vpop.permute.xlu0 %1357
      %1359 = vrot.lane.b32.xlu0 %v531, 24
      %v1360 = vpop.permute.xlu0 %1359
      %1361 = vrot.lane.b32.xlu0 %v581, 24
      %v1362 = vpop.permute.xlu0 %1361
      %1363 = vrot.lane.b32.xlu0 %v483, 24
      %v1364 = vpop.permute.xlu0 %1363
      %1397 = vrot.lane.b32.xlu0 %v660, 28
      %v1398 = vpop.permute.xlu0 %1397
      %1399 = vrot.lane.b32.xlu0 %v662, 28
      %v1400 = vpop.permute.xlu0 %1399
      %1401 = vrot.lane.b32.xlu0 %v665, 28
      %v1402 = vpop.permute.xlu0 %1401
      %1403 = vrot.lane.b32.xlu0 %v667, 28
      %v1404 = vpop.permute.xlu0 %1403
      %1405 = vrot.lane.b32.xlu0 %v670, 28
      %v1406 = vpop.permute.xlu0 %1405
      %1407 = vrot.lane.b32.xlu0 %v672, 28
      %v1408 = vpop.permute.xlu0 %1407
      %1409 = vrot.lane.b32.xlu0 %v675, 28
      %v1410 = vpop.permute.xlu0 %1409
      %1411 = vrot.lane.b32.xlu0 %v677, 28
      %v1412 = vpop.permute.xlu0 %1411
      %1413 = vrot.lane.b32.xlu0 %v680, 28
      %v1414 = vpop.permute.xlu0 %1413
      %1415 = vrot.lane.b32.xlu0 %v682, 28
      %v1416 = vpop.permute.xlu0 %1415
      %1417 = vrot.lane.b32.xlu0 %v685, 28
      %v1418 = vpop.permute.xlu0 %1417
      %1419 = vrot.lane.b32.xlu0 %v687, 28
      %v1420 = vpop.permute.xlu0 %1419
      %1421 = vrot.lane.b32.xlu0 %v690, 28
      %v1422 = vpop.permute.xlu0 %1421
      %1423 = vrot.lane.b32.xlu0 %v692, 28
      %v1424 = vpop.permute.xlu0 %1423
      %1425 = vrot.lane.b32.xlu0 %v695, 28
      %v1426 = vpop.permute.xlu0 %1425
      %1427 = vrot.lane.b32.xlu0 %v697, 28
      %v1428 = vpop.permute.xlu0 %1427
      %1429 = vrot.lane.b32.xlu0 %v700, 28
      %v1430 = vpop.permute.xlu0 %1429
      %1431 = vrot.lane.b32.xlu0 %v702, 28
      %v1432 = vpop.permute.xlu0 %1431
      %1433 = vrot.lane.b32.xlu0 %v705, 28
      %v1434 = vpop.permute.xlu0 %1433
      %1435 = vrot.lane.b32.xlu0 %v707, 28
      %v1436 = vpop.permute.xlu0 %1435
      %1437 = vrot.lane.b32.xlu0 %v710, 28
      %v1438 = vpop.permute.xlu0 %1437
      %1439 = vrot.lane.b32.xlu0 %v712, 28
      %v1440 = vpop.permute.xlu0 %1439
      %1441 = vrot.lane.b32.xlu0 %v715, 28
      %v1442 = vpop.permute.xlu0 %1441
      %1443 = vrot.lane.b32.xlu0 %v717, 28
      %v1444 = vpop.permute.xlu0 %1443
      %1445 = vrot.lane.b32.xlu0 %v720, 28
      %v1446 = vpop.permute.xlu0 %1445
      %1447 = vrot.lane.b32.xlu0 %v722, 28
      %v1448 = vpop.permute.xlu0 %1447
      %1449 = vrot.lane.b32.xlu0 %v725, 28
      %v1450 = vpop.permute.xlu0 %1449
      %1451 = vrot.lane.b32.xlu0 %v727, 28
      %v1452 = vpop.permute.xlu0 %1451
      %1453 = vrot.lane.b32.xlu0 %v813, 28
      %v1454 = vpop.permute.xlu0 %1453
      %1455 = vrot.lane.b32.xlu0 %v815, 28
      %v1456 = vpop.permute.xlu0 %1455
      %1457 = vrot.lane.b32.xlu0 %v650, 28
      %v1458 = vpop.permute.xlu0 %1457
      %1459 = vrot.lane.b32.xlu0 %v652, 28
      %v1460 = vpop.permute.xlu0 %1459
      %1493 = vrot.lane.b32.xlu0 %v741, 32
      %v1494 = vpop.permute.xlu0 %1493
      %1495 = vrot.lane.b32.xlu0 %v743, 32
      %v1496 = vpop.permute.xlu0 %1495
      %1497 = vrot.lane.b32.xlu0 %v746, 32
      %v1498 = vpop.permute.xlu0 %1497
      %1499 = vrot.lane.b32.xlu0 %v748, 32
      %v1500 = vpop.permute.xlu0 %1499
      %1501 = vrot.lane.b32.xlu0 %v751, 32
      %v1502 = vpop.permute.xlu0 %1501
      %1503 = vrot.lane.b32.xlu0 %v753, 32
      %v1504 = vpop.permute.xlu0 %1503
      %1505 = vrot.lane.b32.xlu0 %v756, 32
      %v1506 = vpop.permute.xlu0 %1505
      %1507 = vrot.lane.b32.xlu0 %v758, 32
      %v1508 = vpop.permute.xlu0 %1507
      %1509 = vrot.lane.b32.xlu0 %v761, 32
      %v1510 = vpop.permute.xlu0 %1509
      %1511 = vrot.lane.b32.xlu0 %v763, 32
      %v1512 = vpop.permute.xlu0 %1511
      %1513 = vrot.lane.b32.xlu0 %v766, 32
      %v1514 = vpop.permute.xlu0 %1513
      %1515 = vrot.lane.b32.xlu0 %v768, 32
      %v1516 = vpop.permute.xlu0 %1515
      %1517 = vrot.lane.b32.xlu0 %v771, 32
      %v1518 = vpop.permute.xlu0 %1517
      %1519 = vrot.lane.b32.xlu0 %v773, 32
      %v1520 = vpop.permute.xlu0 %1519
      %1521 = vrot.lane.b32.xlu0 %v776, 32
      %v1522 = vpop.permute.xlu0 %1521
      %1523 = vrot.lane.b32.xlu0 %v778, 32
      %v1524 = vpop.permute.xlu0 %1523
      %1525 = vrot.lane.b32.xlu0 %v781, 32
      %v1526 = vpop.permute.xlu0 %1525
      %1527 = vrot.lane.b32.xlu0 %v783, 32
      %v1528 = vpop.permute.xlu0 %1527
      %1529 = vrot.lane.b32.xlu0 %v786, 32
      %v1530 = vpop.permute.xlu0 %1529
      %1531 = vrot.lane.b32.xlu0 %v788, 32
      %v1532 = vpop.permute.xlu0 %1531
      %1533 = vrot.lane.b32.xlu0 %v791, 32
      %v1534 = vpop.permute.xlu0 %1533
      %1535 = vrot.lane.b32.xlu0 %v793, 32
      %v1536 = vpop.permute.xlu0 %1535
      %1537 = vrot.lane.b32.xlu0 %v796, 32
      %v1538 = vpop.permute.xlu0 %1537
      %1539 = vrot.lane.b32.xlu0 %v798, 32
      %v1540 = vpop.permute.xlu0 %1539
      %1541 = vrot.lane.b32.xlu0 %v801, 32
      %v1542 = vpop.permute.xlu0 %1541
      %1543 = vrot.lane.b32.xlu0 %v803, 32
      %v1544 = vpop.permute.xlu0 %1543
      %1545 = vrot.lane.b32.xlu0 %v806, 32
      %v1546 = vpop.permute.xlu0 %1545
      %1547 = vrot.lane.b32.xlu0 %v808, 32
      %v1548 = vpop.permute.xlu0 %1547
      %1549 = vrot.lane.b32.xlu0 %v818, 32
      %v1550 = vpop.permute.xlu0 %1549
      %1551 = vrot.lane.b32.xlu0 %v820, 32
      %v1552 = vpop.permute.xlu0 %1551
      %1553 = vrot.lane.b32.xlu0 %v731, 32
      %v1554 = vpop.permute.xlu0 %1553
      %1555 = vrot.lane.b32.xlu0 %v733, 32
      %v1556 = vpop.permute.xlu0 %1555
      %vm1589 = vcmask 31744
      %v1590 = vsel %vm1589, %v581, %v822
      %v1591 = vsel %vm1589, %v483, %v824
      %v1592 = vsel %vm1589, %v582, %v826
      %v1593 = vsel %vm1589, %v486, %v828
      %v1594 = vsel %vm1589, %v583, %v830
      %v1595 = vsel %vm1589, %v489, %v832
      %v1596 = vsel %vm1589, %v584, %v834
      %v1597 = vsel %vm1589, %v492, %v836
      %v1598 = vsel %vm1589, %v585, %v838
      %v1599 = vsel %vm1589, %v495, %v840
      %v1600 = vsel %vm1589, %v586, %v842
      %v1601 = vsel %vm1589, %v498, %v844
      %v1602 = vsel %vm1589, %v587, %v846
      %v1603 = vsel %vm1589, %v501, %v848
      %v1604 = vsel %vm1589, %v588, %v850
      %v1605 = vsel %vm1589, %v504, %v852
      %v1606 = vsel %vm1589, %v589, %v854
      %v1607 = vsel %vm1589, %v507, %v856
      %v1608 = vsel %vm1589, %v590, %v858
      %v1609 = vsel %vm1589, %v510, %v860
      %v1610 = vsel %vm1589, %v591, %v862
      %v1611 = vsel %vm1589, %v513, %v864
      %v1612 = vsel %vm1589, %v592, %v866
      %v1613 = vsel %vm1589, %v516, %v868
      %v1614 = vsel %vm1589, %v593, %v870
      %v1615 = vsel %vm1589, %v519, %v872
      %v1616 = vsel %vm1589, %v594, %v874
      %v1617 = vsel %vm1589, %v522, %v876
      %v1618 = vsel %vm1589, %v595, %v878
      %v1619 = vsel %vm1589, %v525, %v880
      %v1620 = vsel %vm1589, %v596, %v882
      %v1621 = vsel %vm1589, %v528, %v884
      %vm1622 = vcmask 64512
      %v1623 = vsel %vm1622, %v1590, %v918
      %v1624 = vsel %vm1622, %v1591, %v920
      %v1625 = vsel %vm1622, %v1592, %v922
      %v1626 = vsel %vm1622, %v1593, %v924
      %v1627 = vsel %vm1622, %v1594, %v926
      %v1628 = vsel %vm1622, %v1595, %v928
      %v1629 = vsel %vm1622, %v1596, %v930
      %v1630 = vsel %vm1622, %v1597, %v932
      %v1631 = vsel %vm1622, %v1598, %v934
      %v1632 = vsel %vm1622, %v1599, %v936
      %v1633 = vsel %vm1622, %v1600, %v938
      %v1634 = vsel %vm1622, %v1601, %v940
      %v1635 = vsel %vm1622, %v1602, %v942
      %v1636 = vsel %vm1622, %v1603, %v944
      %v1637 = vsel %vm1622, %v1604, %v946
      %v1638 = vsel %vm1622, %v1605, %v948
      %v1639 = vsel %vm1622, %v1606, %v950
      %v1640 = vsel %vm1622, %v1607, %v952
      %v1641 = vsel %vm1622, %v1608, %v954
      %v1642 = vsel %vm1622, %v1609, %v956
      %v1643 = vsel %vm1622, %v1610, %v958
      %v1644 = vsel %vm1622, %v1611, %v960
      %v1645 = vsel %vm1622, %v1612, %v962
      %v1646 = vsel %vm1622, %v1613, %v964
      %v1647 = vsel %vm1622, %v1614, %v966
      %v1648 = vsel %vm1622, %v1615, %v968
      %v1649 = vsel %vm1622, %v1616, %v970
      %v1650 = vsel %vm1622, %v1617, %v972
      %v1651 = vsel %vm1622, %v1618, %v974
      %v1652 = vsel %vm1622, %v1619, %v976
      %v1653 = vsel %vm1622, %v1620, %v978
      %v1654 = vsel %vm1622, %v1621, %v980
      %vm1655 = vcmask 97280
      %v1656 = vsel %vm1655, %v1623, %v1014
      %v1657 = vsel %vm1655, %v1624, %v1016
      %v1658 = vsel %vm1655, %v1625, %v1018
      %v1659 = vsel %vm1655, %v1626, %v1020
      %v1660 = vsel %vm1655, %v1627, %v1022
      %v1661 = vsel %vm1655, %v1628, %v1024
      %v1662 = vsel %vm1655, %v1629, %v1026
      %v1663 = vsel %vm1655, %v1630, %v1028
      %v1664 = vsel %vm1655, %v1631, %v1030
      %v1665 = vsel %vm1655, %v1632, %v1032
      %v1666 = vsel %vm1655, %v1633, %v1034
      %v1667 = vsel %vm1655, %v1634, %v1036
      %v1668 = vsel %vm1655, %v1635, %v1038
      %v1669 = vsel %vm1655, %v1636, %v1040
      %v1670 = vsel %vm1655, %v1637, %v1042
      %v1671 = vsel %vm1655, %v1638, %v1044
      %v1672 = vsel %vm1655, %v1639, %v1046
      %v1673 = vsel %vm1655, %v1640, %v1048
      %v1674 = vsel %vm1655, %v1641, %v1050
      %v1675 = vsel %vm1655, %v1642, %v1052
      %v1676 = vsel %vm1655, %v1643, %v1054
      %v1677 = vsel %vm1655, %v1644, %v1056
      %v1678 = vsel %vm1655, %v1645, %v1058
      %v1679 = vsel %vm1655, %v1646, %v1060
      %v1680 = vsel %vm1655, %v1647, %v1062
      %v1681 = vsel %vm1655, %v1648, %v1064
      %v1682 = vsel %vm1655, %v1649, %v1066
      %v1683 = vsel %vm1655, %v1650, %v1068
      %v1684 = vsel %vm1655, %v1651, %v1070
      %v1685 = vsel %vm1655, %v1652, %v1072
      %v1686 = vsel %vm1655, %v1653, %v1074
      %v1687 = vsel %vm1655, %v1654, %v1076
      %vm1688 = vcmask 130048
      %v1689 = vsel %vm1688, %v1656, %v1110
      %v1690 = vsel %vm1688, %v1657, %v1112
      %v1691 = vsel %vm1688, %v1658, %v1114
      %v1692 = vsel %vm1688, %v1659, %v1116
      %v1693 = vsel %vm1688, %v1660, %v1118
      %v1694 = vsel %vm1688, %v1661, %v1120
      %v1695 = vsel %vm1688, %v1662, %v1122
      %v1696 = vsel %vm1688, %v1663, %v1124
      %v1697 = vsel %vm1688, %v1664, %v1126
      %v1698 = vsel %vm1688, %v1665, %v1128
      %v1699 = vsel %vm1688, %v1666, %v1130
      %v1700 = vsel %vm1688, %v1667, %v1132
      %v1701 = vsel %vm1688, %v1668, %v1134
      %v1702 = vsel %vm1688, %v1669, %v1136
      %v1703 = vsel %vm1688, %v1670, %v1138
      %v1704 = vsel %vm1688, %v1671, %v1140
      %v1705 = vsel %vm1688, %v1672, %v1142
      %v1706 = vsel %vm1688, %v1673, %v1144
      %v1707 = vsel %vm1688, %v1674, %v1146
      %v1708 = vsel %vm1688, %v1675, %v1148
      %v1709 = vsel %vm1688, %v1676, %v1150
      %v1710 = vsel %vm1688, %v1677, %v1152
      %v1711 = vsel %vm1688, %v1678, %v1154
      %v1712 = vsel %vm1688, %v1679, %v1156
      %v1713 = vsel %vm1688, %v1680, %v1158
      %v1714 = vsel %vm1688, %v1681, %v1160
      %v1715 = vsel %vm1688, %v1682, %v1162
      %v1716 = vsel %vm1688, %v1683, %v1164
      %v1717 = vsel %vm1688, %v1684, %v1166
      %v1718 = vsel %vm1688, %v1685, %v1168
      %v1719 = vsel %vm1688, %v1686, %v1170
      %v1720 = vsel %vm1688, %v1687, %v1172
      %vm1721 = vcmask 162816
      %v1722 = vsel %vm1721, %v1689, %v1206
      %v1723 = vsel %vm1721, %v1690, %v1208
      %v1724 = vsel %vm1721, %v1691, %v1210
      %v1725 = vsel %vm1721, %v1692, %v1212
      %v1726 = vsel %vm1721, %v1693, %v1214
      %v1727 = vsel %vm1721, %v1694, %v1216
      %v1728 = vsel %vm1721, %v1695, %v1218
      %v1729 = vsel %vm1721, %v1696, %v1220
      %v1730 = vsel %vm1721, %v1697, %v1222
      %v1731 = vsel %vm1721, %v1698, %v1224
      %v1732 = vsel %vm1721, %v1699, %v1226
      %v1733 = vsel %vm1721, %v1700, %v1228
      %v1734 = vsel %vm1721, %v1701, %v1230
      %v1735 = vsel %vm1721, %v1702, %v1232
      %v1736 = vsel %vm1721, %v1703, %v1234
      %v1737 = vsel %vm1721, %v1704, %v1236
      %v1738 = vsel %vm1721, %v1705, %v1238
      %v1739 = vsel %vm1721, %v1706, %v1240
      %v1740 = vsel %vm1721, %v1707, %v1242
      %v1741 = vsel %vm1721, %v1708, %v1244
      %v1742 = vsel %vm1721, %v1709, %v1246
      %v1743 = vsel %vm1721, %v1710, %v1248
      %v1744 = vsel %vm1721, %v1711, %v1250
      %v1745 = vsel %vm1721, %v1712, %v1252
      %v1746 = vsel %vm1721, %v1713, %v1254
      %v1747 = vsel %vm1721, %v1714, %v1256
      %v1748 = vsel %vm1721, %v1715, %v1258
      %v1749 = vsel %vm1721, %v1716, %v1260
      %v1750 = vsel %vm1721, %v1717, %v1262
      %v1751 = vsel %vm1721, %v1718, %v1264
      %v1752 = vsel %vm1721, %v1719, %v1266
      %v1753 = vsel %vm1721, %v1720, %v1268
      %vm1754 = vcmask 195584
      %v1755 = vsel %vm1754, %v1722, %v1302
      %v1756 = vsel %vm1754, %v1723, %v1304
      %v1757 = vsel %vm1754, %v1724, %v1306
      %v1758 = vsel %vm1754, %v1725, %v1308
      %v1759 = vsel %vm1754, %v1726, %v1310
      %v1760 = vsel %vm1754, %v1727, %v1312
      %v1761 = vsel %vm1754, %v1728, %v1314
      %v1762 = vsel %vm1754, %v1729, %v1316
      %v1763 = vsel %vm1754, %v1730, %v1318
      %v1764 = vsel %vm1754, %v1731, %v1320
      %v1765 = vsel %vm1754, %v1732, %v1322
      %v1766 = vsel %vm1754, %v1733, %v1324
      %v1767 = vsel %vm1754, %v1734, %v1326
      %v1768 = vsel %vm1754, %v1735, %v1328
      %v1769 = vsel %vm1754, %v1736, %v1330
      %v1770 = vsel %vm1754, %v1737, %v1332
      %v1771 = vsel %vm1754, %v1738, %v1334
      %v1772 = vsel %vm1754, %v1739, %v1336
      %v1773 = vsel %vm1754, %v1740, %v1338
      %v1774 = vsel %vm1754, %v1741, %v1340
      %v1775 = vsel %vm1754, %v1742, %v1342
      %v1776 = vsel %vm1754, %v1743, %v1344
      %v1777 = vsel %vm1754, %v1744, %v1346
      %v1778 = vsel %vm1754, %v1745, %v1348
      %v1779 = vsel %vm1754, %v1746, %v1350
      %v1780 = vsel %vm1754, %v1747, %v1352
      %v1781 = vsel %vm1754, %v1748, %v1354
      %v1782 = vsel %vm1754, %v1749, %v1356
      %v1783 = vsel %vm1754, %v1750, %v1358
      %v1784 = vsel %vm1754, %v1751, %v1360
      %v1785 = vsel %vm1754, %v1752, %v1362
      %v1786 = vsel %vm1754, %v1753, %v1364
      %vm1787 = vcmask 228352
      %v1788 = vsel %vm1787, %v1755, %v1398
      %v1789 = vsel %vm1787, %v1756, %v1400
      %v1790 = vsel %vm1787, %v1757, %v1402
      %v1791 = vsel %vm1787, %v1758, %v1404
      %v1792 = vsel %vm1787, %v1759, %v1406
      %v1793 = vsel %vm1787, %v1760, %v1408
      %v1794 = vsel %vm1787, %v1761, %v1410
      %v1795 = vsel %vm1787, %v1762, %v1412
      %v1796 = vsel %vm1787, %v1763, %v1414
      %v1797 = vsel %vm1787, %v1764, %v1416
      %v1798 = vsel %vm1787, %v1765, %v1418
      %v1799 = vsel %vm1787, %v1766, %v1420
      %v1800 = vsel %vm1787, %v1767, %v1422
      %v1801 = vsel %vm1787, %v1768, %v1424
      %v1802 = vsel %vm1787, %v1769, %v1426
      %v1803 = vsel %vm1787, %v1770, %v1428
      %v1804 = vsel %vm1787, %v1771, %v1430
      %v1805 = vsel %vm1787, %v1772, %v1432
      %v1806 = vsel %vm1787, %v1773, %v1434
      %v1807 = vsel %vm1787, %v1774, %v1436
      %v1808 = vsel %vm1787, %v1775, %v1438
      %v1809 = vsel %vm1787, %v1776, %v1440
      %v1810 = vsel %vm1787, %v1777, %v1442
      %v1811 = vsel %vm1787, %v1778, %v1444
      %v1812 = vsel %vm1787, %v1779, %v1446
      %v1813 = vsel %vm1787, %v1780, %v1448
      %v1814 = vsel %vm1787, %v1781, %v1450
      %v1815 = vsel %vm1787, %v1782, %v1452
      %v1816 = vsel %vm1787, %v1783, %v1454
      %v1817 = vsel %vm1787, %v1784, %v1456
      %v1818 = vsel %vm1787, %v1785, %v1458
      %v1819 = vsel %vm1787, %v1786, %v1460
      %vm1820 = vcmask 261120
      %v1821 = vsel %vm1820, %v1788, %v1494
      %v1822 = vsel %vm1820, %v1789, %v1496
      %v1823 = vsel %vm1820, %v1790, %v1498
      %v1824 = vsel %vm1820, %v1791, %v1500
      %v1825 = vsel %vm1820, %v1792, %v1502
      %v1826 = vsel %vm1820, %v1793, %v1504
      %v1827 = vsel %vm1820, %v1794, %v1506
      %v1828 = vsel %vm1820, %v1795, %v1508
      %v1829 = vsel %vm1820, %v1796, %v1510
      %v1830 = vsel %vm1820, %v1797, %v1512
      %v1831 = vsel %vm1820, %v1798, %v1514
      %v1832 = vsel %vm1820, %v1799, %v1516
      %v1833 = vsel %vm1820, %v1800, %v1518
      %v1834 = vsel %vm1820, %v1801, %v1520
      %v1835 = vsel %vm1820, %v1802, %v1522
      %v1836 = vsel %vm1820, %v1803, %v1524
      %v1837 = vsel %vm1820, %v1804, %v1526
      %v1838 = vsel %vm1820, %v1805, %v1528
      %v1839 = vsel %vm1820, %v1806, %v1530
      %v1840 = vsel %vm1820, %v1807, %v1532
      %v1841 = vsel %vm1820, %v1808, %v1534
      %v1842 = vsel %vm1820, %v1809, %v1536
      %v1843 = vsel %vm1820, %v1810, %v1538
      %v1844 = vsel %vm1820, %v1811, %v1540
      %v1845 = vsel %vm1820, %v1812, %v1542
      %v1846 = vsel %vm1820, %v1813, %v1544
      %v1847 = vsel %vm1820, %v1814, %v1546
      %v1848 = vsel %vm1820, %v1815, %v1548
      %v1849 = vsel %vm1820, %v1816, %v1550
      %v1850 = vsel %vm1820, %v1817, %v1552
      %v1851 = vsel %vm1820, %v1818, %v1554
      %v1852 = vsel %vm1820, %v1819, %v1556
      %v1853 = vld [vmem:[%s2] sm:$0xff]
      %v1854 = vld [vmem:[%s2 + $0x8] sm:$0xff]
      %v1855 = vld [vmem:[%s2 + $0x10] sm:$0xff]
      %v1856 = vld [vmem:[%s2 + $0x18] sm:$0xff]
      %v1857 = vld [vmem:[%s2 + $0x20] sm:$0xf]
      %v1858 = vld [vmem:[%s3] sm:$0x1]
      %v1860 = vlaneseq
      %v1861 = vshrl.u32 %v1860, 7
      %v1862 = vsub.s32 0, %v1861
      %v1863 = vrot.slane %v1858, %v1862
      %vm1865 = vcmask 293888
      %v1867 = vsel %vm1865, %v1821, 0
      %v1870 = vsel %vm1865, %v1822, 0
      %v1873 = vsel %vm1865, %v1823, 0
      %v1876 = vsel %vm1865, %v1824, 0
      %v1879 = vsel %vm1865, %v1825, 0
      %v1882 = vsel %vm1865, %v1826, 0
      %v1885 = vsel %vm1865, %v1827, 0
      %v1888 = vsel %vm1865, %v1828, 0
      %v1891 = vsel %vm1865, %v1829, 0
      %v1894 = vsel %vm1865, %v1830, 0
      %v1897 = vsel %vm1865, %v1831, 0
      %v1900 = vsel %vm1865, %v1832, 0
      %v1903 = vsel %vm1865, %v1833, 0
      %v1906 = vsel %vm1865, %v1834, 0
      %v1909 = vsel %vm1865, %v1835, 0
      %v1912 = vsel %vm1865, %v1836, 0
      %v1915 = vsel %vm1865, %v1837, 0
      %v1918 = vsel %vm1865, %v1838, 0
      %v1921 = vsel %vm1865, %v1839, 0
      %v1924 = vsel %vm1865, %v1840, 0
      %v1927 = vsel %vm1865, %v1841, 0
      %v1930 = vsel %vm1865, %v1842, 0
      %v1933 = vsel %vm1865, %v1843, 0
      %v1936 = vsel %vm1865, %v1844, 0
      %v1939 = vsel %vm1865, %v1845, 0
      %v1942 = vsel %vm1865, %v1846, 0
      %v1945 = vsel %vm1865, %v1847, 0
      %v1948 = vsel %vm1865, %v1848, 0
      %v1951 = vsel %vm1865, %v1849, 0
      %v1954 = vsel %vm1865, %v1850, 0
      %v1957 = vsel %vm1865, %v1851, 0
      %v1960 = vsel %vm1865, %v1852, 0
      %vm1962 = vcmask 1043456
      %v1964 = vsel %vm1962, %v1857, 0
      %1966 = vmatprep.subr.mxu0 0.0
      %1967 = vmatpush1.msra.mxu0 0.0
      %1968 = vmatprep.subr.mxu0 0.0
      %1969 = vmatpush1.msra.mxu0 0.0
      %1970 = vmatprep.subr.mxu0 0.0
      %1971 = vmatpush1.msra.mxu0 0.0
      %1972 = vmatprep.subr.mxu0 0.0
      %1973 = vmatpush1.msra.mxu0 0.0
      %1974 = vmatprep.subr.mxu0 0.0
      %1975 = vmatpush1.msra.mxu0 0.0
      %1976 = vmatprep.subr.mxu0 0.0
      %1977 = vmatpush1.msra.mxu0 0.0
      %1978 = vmatprep.subr.mxu0 0.0
      %1979 = vmatpush1.msra.mxu0 0.0
      %1980 = vmatprep.subr.mxu0 0.0
      %1981 = vmatpush1.msra.mxu0 0.0
      %1982 = vmatprep.subr.mxu0 0.0
      %1983 = vmatpush1.msra.mxu0 0.0
      %1984 = vmatprep.subr.mxu0 0.0
      %1985 = vmatpush1.msra.mxu0 0.0
      %1986 = vmatprep.subr.mxu0 0.0
      %1987 = vmatpush1.msra.mxu0 0.0
      %1988 = vmatprep.subr.mxu0 0.0
      %1989 = vmatpush1.msra.mxu0 %v1964
      %1990 = vmatprep.subr.mxu0 0.0
      %1991 = vmatpush1.msra.mxu0 %v1856
      %1992 = vmatprep.subr.mxu0 0.0
      %1993 = vmatpush1.msra.mxu0 %v1855
      %1994 = vmatprep.subr.mxu0 0.0
      %1995 = vmatpush1.msra.mxu0 %v1854
      %1996 = vmatprep.subr.mxu0 0.0
      %1997 = vmatpush1.msra.mxu0 %v1853
      %1998 = vmatprep.subr.mxu0 0.0
      %1999 = vmatpush2.msra.mxu0 0.0
      %2000 = vmatprep.subr.mxu0 0.0
      %2001 = vmatpush2.msra.mxu0 0.0
      %2002 = vmatprep.subr.mxu0 0.0
      %2003 = vmatpush2.msra.mxu0 0.0
      %2004 = vmatprep.subr.mxu0 0.0
      %2005 = vmatpush2.msra.mxu0 0.0
      %2006 = vmatprep.subr.mxu0 0.0
      %2007 = vmatpush2.msra.mxu0 0.0
      %2008 = vmatprep.subr.mxu0 0.0
      %2009 = vmatpush2.msra.mxu0 0.0
      %2010 = vmatprep.subr.mxu0 0.0
      %2011 = vmatpush2.msra.mxu0 0.0
      %2012 = vmatprep.subr.mxu0 0.0
      %2013 = vmatpush2.msra.mxu0 0.0
      %2014 = vmatprep.subr.mxu0 0.0
      %2015 = vmatpush2.msra.mxu0 0.0
      %2016 = vmatprep.subr.mxu0 0.0
      %2017 = vmatpush2.msra.mxu0 0.0
      %2018 = vmatprep.subr.mxu0 0.0
      %2019 = vmatpush2.msra.mxu0 0.0
      %2020 = vmatprep.subr.mxu0 0.0
      %2021 = vmatpush2.msra.mxu0 0.0
      %2022 = vmatprep.subr.mxu0 0.0
      %2023 = vmatpush2.msra.mxu0 0.0
      %2024 = vmatprep.subr.mxu0 0.0
      %2025 = vmatpush2.msra.mxu0 0.0
      %2026 = vmatprep.subr.mxu0 0.0
      %2027 = vmatpush2.msra.mxu0 0.0
      %2028 = vmatprep.subr.mxu0 0.0
      %2029 = vmatpush2.msra.mxu0 0.0
      %2030 = vmatprep.mubr.f32.mxu0 0.0
      %2031 = vmatmul.mubr.f32.gmra.mxu0 %v1867
      %v2032 = vpop.f32.mrf.mxu0
      %v2033 = vadd.f32 %v1863, %v2032
      %v2034 = vpop.f32.mrf.mxu0
      %2035 = vmatprep.mubr.f32.mxu0 0.0
      %2036 = vmatmul.mubr.f32.gmra.mxu0 %v1870
      %v2037 = vpop.f32.mrf.mxu0
      %v2038 = vadd.f32 %v1863, %v2037
      %v2039 = vpop.f32.mrf.mxu0
      %2040 = vmatprep.mubr.f32.mxu0 0.0
      %2041 = vmatmul.mubr.f32.gmra.mxu0 %v1873
      %v2042 = vpop.f32.mrf.mxu0
      %v2043 = vadd.f32 %v1863, %v2042
      %v2044 = vpop.f32.mrf.mxu0
      %2045 = vmatprep.mubr.f32.mxu0 0.0
      %2046 = vmatmul.mubr.f32.gmra.mxu0 %v1876
      %v2047 = vpop.f32.mrf.mxu0
      %v2048 = vadd.f32 %v1863, %v2047
      %v2049 = vpop.f32.mrf.mxu0
      %2050 = vmatprep.mubr.f32.mxu0 0.0
      %2051 = vmatmul.mubr.f32.gmra.mxu0 %v1879
      %v2052 = vpop.f32.mrf.mxu0
      %v2053 = vadd.f32 %v1863, %v2052
      %v2054 = vpop.f32.mrf.mxu0
      %2055 = vmatprep.mubr.f32.mxu0 0.0
      %2056 = vmatmul.mubr.f32.gmra.mxu0 %v1882
      %v2057 = vpop.f32.mrf.mxu0
      %v2058 = vadd.f32 %v1863, %v2057
      %v2059 = vpop.f32.mrf.mxu0
      %2060 = vmatprep.mubr.f32.mxu0 0.0
      %2061 = vmatmul.mubr.f32.gmra.mxu0 %v1885
      %v2062 = vpop.f32.mrf.mxu0
      %v2063 = vadd.f32 %v1863, %v2062
      %v2064 = vpop.f32.mrf.mxu0
      %2065 = vmatprep.mubr.f32.mxu0 0.0
      %2066 = vmatmul.mubr.f32.gmra.mxu0 %v1888
      %v2067 = vpop.f32.mrf.mxu0
      %v2068 = vadd.f32 %v1863, %v2067
      %v2069 = vpop.f32.mrf.mxu0
      %2070 = vmatprep.mubr.f32.mxu0 0.0
      %2071 = vmatmul.mubr.f32.gmra.mxu0 %v1891
      %v2072 = vpop.f32.mrf.mxu0
      %v2073 = vadd.f32 %v1863, %v2072
      %v2074 = vpop.f32.mrf.mxu0
      %2075 = vmatprep.mubr.f32.mxu0 0.0
      %2076 = vmatmul.mubr.f32.gmra.mxu0 %v1894
      %v2077 = vpop.f32.mrf.mxu0
      %v2078 = vadd.f32 %v1863, %v2077
      %v2079 = vpop.f32.mrf.mxu0
      %2080 = vmatprep.mubr.f32.mxu0 0.0
      %2081 = vmatmul.mubr.f32.gmra.mxu0 %v1897
      %v2082 = vpop.f32.mrf.mxu0
      %v2083 = vadd.f32 %v1863, %v2082
      %v2084 = vpop.f32.mrf.mxu0
      %2085 = vmatprep.mubr.f32.mxu0 0.0
      %2086 = vmatmul.mubr.f32.gmra.mxu0 %v1900
      %v2087 = vpop.f32.mrf.mxu0
      %v2088 = vadd.f32 %v1863, %v2087
      %v2089 = vpop.f32.mrf.mxu0
      %2090 = vmatprep.mubr.f32.mxu0 0.0
      %2091 = vmatmul.mubr.f32.gmra.mxu0 %v1903
      %v2092 = vpop.f32.mrf.mxu0
      %v2093 = vadd.f32 %v1863, %v2092
      %v2094 = vpop.f32.mrf.mxu0
      %2095 = vmatprep.mubr.f32.mxu0 0.0
      %2096 = vmatmul.mubr.f32.gmra.mxu0 %v1906
      %v2097 = vpop.f32.mrf.mxu0
      %v2098 = vadd.f32 %v1863, %v2097
      %v2099 = vpop.f32.mrf.mxu0
      %2100 = vmatprep.mubr.f32.mxu0 0.0
      %2101 = vmatmul.mubr.f32.gmra.mxu0 %v1909
      %v2102 = vpop.f32.mrf.mxu0
      %v2103 = vadd.f32 %v1863, %v2102
      %v2104 = vpop.f32.mrf.mxu0
      %2105 = vmatprep.mubr.f32.mxu0 0.0
      %2106 = vmatmul.mubr.f32.gmra.mxu0 %v1912
      %v2107 = vpop.f32.mrf.mxu0
      %v2108 = vadd.f32 %v1863, %v2107
      %v2109 = vpop.f32.mrf.mxu0
      %2110 = vmatprep.mubr.f32.mxu0 0.0
      %2111 = vmatmul.mubr.f32.gmra.mxu0 %v1915
      %v2112 = vpop.f32.mrf.mxu0
      %v2113 = vadd.f32 %v1863, %v2112
      %v2114 = vpop.f32.mrf.mxu0
      %2115 = vmatprep.mubr.f32.mxu0 0.0
      %2116 = vmatmul.mubr.f32.gmra.mxu0 %v1918
      %v2117 = vpop.f32.mrf.mxu0
      %v2118 = vadd.f32 %v1863, %v2117
      %v2119 = vpop.f32.mrf.mxu0
      %2120 = vmatprep.mubr.f32.mxu0 0.0
      %2121 = vmatmul.mubr.f32.gmra.mxu0 %v1921
      %v2122 = vpop.f32.mrf.mxu0
      %v2123 = vadd.f32 %v1863, %v2122
      %v2124 = vpop.f32.mrf.mxu0
      %2125 = vmatprep.mubr.f32.mxu0 0.0
      %2126 = vmatmul.mubr.f32.gmra.mxu0 %v1924
      %v2127 = vpop.f32.mrf.mxu0
      %v2128 = vadd.f32 %v1863, %v2127
      %v2129 = vpop.f32.mrf.mxu0
      %2130 = vmatprep.mubr.f32.mxu0 0.0
      %2131 = vmatmul.mubr.f32.gmra.mxu0 %v1927
      %v2132 = vpop.f32.mrf.mxu0
      %v2133 = vadd.f32 %v1863, %v2132
      %v2134 = vpop.f32.mrf.mxu0
      %2135 = vmatprep.mubr.f32.mxu0 0.0
      %2136 = vmatmul.mubr.f32.gmra.mxu0 %v1930
      %v2137 = vpop.f32.mrf.mxu0
      %v2138 = vadd.f32 %v1863, %v2137
      %v2139 = vpop.f32.mrf.mxu0
      %2140 = vmatprep.mubr.f32.mxu0 0.0
      %2141 = vmatmul.mubr.f32.gmra.mxu0 %v1933
      %v2142 = vpop.f32.mrf.mxu0
      %v2143 = vadd.f32 %v1863, %v2142
      %v2144 = vpop.f32.mrf.mxu0
      %2145 = vmatprep.mubr.f32.mxu0 0.0
      %2146 = vmatmul.mubr.f32.gmra.mxu0 %v1936
      %v2147 = vpop.f32.mrf.mxu0
      %v2148 = vadd.f32 %v1863, %v2147
      %v2149 = vpop.f32.mrf.mxu0
      %2150 = vmatprep.mubr.f32.mxu0 0.0
      %2151 = vmatmul.mubr.f32.gmra.mxu0 %v1939
      %v2152 = vpop.f32.mrf.mxu0
      %v2153 = vadd.f32 %v1863, %v2152
      %v2154 = vpop.f32.mrf.mxu0
      %2155 = vmatprep.mubr.f32.mxu0 0.0
      %2156 = vmatmul.mubr.f32.gmra.mxu0 %v1942
      %v2157 = vpop.f32.mrf.mxu0
      %v2158 = vadd.f32 %v1863, %v2157
      %v2159 = vpop.f32.mrf.mxu0
      %2160 = vmatprep.mubr.f32.mxu0 0.0
      %2161 = vmatmul.mubr.f32.gmra.mxu0 %v1945
      %v2162 = vpop.f32.mrf.mxu0
      %v2163 = vadd.f32 %v1863, %v2162
      %v2164 = vpop.f32.mrf.mxu0
      %2165 = vmatprep.mubr.f32.mxu0 0.0
      %2166 = vmatmul.mubr.f32.gmra.mxu0 %v1948
      %v2167 = vpop.f32.mrf.mxu0
      %v2168 = vadd.f32 %v1863, %v2167
      %v2169 = vpop.f32.mrf.mxu0
      %2170 = vmatprep.mubr.f32.mxu0 0.0
      %2171 = vmatmul.mubr.f32.gmra.mxu0 %v1951
      %v2172 = vpop.f32.mrf.mxu0
      %v2173 = vadd.f32 %v1863, %v2172
      %v2174 = vpop.f32.mrf.mxu0
      %2175 = vmatprep.mubr.f32.mxu0 0.0
      %2176 = vmatmul.mubr.f32.gmra.mxu0 %v1954
      %v2177 = vpop.f32.mrf.mxu0
      %v2178 = vadd.f32 %v1863, %v2177
      %v2179 = vpop.f32.mrf.mxu0
      %2180 = vmatprep.mubr.f32.mxu0 0.0
      %2181 = vmatmul.mubr.f32.gmra.mxu0 %v1957
      %v2182 = vpop.f32.mrf.mxu0
      %v2183 = vadd.f32 %v1863, %v2182
      %v2184 = vpop.f32.mrf.mxu0
      %2185 = vmatprep.mubr.f32.mxu0 0.0
      %2186 = vmatmul.mubr.f32.gmra.mxu0 %v1960
      %v2187 = vpop.f32.mrf.mxu0
      %v2188 = vadd.f32 %v1863, %v2187
      %v2189 = vpop.f32.mrf.mxu0
      %2190 = vdwg.mxu0
      %v2191 = vmax.f32 %v2033, 0.0
      %v2192 = vmax.f32 %v2038, 0.0
      %v2193 = vmax.f32 %v2043, 0.0
      %v2194 = vmax.f32 %v2048, 0.0
      %v2195 = vmax.f32 %v2053, 0.0
      %v2196 = vmax.f32 %v2058, 0.0
      %v2197 = vmax.f32 %v2063, 0.0
      %v2198 = vmax.f32 %v2068, 0.0
      %v2199 = vmax.f32 %v2073, 0.0
      %v2200 = vmax.f32 %v2078, 0.0
      %v2201 = vmax.f32 %v2083, 0.0
      %v2202 = vmax.f32 %v2088, 0.0
      %v2203 = vmax.f32 %v2093, 0.0
      %v2204 = vmax.f32 %v2098, 0.0
      %v2205 = vmax.f32 %v2103, 0.0
      %v2206 = vmax.f32 %v2108, 0.0
      %v2207 = vmax.f32 %v2113, 0.0
      %v2208 = vmax.f32 %v2118, 0.0
      %v2209 = vmax.f32 %v2123, 0.0
      %v2210 = vmax.f32 %v2128, 0.0
      %v2211 = vmax.f32 %v2133, 0.0
      %v2212 = vmax.f32 %v2138, 0.0
      %v2213 = vmax.f32 %v2143, 0.0
      %v2214 = vmax.f32 %v2148, 0.0
      %v2215 = vmax.f32 %v2153, 0.0
      %v2216 = vmax.f32 %v2158, 0.0
      %v2217 = vmax.f32 %v2163, 0.0
      %v2218 = vmax.f32 %v2168, 0.0
      %v2219 = vmax.f32 %v2173, 0.0
      %v2220 = vmax.f32 %v2178, 0.0
      %v2221 = vmax.f32 %v2183, 0.0
      %v2222 = vmax.f32 %v2188, 0.0
      %v2223 = vld [vmem:[%s4] sm:$0xff]
      %v2224 = vld [vmem:[%s4 + $0x8] sm:$0xff]
      %v2225 = vld [vmem:[%s4 + $0x10] sm:$0xff]
      %v2226 = vld [vmem:[%s4 + $0x18] sm:$0xff]
      %v2227 = vld [vmem:[%s5] sm:$0x1]
      %v2229 = vlaneseq
      %v2230 = vshrl.u32 %v2229, 7
      %v2231 = vsub.s32 0, %v2230
      %v2232 = vrot.slane %v2227, %v2231
      %v2235 = vsel %vm1820, %v2191, 0
      %v2238 = vsel %vm1820, %v2192, 0
      %v2241 = vsel %vm1820, %v2193, 0
      %v2244 = vsel %vm1820, %v2194, 0
      %v2247 = vsel %vm1820, %v2195, 0
      %v2250 = vsel %vm1820, %v2196, 0
      %v2253 = vsel %vm1820, %v2197, 0
      %v2256 = vsel %vm1820, %v2198, 0
      %v2259 = vsel %vm1820, %v2199, 0
      %v2262 = vsel %vm1820, %v2200, 0
      %v2265 = vsel %vm1820, %v2201, 0
      %v2268 = vsel %vm1820, %v2202, 0
      %v2271 = vsel %vm1820, %v2203, 0
      %v2274 = vsel %vm1820, %v2204, 0
      %v2277 = vsel %vm1820, %v2205, 0
      %v2280 = vsel %vm1820, %v2206, 0
      %v2283 = vsel %vm1820, %v2207, 0
      %v2286 = vsel %vm1820, %v2208, 0
      %v2289 = vsel %vm1820, %v2209, 0
      %v2292 = vsel %vm1820, %v2210, 0
      %v2295 = vsel %vm1820, %v2211, 0
      %v2298 = vsel %vm1820, %v2212, 0
      %v2301 = vsel %vm1820, %v2213, 0
      %v2304 = vsel %vm1820, %v2214, 0
      %v2307 = vsel %vm1820, %v2215, 0
      %v2310 = vsel %vm1820, %v2216, 0
      %v2313 = vsel %vm1820, %v2217, 0
      %v2316 = vsel %vm1820, %v2218, 0
      %v2319 = vsel %vm1820, %v2219, 0
      %v2322 = vsel %vm1820, %v2220, 0
      %v2325 = vsel %vm1820, %v2221, 0
      %v2328 = vsel %vm1820, %v2222, 0
      %2330 = vmatprep.subr.mxu0 0.0
      %2331 = vmatpush1.msra.mxu0 0.0
      %2332 = vmatprep.subr.mxu0 0.0
      %2333 = vmatpush1.msra.mxu0 0.0
      %2334 = vmatprep.subr.mxu0 0.0
      %2335 = vmatpush1.msra.mxu0 0.0
      %2336 = vmatprep.subr.mxu0 0.0
      %2337 = vmatpush1.msra.mxu0 0.0
      %2338 = vmatprep.subr.mxu0 0.0
      %2339 = vmatpush1.msra.mxu0 0.0
      %2340 = vmatprep.subr.mxu0 0.0
      %2341 = vmatpush1.msra.mxu0 0.0
      %2342 = vmatprep.subr.mxu0 0.0
      %2343 = vmatpush1.msra.mxu0 0.0
      %2344 = vmatprep.subr.mxu0 0.0
      %2345 = vmatpush1.msra.mxu0 0.0
      %2346 = vmatprep.subr.mxu0 0.0
      %2347 = vmatpush1.msra.mxu0 0.0
      %2348 = vmatprep.subr.mxu0 0.0
      %2349 = vmatpush1.msra.mxu0 0.0
      %2350 = vmatprep.subr.mxu0 0.0
      %2351 = vmatpush1.msra.mxu0 0.0
      %2352 = vmatprep.subr.mxu0 0.0
      %2353 = vmatpush1.msra.mxu0 0.0
      %2354 = vmatprep.subr.mxu0 0.0
      %2355 = vmatpush1.msra.mxu0 %v2226
      %2356 = vmatprep.subr.mxu0 0.0
      %2357 = vmatpush1.msra.mxu0 %v2225
      %2358 = vmatprep.subr.mxu0 0.0
      %2359 = vmatpush1.msra.mxu0 %v2224
      %2360 = vmatprep.subr.mxu0 0.0
      %2361 = vmatpush1.msra.mxu0 %v2223
      %2362 = vmatprep.subr.mxu0 0.0
      %2363 = vmatpush2.msra.mxu0 0.0
      %2364 = vmatprep.subr.mxu0 0.0
      %2365 = vmatpush2.msra.mxu0 0.0
      %2366 = vmatprep.subr.mxu0 0.0
      %2367 = vmatpush2.msra.mxu0 0.0
      %2368 = vmatprep.subr.mxu0 0.0
      %2369 = vmatpush2.msra.mxu0 0.0
      %2370 = vmatprep.subr.mxu0 0.0
      %2371 = vmatpush2.msra.mxu0 0.0
      %2372 = vmatprep.subr.mxu0 0.0
      %2373 = vmatpush2.msra.mxu0 0.0
      %2374 = vmatprep.subr.mxu0 0.0
      %2375 = vmatpush2.msra.mxu0 0.0
      %2376 = vmatprep.subr.mxu0 0.0
      %2377 = vmatpush2.msra.mxu0 0.0
      %2378 = vmatprep.subr.mxu0 0.0
      %2379 = vmatpush2.msra.mxu0 0.0
      %2380 = vmatprep.subr.mxu0 0.0
      %2381 = vmatpush2.msra.mxu0 0.0
      %2382 = vmatprep.subr.mxu0 0.0
      %2383 = vmatpush2.msra.mxu0 0.0
      %2384 = vmatprep.subr.mxu0 0.0
      %2385 = vmatpush2.msra.mxu0 0.0
      %2386 = vmatprep.subr.mxu0 0.0
      %2387 = vmatpush2.msra.mxu0 0.0
      %2388 = vmatprep.subr.mxu0 0.0
      %2389 = vmatpush2.msra.mxu0 0.0
      %2390 = vmatprep.subr.mxu0 0.0
      %2391 = vmatpush2.msra.mxu0 0.0
      %2392 = vmatprep.subr.mxu0 0.0
      %2393 = vmatpush2.msra.mxu0 0.0
      %2394 = vmatprep.mubr.f32.mxu0 0.0
      %2395 = vmatmul.mubr.f32.gmra.mxu0 %v2235
      %v2396 = vpop.f32.mrf.mxu0
      %v2397 = vadd.f32 %v2232, %v2396
      %v2398 = vpop.f32.mrf.mxu0
      %2399 = vmatprep.mubr.f32.mxu0 0.0
      %2400 = vmatmul.mubr.f32.gmra.mxu0 %v2238
      %v2401 = vpop.f32.mrf.mxu0
      %v2402 = vadd.f32 %v2232, %v2401
      %v2403 = vpop.f32.mrf.mxu0
      %2404 = vmatprep.mubr.f32.mxu0 0.0
      %2405 = vmatmul.mubr.f32.gmra.mxu0 %v2241
      %v2406 = vpop.f32.mrf.mxu0
      %v2407 = vadd.f32 %v2232, %v2406
      %v2408 = vpop.f32.mrf.mxu0
      %2409 = vmatprep.mubr.f32.mxu0 0.0
      %2410 = vmatmul.mubr.f32.gmra.mxu0 %v2244
      %v2411 = vpop.f32.mrf.mxu0
      %v2412 = vadd.f32 %v2232, %v2411
      %v2413 = vpop.f32.mrf.mxu0
      %2414 = vmatprep.mubr.f32.mxu0 0.0
      %2415 = vmatmul.mubr.f32.gmra.mxu0 %v2247
      %v2416 = vpop.f32.mrf.mxu0
      %v2417 = vadd.f32 %v2232, %v2416
      %v2418 = vpop.f32.mrf.mxu0
      %2419 = vmatprep.mubr.f32.mxu0 0.0
      %2420 = vmatmul.mubr.f32.gmra.mxu0 %v2250
      %v2421 = vpop.f32.mrf.mxu0
      %v2422 = vadd.f32 %v2232, %v2421
      %v2423 = vpop.f32.mrf.mxu0
      %2424 = vmatprep.mubr.f32.mxu0 0.0
      %2425 = vmatmul.mubr.f32.gmra.mxu0 %v2253
      %v2426 = vpop.f32.mrf.mxu0
      %v2427 = vadd.f32 %v2232, %v2426
      %v2428 = vpop.f32.mrf.mxu0
      %2429 = vmatprep.mubr.f32.mxu0 0.0
      %2430 = vmatmul.mubr.f32.gmra.mxu0 %v2256
      %v2431 = vpop.f32.mrf.mxu0
      %v2432 = vadd.f32 %v2232, %v2431
      %v2433 = vpop.f32.mrf.mxu0
      %2434 = vmatprep.mubr.f32.mxu0 0.0
      %2435 = vmatmul.mubr.f32.gmra.mxu0 %v2259
      %v2436 = vpop.f32.mrf.mxu0
      %v2437 = vadd.f32 %v2232, %v2436
      %v2438 = vpop.f32.mrf.mxu0
      %2439 = vmatprep.mubr.f32.mxu0 0.0
      %2440 = vmatmul.mubr.f32.gmra.mxu0 %v2262
      %v2441 = vpop.f32.mrf.mxu0
      %v2442 = vadd.f32 %v2232, %v2441
      %v2443 = vpop.f32.mrf.mxu0
      %2444 = vmatprep.mubr.f32.mxu0 0.0
      %2445 = vmatmul.mubr.f32.gmra.mxu0 %v2265
      %v2446 = vpop.f32.mrf.mxu0
      %v2447 = vadd.f32 %v2232, %v2446
      %v2448 = vpop.f32.mrf.mxu0
      %2449 = vmatprep.mubr.f32.mxu0 0.0
      %2450 = vmatmul.mubr.f32.gmra.mxu0 %v2268
      %v2451 = vpop.f32.mrf.mxu0
      %v2452 = vadd.f32 %v2232, %v2451
      %v2453 = vpop.f32.mrf.mxu0
      %2454 = vmatprep.mubr.f32.mxu0 0.0
      %2455 = vmatmul.mubr.f32.gmra.mxu0 %v2271
      %v2456 = vpop.f32.mrf.mxu0
      %v2457 = vadd.f32 %v2232, %v2456
      %v2458 = vpop.f32.mrf.mxu0
      %2459 = vmatprep.mubr.f32.mxu0 0.0
      %2460 = vmatmul.mubr.f32.gmra.mxu0 %v2274
      %v2461 = vpop.f32.mrf.mxu0
      %v2462 = vadd.f32 %v2232, %v2461
      %v2463 = vpop.f32.mrf.mxu0
      %2464 = vmatprep.mubr.f32.mxu0 0.0
      %2465 = vmatmul.mubr.f32.gmra.mxu0 %v2277
      %v2466 = vpop.f32.mrf.mxu0
      %v2467 = vadd.f32 %v2232, %v2466
      %v2468 = vpop.f32.mrf.mxu0
      %2469 = vmatprep.mubr.f32.mxu0 0.0
      %2470 = vmatmul.mubr.f32.gmra.mxu0 %v2280
      %v2471 = vpop.f32.mrf.mxu0
      %v2472 = vadd.f32 %v2232, %v2471
      %v2473 = vpop.f32.mrf.mxu0
      %2474 = vmatprep.mubr.f32.mxu0 0.0
      %2475 = vmatmul.mubr.f32.gmra.mxu0 %v2283
      %v2476 = vpop.f32.mrf.mxu0
      %v2477 = vadd.f32 %v2232, %v2476
      %v2478 = vpop.f32.mrf.mxu0
      %2479 = vmatprep.mubr.f32.mxu0 0.0
      %2480 = vmatmul.mubr.f32.gmra.mxu0 %v2286
      %v2481 = vpop.f32.mrf.mxu0
      %v2482 = vadd.f32 %v2232, %v2481
      %v2483 = vpop.f32.mrf.mxu0
      %2484 = vmatprep.mubr.f32.mxu0 0.0
      %2485 = vmatmul.mubr.f32.gmra.mxu0 %v2289
      %v2486 = vpop.f32.mrf.mxu0
      %v2487 = vadd.f32 %v2232, %v2486
      %v2488 = vpop.f32.mrf.mxu0
      %2489 = vmatprep.mubr.f32.mxu0 0.0
      %2490 = vmatmul.mubr.f32.gmra.mxu0 %v2292
      %v2491 = vpop.f32.mrf.mxu0
      %v2492 = vadd.f32 %v2232, %v2491
      %v2493 = vpop.f32.mrf.mxu0
      %2494 = vmatprep.mubr.f32.mxu0 0.0
      %2495 = vmatmul.mubr.f32.gmra.mxu0 %v2295
      %v2496 = vpop.f32.mrf.mxu0
      %v2497 = vadd.f32 %v2232, %v2496
      %v2498 = vpop.f32.mrf.mxu0
      %2499 = vmatprep.mubr.f32.mxu0 0.0
      %2500 = vmatmul.mubr.f32.gmra.mxu0 %v2298
      %v2501 = vpop.f32.mrf.mxu0
      %v2502 = vadd.f32 %v2232, %v2501
      %v2503 = vpop.f32.mrf.mxu0
      %2504 = vmatprep.mubr.f32.mxu0 0.0
      %2505 = vmatmul.mubr.f32.gmra.mxu0 %v2301
      %v2506 = vpop.f32.mrf.mxu0
      %v2507 = vadd.f32 %v2232, %v2506
      %v2508 = vpop.f32.mrf.mxu0
      %2509 = vmatprep.mubr.f32.mxu0 0.0
      %2510 = vmatmul.mubr.f32.gmra.mxu0 %v2304
      %v2511 = vpop.f32.mrf.mxu0
      %v2512 = vadd.f32 %v2232, %v2511
      %v2513 = vpop.f32.mrf.mxu0
      %2514 = vmatprep.mubr.f32.mxu0 0.0
      %2515 = vmatmul.mubr.f32.gmra.mxu0 %v2307
      %v2516 = vpop.f32.mrf.mxu0
      %v2517 = vadd.f32 %v2232, %v2516
      %v2518 = vpop.f32.mrf.mxu0
      %2519 = vmatprep.mubr.f32.mxu0 0.0
      %2520 = vmatmul.mubr.f32.gmra.mxu0 %v2310
      %v2521 = vpop.f32.mrf.mxu0
      %v2522 = vadd.f32 %v2232, %v2521
      %v2523 = vpop.f32.mrf.mxu0
      %2524 = vmatprep.mubr.f32.mxu0 0.0
      %2525 = vmatmul.mubr.f32.gmra.mxu0 %v2313
      %v2526 = vpop.f32.mrf.mxu0
      %v2527 = vadd.f32 %v2232, %v2526
      %v2528 = vpop.f32.mrf.mxu0
      %2529 = vmatprep.mubr.f32.mxu0 0.0
      %2530 = vmatmul.mubr.f32.gmra.mxu0 %v2316
      %v2531 = vpop.f32.mrf.mxu0
      %v2532 = vadd.f32 %v2232, %v2531
      %v2533 = vpop.f32.mrf.mxu0
      %2534 = vmatprep.mubr.f32.mxu0 0.0
      %2535 = vmatmul.mubr.f32.gmra.mxu0 %v2319
      %v2536 = vpop.f32.mrf.mxu0
      %v2537 = vadd.f32 %v2232, %v2536
      %v2538 = vpop.f32.mrf.mxu0
      %2539 = vmatprep.mubr.f32.mxu0 0.0
      %2540 = vmatmul.mubr.f32.gmra.mxu0 %v2322
      %v2541 = vpop.f32.mrf.mxu0
      %v2542 = vadd.f32 %v2232, %v2541
      %v2543 = vpop.f32.mrf.mxu0
      %2544 = vmatprep.mubr.f32.mxu0 0.0
      %2545 = vmatmul.mubr.f32.gmra.mxu0 %v2325
      %v2546 = vpop.f32.mrf.mxu0
      %v2547 = vadd.f32 %v2232, %v2546
      %v2548 = vpop.f32.mrf.mxu0
      %2549 = vmatprep.mubr.f32.mxu0 0.0
      %2550 = vmatmul.mubr.f32.gmra.mxu0 %v2328
      %v2551 = vpop.f32.mrf.mxu0
      %v2552 = vadd.f32 %v2232, %v2551
      %v2553 = vpop.f32.mrf.mxu0
      %2554 = vdwg.mxu0
      %v2555 = vmul.f32 %v2397, 0.5
      %v2556 = vmul.f32 %v2402, 0.5
      %v2557 = vmul.f32 %v2407, 0.5
      %v2558 = vmul.f32 %v2412, 0.5
      %v2559 = vmul.f32 %v2417, 0.5
      %v2560 = vmul.f32 %v2422, 0.5
      %v2561 = vmul.f32 %v2427, 0.5
      %v2562 = vmul.f32 %v2432, 0.5
      %v2563 = vmul.f32 %v2437, 0.5
      %v2564 = vmul.f32 %v2442, 0.5
      %v2565 = vmul.f32 %v2447, 0.5
      %v2566 = vmul.f32 %v2452, 0.5
      %v2567 = vmul.f32 %v2457, 0.5
      %v2568 = vmul.f32 %v2462, 0.5
      %v2569 = vmul.f32 %v2467, 0.5
      %v2570 = vmul.f32 %v2472, 0.5
      %v2571 = vmul.f32 %v2477, 0.5
      %v2572 = vmul.f32 %v2482, 0.5
      %v2573 = vmul.f32 %v2487, 0.5
      %v2574 = vmul.f32 %v2492, 0.5
      %v2575 = vmul.f32 %v2497, 0.5
      %v2576 = vmul.f32 %v2502, 0.5
      %v2577 = vmul.f32 %v2507, 0.5
      %v2578 = vmul.f32 %v2512, 0.5
      %v2579 = vmul.f32 %v2517, 0.5
      %v2580 = vmul.f32 %v2522, 0.5
      %v2581 = vmul.f32 %v2527, 0.5
      %v2582 = vmul.f32 %v2532, 0.5
      %v2583 = vmul.f32 %v2537, 0.5
      %v2584 = vmul.f32 %v2542, 0.5
      %v2585 = vmul.f32 %v2547, 0.5
      %v2586 = vmul.f32 %v2552, 0.5
      %v2587 = vmul.f32 %v2555, 1.442695
      %v2588 = vpow.pop %v2587
      %v2589 = vmul.f32 %v2556, 1.442695
      %v2590 = vpow.pop %v2589
      %v2591 = vmul.f32 %v2557, 1.442695
      %v2592 = vpow.pop %v2591
      %v2593 = vmul.f32 %v2558, 1.442695
      %v2594 = vpow.pop %v2593
      %v2595 = vmul.f32 %v2559, 1.442695
      %v2596 = vpow.pop %v2595
      %v2597 = vmul.f32 %v2560, 1.442695
      %v2598 = vpow.pop %v2597
      %v2599 = vmul.f32 %v2561, 1.442695
      %v2600 = vpow.pop %v2599
      %v2601 = vmul.f32 %v2562, 1.442695
      %v2602 = vpow.pop %v2601
      %v2603 = vmul.f32 %v2563, 1.442695
      %v2604 = vpow.pop %v2603
      %v2605 = vmul.f32 %v2564, 1.442695
      %v2606 = vpow.pop %v2605
      %v2607 = vmul.f32 %v2565, 1.442695
      %v2608 = vpow.pop %v2607
      %v2609 = vmul.f32 %v2566, 1.442695
      %v2610 = vpow.pop %v2609
      %v2611 = vmul.f32 %v2567, 1.442695
      %v2612 = vpow.pop %v2611
      %v2613 = vmul.f32 %v2568, 1.442695
      %v2614 = vpow.pop %v2613
      %v2615 = vmul.f32 %v2569, 1.442695
      %v2616 = vpow.pop %v2615
      %v2617 = vmul.f32 %v2570, 1.442695
      %v2618 = vpow.pop %v2617
      %v2619 = vmul.f32 %v2571, 1.442695
      %v2620 = vpow.pop %v2619
      %v2621 = vmul.f32 %v2572, 1.442695
      %v2622 = vpow.pop %v2621
      %v2623 = vmul.f32 %v2573, 1.442695
      %v2624 = vpow.pop %v2623
      %v2625 = vmul.f32 %v2574, 1.442695
      %v2626 = vpow.pop %v2625
      %v2627 = vmul.f32 %v2575, 1.442695
      %v2628 = vpow.pop %v2627
      %v2629 = vmul.f32 %v2576, 1.442695
      %v2630 = vpow.pop %v2629
      %v2631 = vmul.f32 %v2577, 1.442695
      %v2632 = vpow.pop %v2631
      %v2633 = vmul.f32 %v2578, 1.442695
      %v2634 = vpow.pop %v2633
      %v2635 = vmul.f32 %v2579, 1.442695
      %v2636 = vpow.pop %v2635
      %v2637 = vmul.f32 %v2580, 1.442695
      %v2638 = vpow.pop %v2637
      %v2639 = vmul.f32 %v2581, 1.442695
      %v2640 = vpow.pop %v2639
      %v2641 = vmul.f32 %v2582, 1.442695
      %v2642 = vpow.pop %v2641
      %v2643 = vmul.f32 %v2583, 1.442695
      %v2644 = vpow.pop %v2643
      %v2645 = vmul.f32 %v2584, 1.442695
      %v2646 = vpow.pop %v2645
      %v2647 = vmul.f32 %v2585, 1.442695
      %v2648 = vpow.pop %v2647
      %v2649 = vmul.f32 %v2586, 1.442695
      %v2650 = vpow.pop %v2649
      %v2651 = vld [vmem:[%s407] sm:$0xff]
      %v2652 = vld [vmem:[%s407 + $0x8] sm:$0xff]
      %v2653 = vld [vmem:[%s407 + $0x10] sm:$0xff]
      %v2654 = vld [vmem:[%s407 + $0x18] sm:$0xff]
      %v2655 = vld [vmem:[%s407 + $0x20] sm:$0xff]
      %v2656 = vld [vmem:[%s407 + $0x28] sm:$0xff]
      %v2657 = vld [vmem:[%s407 + $0x30] sm:$0xff]
      %v2658 = vld [vmem:[%s407 + $0x38] sm:$0xff]
      %v2659 = vld [vmem:[%s407 + $0x40] sm:$0xff]
      %v2660 = vld [vmem:[%s407 + $0x48] sm:$0xff]
      %v2661 = vld [vmem:[%s407 + $0x50] sm:$0xff]
      %v2662 = vld [vmem:[%s407 + $0x58] sm:$0xff]
      %v2663 = vld [vmem:[%s407 + $0x60] sm:$0xff]
      %v2664 = vld [vmem:[%s407 + $0x68] sm:$0xff]
      %v2665 = vld [vmem:[%s407 + $0x70] sm:$0xff]
      %v2666 = vld [vmem:[%s407 + $0x78] sm:$0xff]
      %v2667 = vld [vmem:[%s407 + $0x80] sm:$0xff]
      %v2668 = vld [vmem:[%s407 + $0x88] sm:$0xff]
      %v2669 = vld [vmem:[%s407 + $0x90] sm:$0xff]
      %v2670 = vld [vmem:[%s407 + $0x98] sm:$0xff]
      %v2671 = vld [vmem:[%s407 + $0xa0] sm:$0xff]
      %v2672 = vld [vmem:[%s407 + $0xa8] sm:$0xff]
      %v2673 = vld [vmem:[%s407 + $0xb0] sm:$0xff]
      %v2674 = vld [vmem:[%s407 + $0xb8] sm:$0xff]
      %v2675 = vld [vmem:[%s407 + $0xc0] sm:$0xff]
      %v2676 = vld [vmem:[%s407 + $0xc8] sm:$0xff]
      %v2677 = vld [vmem:[%s407 + $0xd0] sm:$0xff]
      %v2678 = vld [vmem:[%s407 + $0xd8] sm:$0xff]
      %v2679 = vld [vmem:[%s407 + $0xe0] sm:$0xff]
      %v2680 = vld [vmem:[%s407 + $0xe8] sm:$0xff]
      %v2681 = vld [vmem:[%s407 + $0xf0] sm:$0xff]
      %v2682 = vld [vmem:[%s407 + $0xf8] sm:$0xff]
      %2715 = vrot.lane.b32.xlu0 %v2651, 8
      %v2716 = vpop.permute.xlu0 %2715
      %2717 = vrot.lane.b32.xlu0 %v2652, 8
      %v2718 = vpop.permute.xlu0 %2717
      %2719 = vrot.lane.b32.xlu0 %v2653, 8
      %v2720 = vpop.permute.xlu0 %2719
      %2721 = vrot.lane.b32.xlu0 %v2654, 8
      %v2722 = vpop.permute.xlu0 %2721
      %2723 = vrot.lane.b32.xlu0 %v2655, 8
      %v2724 = vpop.permute.xlu0 %2723
      %2725 = vrot.lane.b32.xlu0 %v2656, 8
      %v2726 = vpop.permute.xlu0 %2725
      %2727 = vrot.lane.b32.xlu0 %v2657, 8
      %v2728 = vpop.permute.xlu0 %2727
      %2729 = vrot.lane.b32.xlu0 %v2658, 8
      %v2730 = vpop.permute.xlu0 %2729
      %2731 = vrot.lane.b32.xlu0 %v2659, 8
      %v2732 = vpop.permute.xlu0 %2731
      %2733 = vrot.lane.b32.xlu0 %v2660, 8
      %v2734 = vpop.permute.xlu0 %2733
      %2735 = vrot.lane.b32.xlu0 %v2661, 8
      %v2736 = vpop.permute.xlu0 %2735
      %2737 = vrot.lane.b32.xlu0 %v2662, 8
      %v2738 = vpop.permute.xlu0 %2737
      %2739 = vrot.lane.b32.xlu0 %v2663, 8
      %v2740 = vpop.permute.xlu0 %2739
      %2741 = vrot.lane.b32.xlu0 %v2664, 8
      %v2742 = vpop.permute.xlu0 %2741
      %2743 = vrot.lane.b32.xlu0 %v2665, 8
      %v2744 = vpop.permute.xlu0 %2743
      %2745 = vrot.lane.b32.xlu0 %v2666, 8
      %v2746 = vpop.permute.xlu0 %2745
      %2747 = vrot.lane.b32.xlu0 %v2667, 8
      %v2748 = vpop.permute.xlu0 %2747
      %2749 = vrot.lane.b32.xlu0 %v2668, 8
      %v2750 = vpop.permute.xlu0 %2749
      %2751 = vrot.lane.b32.xlu0 %v2669, 8
      %v2752 = vpop.permute.xlu0 %2751
      %2753 = vrot.lane.b32.xlu0 %v2670, 8
      %v2754 = vpop.permute.xlu0 %2753
      %2755 = vrot.lane.b32.xlu0 %v2671, 8
      %v2756 = vpop.permute.xlu0 %2755
      %2757 = vrot.lane.b32.xlu0 %v2672, 8
      %v2758 = vpop.permute.xlu0 %2757
      %2759 = vrot.lane.b32.xlu0 %v2673, 8
      %v2760 = vpop.permute.xlu0 %2759
      %2761 = vrot.lane.b32.xlu0 %v2674, 8
      %v2762 = vpop.permute.xlu0 %2761
      %2763 = vrot.lane.b32.xlu0 %v2675, 8
      %v2764 = vpop.permute.xlu0 %2763
      %2765 = vrot.lane.b32.xlu0 %v2676, 8
      %v2766 = vpop.permute.xlu0 %2765
      %2767 = vrot.lane.b32.xlu0 %v2677, 8
      %v2768 = vpop.permute.xlu0 %2767
      %2769 = vrot.lane.b32.xlu0 %v2678, 8
      %v2770 = vpop.permute.xlu0 %2769
      %2771 = vrot.lane.b32.xlu0 %v2679, 8
      %v2772 = vpop.permute.xlu0 %2771
      %2773 = vrot.lane.b32.xlu0 %v2680, 8
      %v2774 = vpop.permute.xlu0 %2773
      %2775 = vrot.lane.b32.xlu0 %v2681, 8
      %v2776 = vpop.permute.xlu0 %2775
      %2777 = vrot.lane.b32.xlu0 %v2682, 8
      %v2778 = vpop.permute.xlu0 %2777
      %v2811 = vmul.f32 %v2588, %v2716
      %v2812 = vmul.f32 %v2590, %v2718
      %v2813 = vmul.f32 %v2592, %v2720
      %v2814 = vmul.f32 %v2594, %v2722
      %v2815 = vmul.f32 %v2596, %v2724
      %v2816 = vmul.f32 %v2598, %v2726
      %v2817 = vmul.f32 %v2600, %v2728
      %v2818 = vmul.f32 %v2602, %v2730
      %v2819 = vmul.f32 %v2604, %v2732
      %v2820 = vmul.f32 %v2606, %v2734
      %v2821 = vmul.f32 %v2608, %v2736
      %v2822 = vmul.f32 %v2610, %v2738
      %v2823 = vmul.f32 %v2612, %v2740
      %v2824 = vmul.f32 %v2614, %v2742
      %v2825 = vmul.f32 %v2616, %v2744
      %v2826 = vmul.f32 %v2618, %v2746
      %v2827 = vmul.f32 %v2620, %v2748
      %v2828 = vmul.f32 %v2622, %v2750
      %v2829 = vmul.f32 %v2624, %v2752
      %v2830 = vmul.f32 %v2626, %v2754
      %v2831 = vmul.f32 %v2628, %v2756
      %v2832 = vmul.f32 %v2630, %v2758
      %v2833 = vmul.f32 %v2632, %v2760
      %v2834 = vmul.f32 %v2634, %v2762
      %v2835 = vmul.f32 %v2636, %v2764
      %v2836 = vmul.f32 %v2638, %v2766
      %v2837 = vmul.f32 %v2640, %v2768
      %v2838 = vmul.f32 %v2642, %v2770
      %v2839 = vmul.f32 %v2644, %v2772
      %v2840 = vmul.f32 %v2646, %v2774
      %v2841 = vmul.f32 %v2648, %v2776
      %v2842 = vmul.f32 %v2650, %v2778
      %2875 = vrot.lane.b32.xlu0 %v2811, 120
      %v2876 = vpop.permute.xlu0 %2875
      %2877 = vrot.lane.b32.xlu0 %v2812, 120
      %v2878 = vpop.permute.xlu0 %2877
      %2879 = vrot.lane.b32.xlu0 %v2813, 120
      %v2880 = vpop.permute.xlu0 %2879
      %2881 = vrot.lane.b32.xlu0 %v2814, 120
      %v2882 = vpop.permute.xlu0 %2881
      %2883 = vrot.lane.b32.xlu0 %v2815, 120
      %v2884 = vpop.permute.xlu0 %2883
      %2885 = vrot.lane.b32.xlu0 %v2816, 120
      %v2886 = vpop.permute.xlu0 %2885
      %2887 = vrot.lane.b32.xlu0 %v2817, 120
      %v2888 = vpop.permute.xlu0 %2887
      %2889 = vrot.lane.b32.xlu0 %v2818, 120
      %v2890 = vpop.permute.xlu0 %2889
      %2891 = vrot.lane.b32.xlu0 %v2819, 120
      %v2892 = vpop.permute.xlu0 %2891
      %2893 = vrot.lane.b32.xlu0 %v2820, 120
      %v2894 = vpop.permute.xlu0 %2893
      %2895 = vrot.lane.b32.xlu0 %v2821, 120
      %v2896 = vpop.permute.xlu0 %2895
      %2897 = vrot.lane.b32.xlu0 %v2822, 120
      %v2898 = vpop.permute.xlu0 %2897
      %2899 = vrot.lane.b32.xlu0 %v2823, 120
      %v2900 = vpop.permute.xlu0 %2899
      %2901 = vrot.lane.b32.xlu0 %v2824, 120
      %v2902 = vpop.permute.xlu0 %2901
      %2903 = vrot.lane.b32.xlu0 %v2825, 120
      %v2904 = vpop.permute.xlu0 %2903
      %2905 = vrot.lane.b32.xlu0 %v2826, 120
      %v2906 = vpop.permute.xlu0 %2905
      %2907 = vrot.lane.b32.xlu0 %v2827, 120
      %v2908 = vpop.permute.xlu0 %2907
      %2909 = vrot.lane.b32.xlu0 %v2828, 120
      %v2910 = vpop.permute.xlu0 %2909
      %2911 = vrot.lane.b32.xlu0 %v2829, 120
      %v2912 = vpop.permute.xlu0 %2911
      %2913 = vrot.lane.b32.xlu0 %v2830, 120
      %v2914 = vpop.permute.xlu0 %2913
      %2915 = vrot.lane.b32.xlu0 %v2831, 120
      %v2916 = vpop.permute.xlu0 %2915
      %2917 = vrot.lane.b32.xlu0 %v2832, 120
      %v2918 = vpop.permute.xlu0 %2917
      %2919 = vrot.lane.b32.xlu0 %v2833, 120
      %v2920 = vpop.permute.xlu0 %2919
      %2921 = vrot.lane.b32.xlu0 %v2834, 120
      %v2922 = vpop.permute.xlu0 %2921
      %2923 = vrot.lane.b32.xlu0 %v2835, 120
      %v2924 = vpop.permute.xlu0 %2923
      %2925 = vrot.lane.b32.xlu0 %v2836, 120
      %v2926 = vpop.permute.xlu0 %2925
      %2927 = vrot.lane.b32.xlu0 %v2837, 120
      %v2928 = vpop.permute.xlu0 %2927
      %2929 = vrot.lane.b32.xlu0 %v2838, 120
      %v2930 = vpop.permute.xlu0 %2929
      %2931 = vrot.lane.b32.xlu0 %v2839, 120
      %v2932 = vpop.permute.xlu0 %2931
      %2933 = vrot.lane.b32.xlu0 %v2840, 120
      %v2934 = vpop.permute.xlu0 %2933
      %2935 = vrot.lane.b32.xlu0 %v2841, 120
      %v2936 = vpop.permute.xlu0 %2935
      %2937 = vrot.lane.b32.xlu0 %v2842, 120
      %v2938 = vpop.permute.xlu0 %2937
      %v2971 = vadd.f32 %v2397, %v2876
      %v2972 = vadd.f32 %v2402, %v2878
      %v2973 = vadd.f32 %v2407, %v2880
      %v2974 = vadd.f32 %v2412, %v2882
      %v2975 = vadd.f32 %v2417, %v2884
      %v2976 = vadd.f32 %v2422, %v2886
      %v2977 = vadd.f32 %v2427, %v2888
      %v2978 = vadd.f32 %v2432, %v2890
      %v2979 = vadd.f32 %v2437, %v2892
      %v2980 = vadd.f32 %v2442, %v2894
      %v2981 = vadd.f32 %v2447, %v2896
      %v2982 = vadd.f32 %v2452, %v2898
      %v2983 = vadd.f32 %v2457, %v2900
      %v2984 = vadd.f32 %v2462, %v2902
      %v2985 = vadd.f32 %v2467, %v2904
      %v2986 = vadd.f32 %v2472, %v2906
      %v2987 = vadd.f32 %v2477, %v2908
      %v2988 = vadd.f32 %v2482, %v2910
      %v2989 = vadd.f32 %v2487, %v2912
      %v2990 = vadd.f32 %v2492, %v2914
      %v2991 = vadd.f32 %v2497, %v2916
      %v2992 = vadd.f32 %v2502, %v2918
      %v2993 = vadd.f32 %v2507, %v2920
      %v2994 = vadd.f32 %v2512, %v2922
      %v2995 = vadd.f32 %v2517, %v2924
      %v2996 = vadd.f32 %v2522, %v2926
      %v2997 = vadd.f32 %v2527, %v2928
      %v2998 = vadd.f32 %v2532, %v2930
      %v2999 = vadd.f32 %v2537, %v2932
      %v3000 = vadd.f32 %v2542, %v2934
      %v3001 = vadd.f32 %v2547, %v2936
      %v3002 = vadd.f32 %v2552, %v2938
      %v3003 = vmul.f32 %v2397, %v2397
      %v3004 = vmul.f32 %v2402, %v2402
      %v3005 = vmul.f32 %v2407, %v2407
      %v3006 = vmul.f32 %v2412, %v2412
      %v3007 = vmul.f32 %v2417, %v2417
      %v3008 = vmul.f32 %v2422, %v2422
      %v3009 = vmul.f32 %v2427, %v2427
      %v3010 = vmul.f32 %v2432, %v2432
      %v3011 = vmul.f32 %v2437, %v2437
      %v3012 = vmul.f32 %v2442, %v2442
      %v3013 = vmul.f32 %v2447, %v2447
      %v3014 = vmul.f32 %v2452, %v2452
      %v3015 = vmul.f32 %v2457, %v2457
      %v3016 = vmul.f32 %v2462, %v2462
      %v3017 = vmul.f32 %v2467, %v2467
      %v3018 = vmul.f32 %v2472, %v2472
      %v3019 = vmul.f32 %v2477, %v2477
      %v3020 = vmul.f32 %v2482, %v2482
      %v3021 = vmul.f32 %v2487, %v2487
      %v3022 = vmul.f32 %v2492, %v2492
      %v3023 = vmul.f32 %v2497, %v2497
      %v3024 = vmul.f32 %v2502, %v2502
      %v3025 = vmul.f32 %v2507, %v2507
      %v3026 = vmul.f32 %v2512, %v2512
      %v3027 = vmul.f32 %v2517, %v2517
      %v3028 = vmul.f32 %v2522, %v2522
      %v3029 = vmul.f32 %v2527, %v2527
      %v3030 = vmul.f32 %v2532, %v2532
      %v3031 = vmul.f32 %v2537, %v2537
      %v3032 = vmul.f32 %v2542, %v2542
      %v3033 = vmul.f32 %v2547, %v2547
      %v3034 = vmul.f32 %v2552, %v2552
      %v3035 = vmul.f32 %v2588, %v2588
      %v3036 = vmul.f32 %v2590, %v2590
      %v3037 = vmul.f32 %v2592, %v2592
      %v3038 = vmul.f32 %v2594, %v2594
      %v3039 = vmul.f32 %v2596, %v2596
      %v3040 = vmul.f32 %v2598, %v2598
      %v3041 = vmul.f32 %v2600, %v2600
      %v3042 = vmul.f32 %v2602, %v2602
      %v3043 = vmul.f32 %v2604, %v2604
      %v3044 = vmul.f32 %v2606, %v2606
      %v3045 = vmul.f32 %v2608, %v2608
      %v3046 = vmul.f32 %v2610, %v2610
      %v3047 = vmul.f32 %v2612, %v2612
      %v3048 = vmul.f32 %v2614, %v2614
      %v3049 = vmul.f32 %v2616, %v2616
      %v3050 = vmul.f32 %v2618, %v2618
      %v3051 = vmul.f32 %v2620, %v2620
      %v3052 = vmul.f32 %v2622, %v2622
      %v3053 = vmul.f32 %v2624, %v2624
      %v3054 = vmul.f32 %v2626, %v2626
      %v3055 = vmul.f32 %v2628, %v2628
      %v3056 = vmul.f32 %v2630, %v2630
      %v3057 = vmul.f32 %v2632, %v2632
      %v3058 = vmul.f32 %v2634, %v2634
      %v3059 = vmul.f32 %v2636, %v2636
      %v3060 = vmul.f32 %v2638, %v2638
      %v3061 = vmul.f32 %v2640, %v2640
      %v3062 = vmul.f32 %v2642, %v2642
      %v3063 = vmul.f32 %v2644, %v2644
      %v3064 = vmul.f32 %v2646, %v2646
      %v3065 = vmul.f32 %v2648, %v2648
      %v3066 = vmul.f32 %v2650, %v2650
      %3099 = vrot.lane.b32.xlu0 %v3035, 120
      %v3100 = vpop.permute.xlu0 %3099
      %3101 = vrot.lane.b32.xlu0 %v3036, 120
      %v3102 = vpop.permute.xlu0 %3101
      %3103 = vrot.lane.b32.xlu0 %v3037, 120
      %v3104 = vpop.permute.xlu0 %3103
      %3105 = vrot.lane.b32.xlu0 %v3038, 120
      %v3106 = vpop.permute.xlu0 %3105
      %3107 = vrot.lane.b32.xlu0 %v3039, 120
      %v3108 = vpop.permute.xlu0 %3107
      %3109 = vrot.lane.b32.xlu0 %v3040, 120
      %v3110 = vpop.permute.xlu0 %3109
      %3111 = vrot.lane.b32.xlu0 %v3041, 120
      %v3112 = vpop.permute.xlu0 %3111
      %3113 = vrot.lane.b32.xlu0 %v3042, 120
      %v3114 = vpop.permute.xlu0 %3113
      %3115 = vrot.lane.b32.xlu0 %v3043, 120
      %v3116 = vpop.permute.xlu0 %3115
      %3117 = vrot.lane.b32.xlu0 %v3044, 120
      %v3118 = vpop.permute.xlu0 %3117
      %3119 = vrot.lane.b32.xlu0 %v3045, 120
      %v3120 = vpop.permute.xlu0 %3119
      %3121 = vrot.lane.b32.xlu0 %v3046, 120
      %v3122 = vpop.permute.xlu0 %3121
      %3123 = vrot.lane.b32.xlu0 %v3047, 120
      %v3124 = vpop.permute.xlu0 %3123
      %3125 = vrot.lane.b32.xlu0 %v3048, 120
      %v3126 = vpop.permute.xlu0 %3125
      %3127 = vrot.lane.b32.xlu0 %v3049, 120
      %v3128 = vpop.permute.xlu0 %3127
      %3129 = vrot.lane.b32.xlu0 %v3050, 120
      %v3130 = vpop.permute.xlu0 %3129
      %3131 = vrot.lane.b32.xlu0 %v3051, 120
      %v3132 = vpop.permute.xlu0 %3131
      %3133 = vrot.lane.b32.xlu0 %v3052, 120
      %v3134 = vpop.permute.xlu0 %3133
      %3135 = vrot.lane.b32.xlu0 %v3053, 120
      %v3136 = vpop.permute.xlu0 %3135
      %3137 = vrot.lane.b32.xlu0 %v3054, 120
      %v3138 = vpop.permute.xlu0 %3137
      %3139 = vrot.lane.b32.xlu0 %v3055, 120
      %v3140 = vpop.permute.xlu0 %3139
      %3141 = vrot.lane.b32.xlu0 %v3056, 120
      %v3142 = vpop.permute.xlu0 %3141
      %3143 = vrot.lane.b32.xlu0 %v3057, 120
      %v3144 = vpop.permute.xlu0 %3143
      %3145 = vrot.lane.b32.xlu0 %v3058, 120
      %v3146 = vpop.permute.xlu0 %3145
      %3147 = vrot.lane.b32.xlu0 %v3059, 120
      %v3148 = vpop.permute.xlu0 %3147
      %3149 = vrot.lane.b32.xlu0 %v3060, 120
      %v3150 = vpop.permute.xlu0 %3149
      %3151 = vrot.lane.b32.xlu0 %v3061, 120
      %v3152 = vpop.permute.xlu0 %3151
      %3153 = vrot.lane.b32.xlu0 %v3062, 120
      %v3154 = vpop.permute.xlu0 %3153
      %3155 = vrot.lane.b32.xlu0 %v3063, 120
      %v3156 = vpop.permute.xlu0 %3155
      %3157 = vrot.lane.b32.xlu0 %v3064, 120
      %v3158 = vpop.permute.xlu0 %3157
      %3159 = vrot.lane.b32.xlu0 %v3065, 120
      %v3160 = vpop.permute.xlu0 %3159
      %3161 = vrot.lane.b32.xlu0 %v3066, 120
      %v3162 = vpop.permute.xlu0 %3161
      %v3195 = vadd.f32 %v3003, %v3100
      %v3196 = vadd.f32 %v3004, %v3102
      %v3197 = vadd.f32 %v3005, %v3104
      %v3198 = vadd.f32 %v3006, %v3106
      %v3199 = vadd.f32 %v3007, %v3108
      %v3200 = vadd.f32 %v3008, %v3110
      %v3201 = vadd.f32 %v3009, %v3112
      %v3202 = vadd.f32 %v3010, %v3114
      %v3203 = vadd.f32 %v3011, %v3116
      %v3204 = vadd.f32 %v3012, %v3118
      %v3205 = vadd.f32 %v3013, %v3120
      %v3206 = vadd.f32 %v3014, %v3122
      %v3207 = vadd.f32 %v3015, %v3124
      %v3208 = vadd.f32 %v3016, %v3126
      %v3209 = vadd.f32 %v3017, %v3128
      %v3210 = vadd.f32 %v3018, %v3130
      %v3211 = vadd.f32 %v3019, %v3132
      %v3212 = vadd.f32 %v3020, %v3134
      %v3213 = vadd.f32 %v3021, %v3136
      %v3214 = vadd.f32 %v3022, %v3138
      %v3215 = vadd.f32 %v3023, %v3140
      %v3216 = vadd.f32 %v3024, %v3142
      %v3217 = vadd.f32 %v3025, %v3144
      %v3218 = vadd.f32 %v3026, %v3146
      %v3219 = vadd.f32 %v3027, %v3148
      %v3220 = vadd.f32 %v3028, %v3150
      %v3221 = vadd.f32 %v3029, %v3152
      %v3222 = vadd.f32 %v3030, %v3154
      %v3223 = vadd.f32 %v3031, %v3156
      %v3224 = vadd.f32 %v3032, %v3158
      %v3225 = vadd.f32 %v3033, %v3160
      %v3226 = vadd.f32 %v3034, %v3162
      %3259 = vrot.lane.b32.xlu0 %v2397, 120
      %v3260 = vpop.permute.xlu0 %3259
      %3261 = vrot.lane.b32.xlu0 %v2402, 120
      %v3262 = vpop.permute.xlu0 %3261
      %3263 = vrot.lane.b32.xlu0 %v2407, 120
      %v3264 = vpop.permute.xlu0 %3263
      %3265 = vrot.lane.b32.xlu0 %v2412, 120
      %v3266 = vpop.permute.xlu0 %3265
      %3267 = vrot.lane.b32.xlu0 %v2417, 120
      %v3268 = vpop.permute.xlu0 %3267
      %3269 = vrot.lane.b32.xlu0 %v2422, 120
      %v3270 = vpop.permute.xlu0 %3269
      %3271 = vrot.lane.b32.xlu0 %v2427, 120
      %v3272 = vpop.permute.xlu0 %3271
      %3273 = vrot.lane.b32.xlu0 %v2432, 120
      %v3274 = vpop.permute.xlu0 %3273
      %3275 = vrot.lane.b32.xlu0 %v2437, 120
      %v3276 = vpop.permute.xlu0 %3275
      %3277 = vrot.lane.b32.xlu0 %v2442, 120
      %v3278 = vpop.permute.xlu0 %3277
      %3279 = vrot.lane.b32.xlu0 %v2447, 120
      %v3280 = vpop.permute.xlu0 %3279
      %3281 = vrot.lane.b32.xlu0 %v2452, 120
      %v3282 = vpop.permute.xlu0 %3281
      %3283 = vrot.lane.b32.xlu0 %v2457, 120
      %v3284 = vpop.permute.xlu0 %3283
      %3285 = vrot.lane.b32.xlu0 %v2462, 120
      %v3286 = vpop.permute.xlu0 %3285
      %3287 = vrot.lane.b32.xlu0 %v2467, 120
      %v3288 = vpop.permute.xlu0 %3287
      %3289 = vrot.lane.b32.xlu0 %v2472, 120
      %v3290 = vpop.permute.xlu0 %3289
      %3291 = vrot.lane.b32.xlu0 %v2477, 120
      %v3292 = vpop.permute.xlu0 %3291
      %3293 = vrot.lane.b32.xlu0 %v2482, 120
      %v3294 = vpop.permute.xlu0 %3293
      %3295 = vrot.lane.b32.xlu0 %v2487, 120
      %v3296 = vpop.permute.xlu0 %3295
      %3297 = vrot.lane.b32.xlu0 %v2492, 120
      %v3298 = vpop.permute.xlu0 %3297
      %3299 = vrot.lane.b32.xlu0 %v2497, 120
      %v3300 = vpop.permute.xlu0 %3299
      %3301 = vrot.lane.b32.xlu0 %v2502, 120
      %v3302 = vpop.permute.xlu0 %3301
      %3303 = vrot.lane.b32.xlu0 %v2507, 120
      %v3304 = vpop.permute.xlu0 %3303
      %3305 = vrot.lane.b32.xlu0 %v2512, 120
      %v3306 = vpop.permute.xlu0 %3305
      %3307 = vrot.lane.b32.xlu0 %v2517, 120
      %v3308 = vpop.permute.xlu0 %3307
      %3309 = vrot.lane.b32.xlu0 %v2522, 120
      %v3310 = vpop.permute.xlu0 %3309
      %3311 = vrot.lane.b32.xlu0 %v2527, 120
      %v3312 = vpop.permute.xlu0 %3311
      %3313 = vrot.lane.b32.xlu0 %v2532, 120
      %v3314 = vpop.permute.xlu0 %3313
      %3315 = vrot.lane.b32.xlu0 %v2537, 120
      %v3316 = vpop.permute.xlu0 %3315
      %3317 = vrot.lane.b32.xlu0 %v2542, 120
      %v3318 = vpop.permute.xlu0 %3317
      %3319 = vrot.lane.b32.xlu0 %v2547, 120
      %v3320 = vpop.permute.xlu0 %3319
      %3321 = vrot.lane.b32.xlu0 %v2552, 120
      %v3322 = vpop.permute.xlu0 %3321
      %v3355 = vsub.f32 %v3195, %v3260
      %v3356 = vsub.f32 %v3196, %v3262
      %v3357 = vsub.f32 %v3197, %v3264
      %v3358 = vsub.f32 %v3198, %v3266
      %v3359 = vsub.f32 %v3199, %v3268
      %v3360 = vsub.f32 %v3200, %v3270
      %v3361 = vsub.f32 %v3201, %v3272
      %v3362 = vsub.f32 %v3202, %v3274
      %v3363 = vsub.f32 %v3203, %v3276
      %v3364 = vsub.f32 %v3204, %v3278
      %v3365 = vsub.f32 %v3205, %v3280
      %v3366 = vsub.f32 %v3206, %v3282
      %v3367 = vsub.f32 %v3207, %v3284
      %v3368 = vsub.f32 %v3208, %v3286
      %v3369 = vsub.f32 %v3209, %v3288
      %v3370 = vsub.f32 %v3210, %v3290
      %v3371 = vsub.f32 %v3211, %v3292
      %v3372 = vsub.f32 %v3212, %v3294
      %v3373 = vsub.f32 %v3213, %v3296
      %v3374 = vsub.f32 %v3214, %v3298
      %v3375 = vsub.f32 %v3215, %v3300
      %v3376 = vsub.f32 %v3216, %v3302
      %v3377 = vsub.f32 %v3217, %v3304
      %v3378 = vsub.f32 %v3218, %v3306
      %v3379 = vsub.f32 %v3219, %v3308
      %v3380 = vsub.f32 %v3220, %v3310
      %v3381 = vsub.f32 %v3221, %v3312
      %v3382 = vsub.f32 %v3222, %v3314
      %v3383 = vsub.f32 %v3223, %v3316
      %v3384 = vsub.f32 %v3224, %v3318
      %v3385 = vsub.f32 %v3225, %v3320
      %v3386 = vsub.f32 %v3226, %v3322
      %v3387 = vsub.f32 %v3355, 1.0
      %v3388 = vsub.f32 %v3356, 1.0
      %v3389 = vsub.f32 %v3357, 1.0
      %v3390 = vsub.f32 %v3358, 1.0
      %v3391 = vsub.f32 %v3359, 1.0
      %v3392 = vsub.f32 %v3360, 1.0
      %v3393 = vsub.f32 %v3361, 1.0
      %v3394 = vsub.f32 %v3362, 1.0
      %v3395 = vsub.f32 %v3363, 1.0
      %v3396 = vsub.f32 %v3364, 1.0
      %v3397 = vsub.f32 %v3365, 1.0
      %v3398 = vsub.f32 %v3366, 1.0
      %v3399 = vsub.f32 %v3367, 1.0
      %v3400 = vsub.f32 %v3368, 1.0
      %v3401 = vsub.f32 %v3369, 1.0
      %v3402 = vsub.f32 %v3370, 1.0
      %v3403 = vsub.f32 %v3371, 1.0
      %v3404 = vsub.f32 %v3372, 1.0
      %v3405 = vsub.f32 %v3373, 1.0
      %v3406 = vsub.f32 %v3374, 1.0
      %v3407 = vsub.f32 %v3375, 1.0
      %v3408 = vsub.f32 %v3376, 1.0
      %v3409 = vsub.f32 %v3377, 1.0
      %v3410 = vsub.f32 %v3378, 1.0
      %v3411 = vsub.f32 %v3379, 1.0
      %v3412 = vsub.f32 %v3380, 1.0
      %v3413 = vsub.f32 %v3381, 1.0
      %v3414 = vsub.f32 %v3382, 1.0
      %v3415 = vsub.f32 %v3383, 1.0
      %v3416 = vsub.f32 %v3384, 1.0
      %v3417 = vsub.f32 %v3385, 1.0
      %v3418 = vsub.f32 %v3386, 1.0
      %v3419 = vmul.f32 %v3387, 0.5
      %v3420 = vmul.f32 %v3388, 0.5
      %v3421 = vmul.f32 %v3389, 0.5
      %v3422 = vmul.f32 %v3390, 0.5
      %v3423 = vmul.f32 %v3391, 0.5
      %v3424 = vmul.f32 %v3392, 0.5
      %v3425 = vmul.f32 %v3393, 0.5
      %v3426 = vmul.f32 %v3394, 0.5
      %v3427 = vmul.f32 %v3395, 0.5
      %v3428 = vmul.f32 %v3396, 0.5
      %v3429 = vmul.f32 %v3397, 0.5
      %v3430 = vmul.f32 %v3398, 0.5
      %v3431 = vmul.f32 %v3399, 0.5
      %v3432 = vmul.f32 %v3400, 0.5
      %v3433 = vmul.f32 %v3401, 0.5
      %v3434 = vmul.f32 %v3402, 0.5
      %v3435 = vmul.f32 %v3403, 0.5
      %v3436 = vmul.f32 %v3404, 0.5
      %v3437 = vmul.f32 %v3405, 0.5
      %v3438 = vmul.f32 %v3406, 0.5
      %v3439 = vmul.f32 %v3407, 0.5
      %v3440 = vmul.f32 %v3408, 0.5
      %v3441 = vmul.f32 %v3409, 0.5
      %v3442 = vmul.f32 %v3410, 0.5
      %v3443 = vmul.f32 %v3411, 0.5
      %v3444 = vmul.f32 %v3412, 0.5
      %v3445 = vmul.f32 %v3413, 0.5
      %v3446 = vmul.f32 %v3414, 0.5
      %v3447 = vmul.f32 %v3415, 0.5
      %v3448 = vmul.f32 %v3416, 0.5
      %v3449 = vmul.f32 %v3417, 0.5
      %v3450 = vmul.f32 %v3418, 0.5
      %v3451 = vsel %vm1622, %v3419, 0.0
      %v3452 = vsel %vm1622, %v3420, 0.0
      %v3453 = vadd.f32 %v3451, %v3452
      %v3454 = vsel %vm1622, %v3421, 0.0
      %v3455 = vadd.f32 %v3453, %v3454
      %v3456 = vsel %vm1622, %v3422, 0.0
      %v3457 = vadd.f32 %v3455, %v3456
      %v3458 = vsel %vm1622, %v3423, 0.0
      %v3459 = vadd.f32 %v3457, %v3458
      %v3460 = vsel %vm1622, %v3424, 0.0
      %v3461 = vadd.f32 %v3459, %v3460
      %v3462 = vsel %vm1622, %v3425, 0.0
      %v3463 = vadd.f32 %v3461, %v3462
      %v3464 = vsel %vm1622, %v3426, 0.0
      %v3465 = vadd.f32 %v3463, %v3464
      %v3466 = vsel %vm1622, %v3427, 0.0
      %v3467 = vadd.f32 %v3465, %v3466
      %v3468 = vsel %vm1622, %v3428, 0.0
      %v3469 = vadd.f32 %v3467, %v3468
      %v3470 = vsel %vm1622, %v3429, 0.0
      %v3471 = vadd.f32 %v3469, %v3470
      %v3472 = vsel %vm1622, %v3430, 0.0
      %v3473 = vadd.f32 %v3471, %v3472
      %v3474 = vsel %vm1622, %v3431, 0.0
      %v3475 = vadd.f32 %v3473, %v3474
      %v3476 = vsel %vm1622, %v3432, 0.0
      %v3477 = vadd.f32 %v3475, %v3476
      %v3478 = vsel %vm1622, %v3433, 0.0
      %v3479 = vadd.f32 %v3477, %v3478
      %v3480 = vsel %vm1622, %v3434, 0.0
      %v3481 = vadd.f32 %v3479, %v3480
      %v3482 = vsel %vm1622, %v3435, 0.0
      %v3483 = vadd.f32 %v3481, %v3482
      %v3484 = vsel %vm1622, %v3436, 0.0
      %v3485 = vadd.f32 %v3483, %v3484
      %v3486 = vsel %vm1622, %v3437, 0.0
      %v3487 = vadd.f32 %v3485, %v3486
      %v3488 = vsel %vm1622, %v3438, 0.0
      %v3489 = vadd.f32 %v3487, %v3488
      %v3490 = vsel %vm1622, %v3439, 0.0
      %v3491 = vadd.f32 %v3489, %v3490
      %v3492 = vsel %vm1622, %v3440, 0.0
      %v3493 = vadd.f32 %v3491, %v3492
      %v3494 = vsel %vm1622, %v3441, 0.0
      %v3495 = vadd.f32 %v3493, %v3494
      %v3496 = vsel %vm1622, %v3442, 0.0
      %v3497 = vadd.f32 %v3495, %v3496
      %v3498 = vsel %vm1622, %v3443, 0.0
      %v3499 = vadd.f32 %v3497, %v3498
      %v3500 = vsel %vm1622, %v3444, 0.0
      %v3501 = vadd.f32 %v3499, %v3500
      %v3502 = vsel %vm1622, %v3445, 0.0
      %v3503 = vadd.f32 %v3501, %v3502
      %v3504 = vsel %vm1622, %v3446, 0.0
      %v3505 = vadd.f32 %v3503, %v3504
      %v3506 = vsel %vm1622, %v3447, 0.0
      %v3507 = vadd.f32 %v3505, %v3506
      %v3508 = vsel %vm1622, %v3448, 0.0
      %v3509 = vadd.f32 %v3507, %v3508
      %v3510 = vsel %vm1622, %v3449, 0.0
      %v3511 = vadd.f32 %v3509, %v3510
      %v3512 = vsel %vm1622, %v3450, 0.0
      %v3513 = vadd.f32 %v3511, %v3512
      %3514 = vadd.xlane.f32.xlu0 %v3513
      %v3515 = vpop.xlane.xlu0 %3514
      %v3516 = vrot.slane %v3515, 4
      %v3517 = vadd.f32 %v3515, %v3516
      %v3518 = vrot.slane %v3517, 2
      %v3519 = vadd.f32 %v3517, %v3518
      %v3520 = vrot.slane %v3519, 1
      %v3521 = vadd.f32 %v3519, %v3520
      %s3522 = vtos %v3521
      %v3523 = vstv %s3522
      %3524 = vst [vmem:[%s415] sm:$0x1] %v3523
      %v3557 = vrot.slane %v2971, 7
      %v3558 = vrot.slane %v2972, 7
      %v3559 = vsel %vm481, %v3557, %v3558
      %v3560 = vrot.slane %v2973, 7
      %v3561 = vrot.slane %v2974, 7
      %v3562 = vsel %vm481, %v3560, %v3561
      %v3563 = vrot.slane %v2975, 7
      %v3564 = vrot.slane %v2976, 7
      %v3565 = vsel %vm481, %v3563, %v3564
      %v3566 = vrot.slane %v2977, 7
      %v3567 = vrot.slane %v2978, 7
      %v3568 = vsel %vm481, %v3566, %v3567
      %v3569 = vrot.slane %v2979, 7
      %v3570 = vrot.slane %v2980, 7
      %v3571 = vsel %vm481, %v3569, %v3570
      %v3572 = vrot.slane %v2981, 7
      %v3573 = vrot.slane %v2982, 7
      %v3574 = vsel %vm481, %v3572, %v3573
      %v3575 = vrot.slane %v2983, 7
      %v3576 = vrot.slane %v2984, 7
      %v3577 = vsel %vm481, %v3575, %v3576
      %v3578 = vrot.slane %v2985, 7
      %v3579 = vrot.slane %v2986, 7
      %v3580 = vsel %vm481, %v3578, %v3579
      %v3581 = vrot.slane %v2987, 7
      %v3582 = vrot.slane %v2988, 7
      %v3583 = vsel %vm481, %v3581, %v3582
      %v3584 = vrot.slane %v2989, 7
      %v3585 = vrot.slane %v2990, 7
      %v3586 = vsel %vm481, %v3584, %v3585
      %v3587 = vrot.slane %v2991, 7
      %v3588 = vrot.slane %v2992, 7
      %v3589 = vsel %vm481, %v3587, %v3588
      %v3590 = vrot.slane %v2993, 7
      %v3591 = vrot.slane %v2994, 7
      %v3592 = vsel %vm481, %v3590, %v3591
      %v3593 = vrot.slane %v2995, 7
      %v3594 = vrot.slane %v2996, 7
      %v3595 = vsel %vm481, %v3593, %v3594
      %v3596 = vrot.slane %v2997, 7
      %v3597 = vrot.slane %v2998, 7
      %v3598 = vsel %vm481, %v3596, %v3597
      %v3599 = vrot.slane %v2999, 7
      %v3600 = vrot.slane %v3000, 7
      %v3601 = vsel %vm481, %v3599, %v3600
      %v3602 = vrot.slane %v3001, 7
      %v3603 = vrot.slane %v3002, 7
      %v3604 = vsel %vm481, %v3602, %v3603
      %v3652 = vsel %vm481, 0.0, %v3557
      %v3653 = vsel %vm481, 0.0, %v3560
      %v3654 = vsel %vm481, 0.0, %v3563
      %v3655 = vsel %vm481, 0.0, %v3566
      %v3656 = vsel %vm481, 0.0, %v3569
      %v3657 = vsel %vm481, 0.0, %v3572
      %v3658 = vsel %vm481, 0.0, %v3575
      %v3659 = vsel %vm481, 0.0, %v3578
      %v3660 = vsel %vm481, 0.0, %v3581
      %v3661 = vsel %vm481, 0.0, %v3584
      %v3662 = vsel %vm481, 0.0, %v3587
      %v3663 = vsel %vm481, 0.0, %v3590
      %v3664 = vsel %vm481, 0.0, %v3593
      %v3665 = vsel %vm481, 0.0, %v3596
      %v3666 = vsel %vm481, 0.0, %v3599
      %v3667 = vsel %vm481, 0.0, %v3602
      %v3668 = vsel %vm481, %v3558, 0.0
      %v3669 = vsel %vm481, %v3561, 0.0
      %v3670 = vsel %vm481, %v3564, 0.0
      %v3671 = vsel %vm481, %v3567, 0.0
      %v3672 = vsel %vm481, %v3570, 0.0
      %v3673 = vsel %vm481, %v3573, 0.0
      %v3674 = vsel %vm481, %v3576, 0.0
      %v3675 = vsel %vm481, %v3579, 0.0
      %v3676 = vsel %vm481, %v3582, 0.0
      %v3677 = vsel %vm481, %v3585, 0.0
      %v3678 = vsel %vm481, %v3588, 0.0
      %v3679 = vsel %vm481, %v3591, 0.0
      %v3680 = vsel %vm481, %v3594, 0.0
      %v3681 = vsel %vm481, %v3597, 0.0
      %v3682 = vsel %vm481, %v3600, 0.0
      %v3683 = vsel %vm481, %v3603, 0.0
      %v3714 = vrot.slane %v3652, 1
      %v3715 = vrot.slane %v3559, 1
      %v3716 = vsel %vm647, %v3714, %v3715
      %v3717 = vrot.slane %v3668, 1
      %v3718 = vsel %vm647, %v3715, %v3717
      %v3719 = vrot.slane %v3653, 1
      %v3720 = vrot.slane %v3562, 1
      %v3721 = vsel %vm647, %v3719, %v3720
      %v3722 = vrot.slane %v3669, 1
      %v3723 = vsel %vm647, %v3720, %v3722
      %v3724 = vrot.slane %v3654, 1
      %v3725 = vrot.slane %v3565, 1
      %v3726 = vsel %vm647, %v3724, %v3725
      %v3727 = vrot.slane %v3670, 1
      %v3728 = vsel %vm647, %v3725, %v3727
      %v3729 = vrot.slane %v3655, 1
      %v3730 = vrot.slane %v3568, 1
      %v3731 = vsel %vm647, %v3729, %v3730
      %v3732 = vrot.slane %v3671, 1
      %v3733 = vsel %vm647, %v3730, %v3732
      %v3734 = vrot.slane %v3656, 1
      %v3735 = vrot.slane %v3571, 1
      %v3736 = vsel %vm647, %v3734, %v3735
      %v3737 = vrot.slane %v3672, 1
      %v3738 = vsel %vm647, %v3735, %v3737
      %v3739 = vrot.slane %v3657, 1
      %v3740 = vrot.slane %v3574, 1
      %v3741 = vsel %vm647, %v3739, %v3740
      %v3742 = vrot.slane %v3673, 1
      %v3743 = vsel %vm647, %v3740, %v3742
      %v3744 = vrot.slane %v3658, 1
      %v3745 = vrot.slane %v3577, 1
      %v3746 = vsel %vm647, %v3744, %v3745
      %v3747 = vrot.slane %v3674, 1
      %v3748 = vsel %vm647, %v3745, %v3747
      %v3749 = vrot.slane %v3659, 1
      %v3750 = vrot.slane %v3580, 1
      %v3751 = vsel %vm647, %v3749, %v3750
      %v3752 = vrot.slane %v3675, 1
      %v3753 = vsel %vm647, %v3750, %v3752
      %v3754 = vrot.slane %v3660, 1
      %v3755 = vrot.slane %v3583, 1
      %v3756 = vsel %vm647, %v3754, %v3755
      %v3757 = vrot.slane %v3676, 1
      %v3758 = vsel %vm647, %v3755, %v3757
      %v3759 = vrot.slane %v3661, 1
      %v3760 = vrot.slane %v3586, 1
      %v3761 = vsel %vm647, %v3759, %v3760
      %v3762 = vrot.slane %v3677, 1
      %v3763 = vsel %vm647, %v3760, %v3762
      %v3764 = vrot.slane %v3662, 1
      %v3765 = vrot.slane %v3589, 1
      %v3766 = vsel %vm647, %v3764, %v3765
      %v3767 = vrot.slane %v3678, 1
      %v3768 = vsel %vm647, %v3765, %v3767
      %v3769 = vrot.slane %v3663, 1
      %v3770 = vrot.slane %v3592, 1
      %v3771 = vsel %vm647, %v3769, %v3770
      %v3772 = vrot.slane %v3679, 1
      %v3773 = vsel %vm647, %v3770, %v3772
      %v3774 = vrot.slane %v3664, 1
      %v3775 = vrot.slane %v3595, 1
      %v3776 = vsel %vm647, %v3774, %v3775
      %v3777 = vrot.slane %v3680, 1
      %v3778 = vsel %vm647, %v3775, %v3777
      %v3779 = vrot.slane %v3665, 1
      %v3780 = vrot.slane %v3598, 1
      %v3781 = vsel %vm647, %v3779, %v3780
      %v3782 = vrot.slane %v3681, 1
      %v3783 = vsel %vm647, %v3780, %v3782
      %v3784 = vrot.slane %v3666, 1
      %v3785 = vrot.slane %v3601, 1
      %v3786 = vsel %vm647, %v3784, %v3785
      %v3787 = vrot.slane %v3682, 1
      %v3788 = vsel %vm647, %v3785, %v3787
      %v3789 = vrot.slane %v3652, 2
      %v3790 = vrot.slane %v3559, 2
      %v3791 = vsel %vm728, %v3789, %v3790
      %v3792 = vrot.slane %v3668, 2
      %v3793 = vsel %vm728, %v3790, %v3792
      %v3794 = vrot.slane %v3653, 2
      %v3795 = vrot.slane %v3562, 2
      %v3796 = vsel %vm728, %v3794, %v3795
      %v3797 = vrot.slane %v3669, 2
      %v3798 = vsel %vm728, %v3795, %v3797
      %v3799 = vrot.slane %v3654, 2
      %v3800 = vrot.slane %v3565, 2
      %v3801 = vsel %vm728, %v3799, %v3800
      %v3802 = vrot.slane %v3670, 2
      %v3803 = vsel %vm728, %v3800, %v3802
      %v3804 = vrot.slane %v3655, 2
      %v3805 = vrot.slane %v3568, 2
      %v3806 = vsel %vm728, %v3804, %v3805
      %v3807 = vrot.slane %v3671, 2
      %v3808 = vsel %vm728, %v3805, %v3807
      %v3809 = vrot.slane %v3656, 2
      %v3810 = vrot.slane %v3571, 2
      %v3811 = vsel %vm728, %v3809, %v3810
      %v3812 = vrot.slane %v3672, 2
      %v3813 = vsel %vm728, %v3810, %v3812
      %v3814 = vrot.slane %v3657, 2
      %v3815 = vrot.slane %v3574, 2
      %v3816 = vsel %vm728, %v3814, %v3815
      %v3817 = vrot.slane %v3673, 2
      %v3818 = vsel %vm728, %v3815, %v3817
      %v3819 = vrot.slane %v3658, 2
      %v3820 = vrot.slane %v3577, 2
      %v3821 = vsel %vm728, %v3819, %v3820
      %v3822 = vrot.slane %v3674, 2
      %v3823 = vsel %vm728, %v3820, %v3822
      %v3824 = vrot.slane %v3659, 2
      %v3825 = vrot.slane %v3580, 2
      %v3826 = vsel %vm728, %v3824, %v3825
      %v3827 = vrot.slane %v3675, 2
      %v3828 = vsel %vm728, %v3825, %v3827
      %v3829 = vrot.slane %v3660, 2
      %v3830 = vrot.slane %v3583, 2
      %v3831 = vsel %vm728, %v3829, %v3830
      %v3832 = vrot.slane %v3676, 2
      %v3833 = vsel %vm728, %v3830, %v3832
      %v3834 = vrot.slane %v3661, 2
      %v3835 = vrot.slane %v3586, 2
      %v3836 = vsel %vm728, %v3834, %v3835
      %v3837 = vrot.slane %v3677, 2
      %v3838 = vsel %vm728, %v3835, %v3837
      %v3839 = vrot.slane %v3662, 2
      %v3840 = vrot.slane %v3589, 2
      %v3841 = vsel %vm728, %v3839, %v3840
      %v3842 = vrot.slane %v3678, 2
      %v3843 = vsel %vm728, %v3840, %v3842
      %v3844 = vrot.slane %v3663, 2
      %v3845 = vrot.slane %v3592, 2
      %v3846 = vsel %vm728, %v3844, %v3845
      %v3847 = vrot.slane %v3679, 2
      %v3848 = vsel %vm728, %v3845, %v3847
      %v3849 = vrot.slane %v3664, 2
      %v3850 = vrot.slane %v3595, 2
      %v3851 = vsel %vm728, %v3849, %v3850
      %v3852 = vrot.slane %v3680, 2
      %v3853 = vsel %vm728, %v3850, %v3852
      %v3854 = vrot.slane %v3665, 2
      %v3855 = vrot.slane %v3598, 2
      %v3856 = vsel %vm728, %v3854, %v3855
      %v3857 = vrot.slane %v3681, 2
      %v3858 = vsel %vm728, %v3855, %v3857
      %v3859 = vrot.slane %v3666, 2
      %v3860 = vrot.slane %v3601, 2
      %v3861 = vsel %vm728, %v3859, %v3860
      %v3862 = vrot.slane %v3682, 2
      %v3863 = vsel %vm728, %v3860, %v3862
      %v3866 = vrot.slane %v3667, 1
      %v3867 = vrot.slane %v3604, 1
      %v3868 = vsel %vm647, %v3866, %v3867
      %v3869 = vrot.slane %v3683, 1
      %v3870 = vsel %vm647, %v3867, %v3869
      %v3871 = vrot.slane %v3667, 2
      %v3872 = vrot.slane %v3604, 2
      %v3873 = vsel %vm728, %v3871, %v3872
      %v3874 = vrot.slane %v3683, 2
      %v3875 = vsel %vm728, %v3872, %v3874
      %3876 = vrot.lane.b32.xlu0 %v650, 8
      %v3877 = vpop.permute.xlu0 %3876
      %3878 = vrot.lane.b32.xlu0 %v652, 8
      %v3879 = vpop.permute.xlu0 %3878
      %3880 = vrot.lane.b32.xlu0 %v3716, 8
      %v3881 = vpop.permute.xlu0 %3880
      %3882 = vrot.lane.b32.xlu0 %v3718, 8
      %v3883 = vpop.permute.xlu0 %3882
      %3884 = vrot.lane.b32.xlu0 %v3721, 8
      %v3885 = vpop.permute.xlu0 %3884
      %3886 = vrot.lane.b32.xlu0 %v3723, 8
      %v3887 = vpop.permute.xlu0 %3886
      %3888 = vrot.lane.b32.xlu0 %v3726, 8
      %v3889 = vpop.permute.xlu0 %3888
      %3890 = vrot.lane.b32.xlu0 %v3728, 8
      %v3891 = vpop.permute.xlu0 %3890
      %3892 = vrot.lane.b32.xlu0 %v3731, 8
      %v3893 = vpop.permute.xlu0 %3892
      %3894 = vrot.lane.b32.xlu0 %v3733, 8
      %v3895 = vpop.permute.xlu0 %3894
      %3896 = vrot.lane.b32.xlu0 %v3736, 8
      %v3897 = vpop.permute.xlu0 %3896
      %3898 = vrot.lane.b32.xlu0 %v3738, 8
      %v3899 = vpop.permute.xlu0 %3898
      %3900 = vrot.lane.b32.xlu0 %v3741, 8
      %v3901 = vpop.permute.xlu0 %3900
      %3902 = vrot.lane.b32.xlu0 %v3743, 8
      %v3903 = vpop.permute.xlu0 %3902
      %3904 = vrot.lane.b32.xlu0 %v3746, 8
      %v3905 = vpop.permute.xlu0 %3904
      %3906 = vrot.lane.b32.xlu0 %v3748, 8
      %v3907 = vpop.permute.xlu0 %3906
      %3908 = vrot.lane.b32.xlu0 %v3751, 8
      %v3909 = vpop.permute.xlu0 %3908
      %3910 = vrot.lane.b32.xlu0 %v3753, 8
      %v3911 = vpop.permute.xlu0 %3910
      %3912 = vrot.lane.b32.xlu0 %v3756, 8
      %v3913 = vpop.permute.xlu0 %3912
      %3914 = vrot.lane.b32.xlu0 %v3758, 8
      %v3915 = vpop.permute.xlu0 %3914
      %3916 = vrot.lane.b32.xlu0 %v3761, 8
      %v3917 = vpop.permute.xlu0 %3916
      %3918 = vrot.lane.b32.xlu0 %v3763, 8
      %v3919 = vpop.permute.xlu0 %3918
      %3920 = vrot.lane.b32.xlu0 %v3766, 8
      %v3921 = vpop.permute.xlu0 %3920
      %3922 = vrot.lane.b32.xlu0 %v3768, 8
      %v3923 = vpop.permute.xlu0 %3922
      %3924 = vrot.lane.b32.xlu0 %v3771, 8
      %v3925 = vpop.permute.xlu0 %3924
      %3926 = vrot.lane.b32.xlu0 %v3773, 8
      %v3927 = vpop.permute.xlu0 %3926
      %3928 = vrot.lane.b32.xlu0 %v3776, 8
      %v3929 = vpop.permute.xlu0 %3928
      %3930 = vrot.lane.b32.xlu0 %v3778, 8
      %v3931 = vpop.permute.xlu0 %3930
      %3932 = vrot.lane.b32.xlu0 %v3781, 8
      %v3933 = vpop.permute.xlu0 %3932
      %3934 = vrot.lane.b32.xlu0 %v3783, 8
      %v3935 = vpop.permute.xlu0 %3934
      %3936 = vrot.lane.b32.xlu0 %v3786, 8
      %v3937 = vpop.permute.xlu0 %3936
      %3938 = vrot.lane.b32.xlu0 %v3788, 8
      %v3939 = vpop.permute.xlu0 %3938
      %3972 = vrot.lane.b32.xlu0 %v731, 16
      %v3973 = vpop.permute.xlu0 %3972
      %3974 = vrot.lane.b32.xlu0 %v733, 16
      %v3975 = vpop.permute.xlu0 %3974
      %3976 = vrot.lane.b32.xlu0 %v3791, 16
      %v3977 = vpop.permute.xlu0 %3976
      %3978 = vrot.lane.b32.xlu0 %v3793, 16
      %v3979 = vpop.permute.xlu0 %3978
      %3980 = vrot.lane.b32.xlu0 %v3796, 16
      %v3981 = vpop.permute.xlu0 %3980
      %3982 = vrot.lane.b32.xlu0 %v3798, 16
      %v3983 = vpop.permute.xlu0 %3982
      %3984 = vrot.lane.b32.xlu0 %v3801, 16
      %v3985 = vpop.permute.xlu0 %3984
      %3986 = vrot.lane.b32.xlu0 %v3803, 16
      %v3987 = vpop.permute.xlu0 %3986
      %3988 = vrot.lane.b32.xlu0 %v3806, 16
      %v3989 = vpop.permute.xlu0 %3988
      %3990 = vrot.lane.b32.xlu0 %v3808, 16
      %v3991 = vpop.permute.xlu0 %3990
      %3992 = vrot.lane.b32.xlu0 %v3811, 16
      %v3993 = vpop.permute.xlu0 %3992
      %3994 = vrot.lane.b32.xlu0 %v3813, 16
      %v3995 = vpop.permute.xlu0 %3994
      %3996 = vrot.lane.b32.xlu0 %v3816, 16
      %v3997 = vpop.permute.xlu0 %3996
      %3998 = vrot.lane.b32.xlu0 %v3818, 16
      %v3999 = vpop.permute.xlu0 %3998
      %4000 = vrot.lane.b32.xlu0 %v3821, 16
      %v4001 = vpop.permute.xlu0 %4000
      %4002 = vrot.lane.b32.xlu0 %v3823, 16
      %v4003 = vpop.permute.xlu0 %4002
      %4004 = vrot.lane.b32.xlu0 %v3826, 16
      %v4005 = vpop.permute.xlu0 %4004
      %4006 = vrot.lane.b32.xlu0 %v3828, 16
      %v4007 = vpop.permute.xlu0 %4006
      %4008 = vrot.lane.b32.xlu0 %v3831, 16
      %v4009 = vpop.permute.xlu0 %4008
      %4010 = vrot.lane.b32.xlu0 %v3833, 16
      %v4011 = vpop.permute.xlu0 %4010
      %4012 = vrot.lane.b32.xlu0 %v3836, 16
      %v4013 = vpop.permute.xlu0 %4012
      %4014 = vrot.lane.b32.xlu0 %v3838, 16
      %v4015 = vpop.permute.xlu0 %4014
      %4016 = vrot.lane.b32.xlu0 %v3841, 16
      %v4017 = vpop.permute.xlu0 %4016
      %4018 = vrot.lane.b32.xlu0 %v3843, 16
      %v4019 = vpop.permute.xlu0 %4018
      %4020 = vrot.lane.b32.xlu0 %v3846, 16
      %v4021 = vpop.permute.xlu0 %4020
      %4022 = vrot.lane.b32.xlu0 %v3848, 16
      %v4023 = vpop.permute.xlu0 %4022
      %4024 = vrot.lane.b32.xlu0 %v3851, 16
      %v4025 = vpop.permute.xlu0 %4024
      %4026 = vrot.lane.b32.xlu0 %v3853, 16
      %v4027 = vpop.permute.xlu0 %4026
      %4028 = vrot.lane.b32.xlu0 %v3856, 16
      %v4029 = vpop.permute.xlu0 %4028
      %4030 = vrot.lane.b32.xlu0 %v3858, 16
      %v4031 = vpop.permute.xlu0 %4030
      %4032 = vrot.lane.b32.xlu0 %v3861, 16
      %v4033 = vpop.permute.xlu0 %4032
      %4034 = vrot.lane.b32.xlu0 %v3863, 16
      %v4035 = vpop.permute.xlu0 %4034
      %4068 = vrot.lane.b32.xlu0 %v3652, 24
      %v4069 = vpop.permute.xlu0 %4068
      %4070 = vrot.lane.b32.xlu0 %v3559, 24
      %v4071 = vpop.permute.xlu0 %4070
      %4072 = vrot.lane.b32.xlu0 %v3653, 24
      %v4073 = vpop.permute.xlu0 %4072
      %4074 = vrot.lane.b32.xlu0 %v3562, 24
      %v4075 = vpop.permute.xlu0 %4074
      %4076 = vrot.lane.b32.xlu0 %v3654, 24
      %v4077 = vpop.permute.xlu0 %4076
      %4078 = vrot.lane.b32.xlu0 %v3565, 24
      %v4079 = vpop.permute.xlu0 %4078
      %4080 = vrot.lane.b32.xlu0 %v3655, 24
      %v4081 = vpop.permute.xlu0 %4080
      %4082 = vrot.lane.b32.xlu0 %v3568, 24
      %v4083 = vpop.permute.xlu0 %4082
      %4084 = vrot.lane.b32.xlu0 %v3656, 24
      %v4085 = vpop.permute.xlu0 %4084
      %4086 = vrot.lane.b32.xlu0 %v3571, 24
      %v4087 = vpop.permute.xlu0 %4086
      %4088 = vrot.lane.b32.xlu0 %v3657, 24
      %v4089 = vpop.permute.xlu0 %4088
      %4090 = vrot.lane.b32.xlu0 %v3574, 24
      %v4091 = vpop.permute.xlu0 %4090
      %4092 = vrot.lane.b32.xlu0 %v3658, 24
      %v4093 = vpop.permute.xlu0 %4092
      %4094 = vrot.lane.b32.xlu0 %v3577, 24
      %v4095 = vpop.permute.xlu0 %4094
      %4096 = vrot.lane.b32.xlu0 %v3659, 24
      %v4097 = vpop.permute.xlu0 %4096
      %4098 = vrot.lane.b32.xlu0 %v3580, 24
      %v4099 = vpop.permute.xlu0 %4098
      %4100 = vrot.lane.b32.xlu0 %v3660, 24
      %v4101 = vpop.permute.xlu0 %4100
      %4102 = vrot.lane.b32.xlu0 %v3583, 24
      %v4103 = vpop.permute.xlu0 %4102
      %4104 = vrot.lane.b32.xlu0 %v3661, 24
      %v4105 = vpop.permute.xlu0 %4104
      %4106 = vrot.lane.b32.xlu0 %v3586, 24
      %v4107 = vpop.permute.xlu0 %4106
      %4108 = vrot.lane.b32.xlu0 %v3662, 24
      %v4109 = vpop.permute.xlu0 %4108
      %4110 = vrot.lane.b32.xlu0 %v3589, 24
      %v4111 = vpop.permute.xlu0 %4110
      %4112 = vrot.lane.b32.xlu0 %v3663, 24
      %v4113 = vpop.permute.xlu0 %4112
      %4114 = vrot.lane.b32.xlu0 %v3592, 24
      %v4115 = vpop.permute.xlu0 %4114
      %4116 = vrot.lane.b32.xlu0 %v3664, 24
      %v4117 = vpop.permute.xlu0 %4116
      %4118 = vrot.lane.b32.xlu0 %v3595, 24
      %v4119 = vpop.permute.xlu0 %4118
      %4120 = vrot.lane.b32.xlu0 %v3665, 24
      %v4121 = vpop.permute.xlu0 %4120
      %4122 = vrot.lane.b32.xlu0 %v3598, 24
      %v4123 = vpop.permute.xlu0 %4122
      %4124 = vrot.lane.b32.xlu0 %v3666, 24
      %v4125 = vpop.permute.xlu0 %4124
      %4126 = vrot.lane.b32.xlu0 %v3601, 24
      %v4127 = vpop.permute.xlu0 %4126
      %4128 = vrot.lane.b32.xlu0 %v3667, 24
      %v4129 = vpop.permute.xlu0 %4128
      %4130 = vrot.lane.b32.xlu0 %v3604, 24
      %v4131 = vpop.permute.xlu0 %4130
      %4164 = vrot.lane.b32.xlu0 %v3716, 32
      %v4165 = vpop.permute.xlu0 %4164
      %4166 = vrot.lane.b32.xlu0 %v3718, 32
      %v4167 = vpop.permute.xlu0 %4166
      %4168 = vrot.lane.b32.xlu0 %v3721, 32
      %v4169 = vpop.permute.xlu0 %4168
      %4170 = vrot.lane.b32.xlu0 %v3723, 32
      %v4171 = vpop.permute.xlu0 %4170
      %4172 = vrot.lane.b32.xlu0 %v3726, 32
      %v4173 = vpop.permute.xlu0 %4172
      %4174 = vrot.lane.b32.xlu0 %v3728, 32
      %v4175 = vpop.permute.xlu0 %4174
      %4176 = vrot.lane.b32.xlu0 %v3731, 32
      %v4177 = vpop.permute.xlu0 %4176
      %4178 = vrot.lane.b32.xlu0 %v3733, 32
      %v4179 = vpop.permute.xlu0 %4178
      %4180 = vrot.lane.b32.xlu0 %v3736, 32
      %v4181 = vpop.permute.xlu0 %4180
      %4182 = vrot.lane.b32.xlu0 %v3738, 32
      %v4183 = vpop.permute.xlu0 %4182
      %4184 = vrot.lane.b32.xlu0 %v3741, 32
      %v4185 = vpop.permute.xlu0 %4184
      %4186 = vrot.lane.b32.xlu0 %v3743, 32
      %v4187 = vpop.permute.xlu0 %4186
      %4188 = vrot.lane.b32.xlu0 %v3746, 32
      %v4189 = vpop.permute.xlu0 %4188
      %4190 = vrot.lane.b32.xlu0 %v3748, 32
      %v4191 = vpop.permute.xlu0 %4190
      %4192 = vrot.lane.b32.xlu0 %v3751, 32
      %v4193 = vpop.permute.xlu0 %4192
      %4194 = vrot.lane.b32.xlu0 %v3753, 32
      %v4195 = vpop.permute.xlu0 %4194
      %4196 = vrot.lane.b32.xlu0 %v3756, 32
      %v4197 = vpop.permute.xlu0 %4196
      %4198 = vrot.lane.b32.xlu0 %v3758, 32
      %v4199 = vpop.permute.xlu0 %4198
      %4200 = vrot.lane.b32.xlu0 %v3761, 32
      %v4201 = vpop.permute.xlu0 %4200
      %4202 = vrot.lane.b32.xlu0 %v3763, 32
      %v4203 = vpop.permute.xlu0 %4202
      %4204 = vrot.lane.b32.xlu0 %v3766, 32
      %v4205 = vpop.permute.xlu0 %4204
      %4206 = vrot.lane.b32.xlu0 %v3768, 32
      %v4207 = vpop.permute.xlu0 %4206
      %4208 = vrot.lane.b32.xlu0 %v3771, 32
      %v4209 = vpop.permute.xlu0 %4208
      %4210 = vrot.lane.b32.xlu0 %v3773, 32
      %v4211 = vpop.permute.xlu0 %4210
      %4212 = vrot.lane.b32.xlu0 %v3776, 32
      %v4213 = vpop.permute.xlu0 %4212
      %4214 = vrot.lane.b32.xlu0 %v3778, 32
      %v4215 = vpop.permute.xlu0 %4214
      %4216 = vrot.lane.b32.xlu0 %v3781, 32
      %v4217 = vpop.permute.xlu0 %4216
      %4218 = vrot.lane.b32.xlu0 %v3783, 32
      %v4219 = vpop.permute.xlu0 %4218
      %4220 = vrot.lane.b32.xlu0 %v3786, 32
      %v4221 = vpop.permute.xlu0 %4220
      %4222 = vrot.lane.b32.xlu0 %v3788, 32
      %v4223 = vpop.permute.xlu0 %4222
      %4224 = vrot.lane.b32.xlu0 %v3868, 32
      %v4225 = vpop.permute.xlu0 %4224
      %4226 = vrot.lane.b32.xlu0 %v3870, 32
      %v4227 = vpop.permute.xlu0 %4226
      %4260 = vrot.lane.b32.xlu0 %v3791, 40
      %v4261 = vpop.permute.xlu0 %4260
      %4262 = vrot.lane.b32.xlu0 %v3793, 40
      %v4263 = vpop.permute.xlu0 %4262
      %4264 = vrot.lane.b32.xlu0 %v3796, 40
      %v4265 = vpop.permute.xlu0 %4264
      %4266 = vrot.lane.b32.xlu0 %v3798, 40
      %v4267 = vpop.permute.xlu0 %4266
      %4268 = vrot.lane.b32.xlu0 %v3801, 40
      %v4269 = vpop.permute.xlu0 %4268
      %4270 = vrot.lane.b32.xlu0 %v3803, 40
      %v4271 = vpop.permute.xlu0 %4270
      %4272 = vrot.lane.b32.xlu0 %v3806, 40
      %v4273 = vpop.permute.xlu0 %4272
      %4274 = vrot.lane.b32.xlu0 %v3808, 40
      %v4275 = vpop.permute.xlu0 %4274
      %4276 = vrot.lane.b32.xlu0 %v3811, 40
      %v4277 = vpop.permute.xlu0 %4276
      %4278 = vrot.lane.b32.xlu0 %v3813, 40
      %v4279 = vpop.permute.xlu0 %4278
      %4280 = vrot.lane.b32.xlu0 %v3816, 40
      %v4281 = vpop.permute.xlu0 %4280
      %4282 = vrot.lane.b32.xlu0 %v3818, 40
      %v4283 = vpop.permute.xlu0 %4282
      %4284 = vrot.lane.b32.xlu0 %v3821, 40
      %v4285 = vpop.permute.xlu0 %4284
      %4286 = vrot.lane.b32.xlu0 %v3823, 40
      %v4287 = vpop.permute.xlu0 %4286
      %4288 = vrot.lane.b32.xlu0 %v3826, 40
      %v4289 = vpop.permute.xlu0 %4288
      %4290 = vrot.lane.b32.xlu0 %v3828, 40
      %v4291 = vpop.permute.xlu0 %4290
      %4292 = vrot.lane.b32.xlu0 %v3831, 40
      %v4293 = vpop.permute.xlu0 %4292
      %4294 = vrot.lane.b32.xlu0 %v3833, 40
      %v4295 = vpop.permute.xlu0 %4294
      %4296 = vrot.lane.b32.xlu0 %v3836, 40
      %v4297 = vpop.permute.xlu0 %4296
      %4298 = vrot.lane.b32.xlu0 %v3838, 40
      %v4299 = vpop.permute.xlu0 %4298
      %4300 = vrot.lane.b32.xlu0 %v3841, 40
      %v4301 = vpop.permute.xlu0 %4300
      %4302 = vrot.lane.b32.xlu0 %v3843, 40
      %v4303 = vpop.permute.xlu0 %4302
      %4304 = vrot.lane.b32.xlu0 %v3846, 40
      %v4305 = vpop.permute.xlu0 %4304
      %4306 = vrot.lane.b32.xlu0 %v3848, 40
      %v4307 = vpop.permute.xlu0 %4306
      %4308 = vrot.lane.b32.xlu0 %v3851, 40
      %v4309 = vpop.permute.xlu0 %4308
      %4310 = vrot.lane.b32.xlu0 %v3853, 40
      %v4311 = vpop.permute.xlu0 %4310
      %4312 = vrot.lane.b32.xlu0 %v3856, 40
      %v4313 = vpop.permute.xlu0 %4312
      %4314 = vrot.lane.b32.xlu0 %v3858, 40
      %v4315 = vpop.permute.xlu0 %4314
      %4316 = vrot.lane.b32.xlu0 %v3861, 40
      %v4317 = vpop.permute.xlu0 %4316
      %4318 = vrot.lane.b32.xlu0 %v3863, 40
      %v4319 = vpop.permute.xlu0 %4318
      %4320 = vrot.lane.b32.xlu0 %v3873, 40
      %v4321 = vpop.permute.xlu0 %4320
      %4322 = vrot.lane.b32.xlu0 %v3875, 40
      %v4323 = vpop.permute.xlu0 %4322
      %4356 = vrot.lane.b32.xlu0 %v3653, 48
      %v4357 = vpop.permute.xlu0 %4356
      %4358 = vrot.lane.b32.xlu0 %v3562, 48
      %v4359 = vpop.permute.xlu0 %4358
      %4360 = vrot.lane.b32.xlu0 %v3654, 48
      %v4361 = vpop.permute.xlu0 %4360
      %4362 = vrot.lane.b32.xlu0 %v3565, 48
      %v4363 = vpop.permute.xlu0 %4362
      %4364 = vrot.lane.b32.xlu0 %v3655, 48
      %v4365 = vpop.permute.xlu0 %4364
      %4366 = vrot.lane.b32.xlu0 %v3568, 48
      %v4367 = vpop.permute.xlu0 %4366
      %4368 = vrot.lane.b32.xlu0 %v3656, 48
      %v4369 = vpop.permute.xlu0 %4368
      %4370 = vrot.lane.b32.xlu0 %v3571, 48
      %v4371 = vpop.permute.xlu0 %4370
      %4372 = vrot.lane.b32.xlu0 %v3657, 48
      %v4373 = vpop.permute.xlu0 %4372
      %4374 = vrot.lane.b32.xlu0 %v3574, 48
      %v4375 = vpop.permute.xlu0 %4374
      %4376 = vrot.lane.b32.xlu0 %v3658, 48
      %v4377 = vpop.permute.xlu0 %4376
      %4378 = vrot.lane.b32.xlu0 %v3577, 48
      %v4379 = vpop.permute.xlu0 %4378
      %4380 = vrot.lane.b32.xlu0 %v3659, 48
      %v4381 = vpop.permute.xlu0 %4380
      %4382 = vrot.lane.b32.xlu0 %v3580, 48
      %v4383 = vpop.permute.xlu0 %4382
      %4384 = vrot.lane.b32.xlu0 %v3660, 48
      %v4385 = vpop.permute.xlu0 %4384
      %4386 = vrot.lane.b32.xlu0 %v3583, 48
      %v4387 = vpop.permute.xlu0 %4386
      %4388 = vrot.lane.b32.xlu0 %v3661, 48
      %v4389 = vpop.permute.xlu0 %4388
      %4390 = vrot.lane.b32.xlu0 %v3586, 48
      %v4391 = vpop.permute.xlu0 %4390
      %4392 = vrot.lane.b32.xlu0 %v3662, 48
      %v4393 = vpop.permute.xlu0 %4392
      %4394 = vrot.lane.b32.xlu0 %v3589, 48
      %v4395 = vpop.permute.xlu0 %4394
      %4396 = vrot.lane.b32.xlu0 %v3663, 48
      %v4397 = vpop.permute.xlu0 %4396
      %4398 = vrot.lane.b32.xlu0 %v3592, 48
      %v4399 = vpop.permute.xlu0 %4398
      %4400 = vrot.lane.b32.xlu0 %v3664, 48
      %v4401 = vpop.permute.xlu0 %4400
      %4402 = vrot.lane.b32.xlu0 %v3595, 48
      %v4403 = vpop.permute.xlu0 %4402
      %4404 = vrot.lane.b32.xlu0 %v3665, 48
      %v4405 = vpop.permute.xlu0 %4404
      %4406 = vrot.lane.b32.xlu0 %v3598, 48
      %v4407 = vpop.permute.xlu0 %4406
      %4408 = vrot.lane.b32.xlu0 %v3666, 48
      %v4409 = vpop.permute.xlu0 %4408
      %4410 = vrot.lane.b32.xlu0 %v3601, 48
      %v4411 = vpop.permute.xlu0 %4410
      %4412 = vrot.lane.b32.xlu0 %v3667, 48
      %v4413 = vpop.permute.xlu0 %4412
      %4414 = vrot.lane.b32.xlu0 %v3604, 48
      %v4415 = vpop.permute.xlu0 %4414
      %4416 = vrot.lane.b32.xlu0 %v581, 48
      %v4417 = vpop.permute.xlu0 %4416
      %4418 = vrot.lane.b32.xlu0 %v483, 48
      %v4419 = vpop.permute.xlu0 %4418
      %4452 = vrot.lane.b32.xlu0 %v3721, 56
      %v4453 = vpop.permute.xlu0 %4452
      %4454 = vrot.lane.b32.xlu0 %v3723, 56
      %v4455 = vpop.permute.xlu0 %4454
      %4456 = vrot.lane.b32.xlu0 %v3726, 56
      %v4457 = vpop.permute.xlu0 %4456
      %4458 = vrot.lane.b32.xlu0 %v3728, 56
      %v4459 = vpop.permute.xlu0 %4458
      %4460 = vrot.lane.b32.xlu0 %v3731, 56
      %v4461 = vpop.permute.xlu0 %4460
      %4462 = vrot.lane.b32.xlu0 %v3733, 56
      %v4463 = vpop.permute.xlu0 %4462
      %4464 = vrot.lane.b32.xlu0 %v3736, 56
      %v4465 = vpop.permute.xlu0 %4464
      %4466 = vrot.lane.b32.xlu0 %v3738, 56
      %v4467 = vpop.permute.xlu0 %4466
      %4468 = vrot.lane.b32.xlu0 %v3741, 56
      %v4469 = vpop.permute.xlu0 %4468
      %4470 = vrot.lane.b32.xlu0 %v3743, 56
      %v4471 = vpop.permute.xlu0 %4470
      %4472 = vrot.lane.b32.xlu0 %v3746, 56
      %v4473 = vpop.permute.xlu0 %4472
      %4474 = vrot.lane.b32.xlu0 %v3748, 56
      %v4475 = vpop.permute.xlu0 %4474
      %4476 = vrot.lane.b32.xlu0 %v3751, 56
      %v4477 = vpop.permute.xlu0 %4476
      %4478 = vrot.lane.b32.xlu0 %v3753, 56
      %v4479 = vpop.permute.xlu0 %4478
      %4480 = vrot.lane.b32.xlu0 %v3756, 56
      %v4481 = vpop.permute.xlu0 %4480
      %4482 = vrot.lane.b32.xlu0 %v3758, 56
      %v4483 = vpop.permute.xlu0 %4482
      %4484 = vrot.lane.b32.xlu0 %v3761, 56
      %v4485 = vpop.permute.xlu0 %4484
      %4486 = vrot.lane.b32.xlu0 %v3763, 56
      %v4487 = vpop.permute.xlu0 %4486
      %4488 = vrot.lane.b32.xlu0 %v3766, 56
      %v4489 = vpop.permute.xlu0 %4488
      %4490 = vrot.lane.b32.xlu0 %v3768, 56
      %v4491 = vpop.permute.xlu0 %4490
      %4492 = vrot.lane.b32.xlu0 %v3771, 56
      %v4493 = vpop.permute.xlu0 %4492
      %4494 = vrot.lane.b32.xlu0 %v3773, 56
      %v4495 = vpop.permute.xlu0 %4494
      %4496 = vrot.lane.b32.xlu0 %v3776, 56
      %v4497 = vpop.permute.xlu0 %4496
      %4498 = vrot.lane.b32.xlu0 %v3778, 56
      %v4499 = vpop.permute.xlu0 %4498
      %4500 = vrot.lane.b32.xlu0 %v3781, 56
      %v4501 = vpop.permute.xlu0 %4500
      %4502 = vrot.lane.b32.xlu0 %v3783, 56
      %v4503 = vpop.permute.xlu0 %4502
      %4504 = vrot.lane.b32.xlu0 %v3786, 56
      %v4505 = vpop.permute.xlu0 %4504
      %4506 = vrot.lane.b32.xlu0 %v3788, 56
      %v4507 = vpop.permute.xlu0 %4506
      %4508 = vrot.lane.b32.xlu0 %v3868, 56
      %v4509 = vpop.permute.xlu0 %4508
      %4510 = vrot.lane.b32.xlu0 %v3870, 56
      %v4511 = vpop.permute.xlu0 %4510
      %4512 = vrot.lane.b32.xlu0 %v650, 56
      %v4513 = vpop.permute.xlu0 %4512
      %4514 = vrot.lane.b32.xlu0 %v652, 56
      %v4515 = vpop.permute.xlu0 %4514
      %4548 = vrot.lane.b32.xlu0 %v3796, 64
      %v4549 = vpop.permute.xlu0 %4548
      %4550 = vrot.lane.b32.xlu0 %v3798, 64
      %v4551 = vpop.permute.xlu0 %4550
      %4552 = vrot.lane.b32.xlu0 %v3801, 64
      %v4553 = vpop.permute.xlu0 %4552
      %4554 = vrot.lane.b32.xlu0 %v3803, 64
      %v4555 = vpop.permute.xlu0 %4554
      %4556 = vrot.lane.b32.xlu0 %v3806, 64
      %v4557 = vpop.permute.xlu0 %4556
      %4558 = vrot.lane.b32.xlu0 %v3808, 64
      %v4559 = vpop.permute.xlu0 %4558
      %4560 = vrot.lane.b32.xlu0 %v3811, 64
      %v4561 = vpop.permute.xlu0 %4560
      %4562 = vrot.lane.b32.xlu0 %v3813, 64
      %v4563 = vpop.permute.xlu0 %4562
      %4564 = vrot.lane.b32.xlu0 %v3816, 64
      %v4565 = vpop.permute.xlu0 %4564
      %4566 = vrot.lane.b32.xlu0 %v3818, 64
      %v4567 = vpop.permute.xlu0 %4566
      %4568 = vrot.lane.b32.xlu0 %v3821, 64
      %v4569 = vpop.permute.xlu0 %4568
      %4570 = vrot.lane.b32.xlu0 %v3823, 64
      %v4571 = vpop.permute.xlu0 %4570
      %4572 = vrot.lane.b32.xlu0 %v3826, 64
      %v4573 = vpop.permute.xlu0 %4572
      %4574 = vrot.lane.b32.xlu0 %v3828, 64
      %v4575 = vpop.permute.xlu0 %4574
      %4576 = vrot.lane.b32.xlu0 %v3831, 64
      %v4577 = vpop.permute.xlu0 %4576
      %4578 = vrot.lane.b32.xlu0 %v3833, 64
      %v4579 = vpop.permute.xlu0 %4578
      %4580 = vrot.lane.b32.xlu0 %v3836, 64
      %v4581 = vpop.permute.xlu0 %4580
      %4582 = vrot.lane.b32.xlu0 %v3838, 64
      %v4583 = vpop.permute.xlu0 %4582
      %4584 = vrot.lane.b32.xlu0 %v3841, 64
      %v4585 = vpop.permute.xlu0 %4584
      %4586 = vrot.lane.b32.xlu0 %v3843, 64
      %v4587 = vpop.permute.xlu0 %4586
      %4588 = vrot.lane.b32.xlu0 %v3846, 64
      %v4589 = vpop.permute.xlu0 %4588
      %4590 = vrot.lane.b32.xlu0 %v3848, 64
      %v4591 = vpop.permute.xlu0 %4590
      %4592 = vrot.lane.b32.xlu0 %v3851, 64
      %v4593 = vpop.permute.xlu0 %4592
      %4594 = vrot.lane.b32.xlu0 %v3853, 64
      %v4595 = vpop.permute.xlu0 %4594
      %4596 = vrot.lane.b32.xlu0 %v3856, 64
      %v4597 = vpop.permute.xlu0 %4596
      %4598 = vrot.lane.b32.xlu0 %v3858, 64
      %v4599 = vpop.permute.xlu0 %4598
      %4600 = vrot.lane.b32.xlu0 %v3861, 64
      %v4601 = vpop.permute.xlu0 %4600
      %4602 = vrot.lane.b32.xlu0 %v3863, 64
      %v4603 = vpop.permute.xlu0 %4602
      %4604 = vrot.lane.b32.xlu0 %v3873, 64
      %v4605 = vpop.permute.xlu0 %4604
      %4606 = vrot.lane.b32.xlu0 %v3875, 64
      %v4607 = vpop.permute.xlu0 %4606
      %4608 = vrot.lane.b32.xlu0 %v731, 64
      %v4609 = vpop.permute.xlu0 %4608
      %4610 = vrot.lane.b32.xlu0 %v733, 64
      %v4611 = vpop.permute.xlu0 %4610
      %v4644 = vsel %vm1622, %v581, %v3877
      %v4645 = vsel %vm1622, %v483, %v3879
      %v4646 = vsel %vm1622, %v3652, %v3881
      %v4647 = vsel %vm1622, %v3559, %v3883
      %v4648 = vsel %vm1622, %v3653, %v3885
      %v4649 = vsel %vm1622, %v3562, %v3887
      %v4650 = vsel %vm1622, %v3654, %v3889
      %v4651 = vsel %vm1622, %v3565, %v3891
      %v4652 = vsel %vm1622, %v3655, %v3893
      %v4653 = vsel %vm1622, %v3568, %v3895
      %v4654 = vsel %vm1622, %v3656, %v3897
      %v4655 = vsel %vm1622, %v3571, %v3899
      %v4656 = vsel %vm1622, %v3657, %v3901
      %v4657 = vsel %vm1622, %v3574, %v3903
      %v4658 = vsel %vm1622, %v3658, %v3905
      %v4659 = vsel %vm1622, %v3577, %v3907
      %v4660 = vsel %vm1622, %v3659, %v3909
      %v4661 = vsel %vm1622, %v3580, %v3911
      %v4662 = vsel %vm1622, %v3660, %v3913
      %v4663 = vsel %vm1622, %v3583, %v3915
      %v4664 = vsel %vm1622, %v3661, %v3917
      %v4665 = vsel %vm1622, %v3586, %v3919
      %v4666 = vsel %vm1622, %v3662, %v3921
      %v4667 = vsel %vm1622, %v3589, %v3923
      %v4668 = vsel %vm1622, %v3663, %v3925
      %v4669 = vsel %vm1622, %v3592, %v3927
      %v4670 = vsel %vm1622, %v3664, %v3929
      %v4671 = vsel %vm1622, %v3595, %v3931
      %v4672 = vsel %vm1622, %v3665, %v3933
      %v4673 = vsel %vm1622, %v3598, %v3935
      %v4674 = vsel %vm1622, %v3666, %v3937
      %v4675 = vsel %vm1622, %v3601, %v3939
      %v4676 = vsel %vm1688, %v4644, %v3973
      %v4677 = vsel %vm1688, %v4645, %v3975
      %v4678 = vsel %vm1688, %v4646, %v3977
      %v4679 = vsel %vm1688, %v4647, %v3979
      %v4680 = vsel %vm1688, %v4648, %v3981
      %v4681 = vsel %vm1688, %v4649, %v3983
      %v4682 = vsel %vm1688, %v4650, %v3985
      %v4683 = vsel %vm1688, %v4651, %v3987
      %v4684 = vsel %vm1688, %v4652, %v3989
      %v4685 = vsel %vm1688, %v4653, %v3991
      %v4686 = vsel %vm1688, %v4654, %v3993
      %v4687 = vsel %vm1688, %v4655, %v3995
      %v4688 = vsel %vm1688, %v4656, %v3997
      %v4689 = vsel %vm1688, %v4657, %v3999
      %v4690 = vsel %vm1688, %v4658, %v4001
      %v4691 = vsel %vm1688, %v4659, %v4003
      %v4692 = vsel %vm1688, %v4660, %v4005
      %v4693 = vsel %vm1688, %v4661, %v4007
      %v4694 = vsel %vm1688, %v4662, %v4009
      %v4695 = vsel %vm1688, %v4663, %v4011
      %v4696 = vsel %vm1688, %v4664, %v4013
      %v4697 = vsel %vm1688, %v4665, %v4015
      %v4698 = vsel %vm1688, %v4666, %v4017
      %v4699 = vsel %vm1688, %v4667, %v4019
      %v4700 = vsel %vm1688, %v4668, %v4021
      %v4701 = vsel %vm1688, %v4669, %v4023
      %v4702 = vsel %vm1688, %v4670, %v4025
      %v4703 = vsel %vm1688, %v4671, %v4027
      %v4704 = vsel %vm1688, %v4672, %v4029
      %v4705 = vsel %vm1688, %v4673, %v4031
      %v4706 = vsel %vm1688, %v4674, %v4033
      %v4707 = vsel %vm1688, %v4675, %v4035
      %v4708 = vsel %vm1754, %v4676, %v4069
      %v4709 = vsel %vm1754, %v4677, %v4071
      %v4710 = vsel %vm1754, %v4678, %v4073
      %v4711 = vsel %vm1754, %v4679, %v4075
      %v4712 = vsel %vm1754, %v4680, %v4077
      %v4713 = vsel %vm1754, %v4681, %v4079
      %v4714 = vsel %vm1754, %v4682, %v4081
      %v4715 = vsel %vm1754, %v4683, %v4083
      %v4716 = vsel %vm1754, %v4684, %v4085
      %v4717 = vsel %vm1754, %v4685, %v4087
      %v4718 = vsel %vm1754, %v4686, %v4089
      %v4719 = vsel %vm1754, %v4687, %v4091
      %v4720 = vsel %vm1754, %v4688, %v4093
      %v4721 = vsel %vm1754, %v4689, %v4095
      %v4722 = vsel %vm1754, %v4690, %v4097
      %v4723 = vsel %vm1754, %v4691, %v4099
      %v4724 = vsel %vm1754, %v4692, %v4101
      %v4725 = vsel %vm1754, %v4693, %v4103
      %v4726 = vsel %vm1754, %v4694, %v4105
      %v4727 = vsel %vm1754, %v4695, %v4107
      %v4728 = vsel %vm1754, %v4696, %v4109
      %v4729 = vsel %vm1754, %v4697, %v4111
      %v4730 = vsel %vm1754, %v4698, %v4113
      %v4731 = vsel %vm1754, %v4699, %v4115
      %v4732 = vsel %vm1754, %v4700, %v4117
      %v4733 = vsel %vm1754, %v4701, %v4119
      %v4734 = vsel %vm1754, %v4702, %v4121
      %v4735 = vsel %vm1754, %v4703, %v4123
      %v4736 = vsel %vm1754, %v4704, %v4125
      %v4737 = vsel %vm1754, %v4705, %v4127
      %v4738 = vsel %vm1754, %v4706, %v4129
      %v4739 = vsel %vm1754, %v4707, %v4131
      %v4740 = vsel %vm1820, %v4708, %v4165
      %v4741 = vsel %vm1820, %v4709, %v4167
      %v4742 = vsel %vm1820, %v4710, %v4169
      %v4743 = vsel %vm1820, %v4711, %v4171
      %v4744 = vsel %vm1820, %v4712, %v4173
      %v4745 = vsel %vm1820, %v4713, %v4175
      %v4746 = vsel %vm1820, %v4714, %v4177
      %v4747 = vsel %vm1820, %v4715, %v4179
      %v4748 = vsel %vm1820, %v4716, %v4181
      %v4749 = vsel %vm1820, %v4717, %v4183
      %v4750 = vsel %vm1820, %v4718, %v4185
      %v4751 = vsel %vm1820, %v4719, %v4187
      %v4752 = vsel %vm1820, %v4720, %v4189
      %v4753 = vsel %vm1820, %v4721, %v4191
      %v4754 = vsel %vm1820, %v4722, %v4193
      %v4755 = vsel %vm1820, %v4723, %v4195
      %v4756 = vsel %vm1820, %v4724, %v4197
      %v4757 = vsel %vm1820, %v4725, %v4199
      %v4758 = vsel %vm1820, %v4726, %v4201
      %v4759 = vsel %vm1820, %v4727, %v4203
      %v4760 = vsel %vm1820, %v4728, %v4205
      %v4761 = vsel %vm1820, %v4729, %v4207
      %v4762 = vsel %vm1820, %v4730, %v4209
      %v4763 = vsel %vm1820, %v4731, %v4211
      %v4764 = vsel %vm1820, %v4732, %v4213
      %v4765 = vsel %vm1820, %v4733, %v4215
      %v4766 = vsel %vm1820, %v4734, %v4217
      %v4767 = vsel %vm1820, %v4735, %v4219
      %v4768 = vsel %vm1820, %v4736, %v4221
      %v4769 = vsel %vm1820, %v4737, %v4223
      %v4770 = vsel %vm1820, %v4738, %v4225
      %v4771 = vsel %vm1820, %v4739, %v4227
      %vm4772 = vcmask 326656
      %v4773 = vsel %vm4772, %v4740, %v4261
      %v4774 = vsel %vm4772, %v4741, %v4263
      %v4775 = vsel %vm4772, %v4742, %v4265
      %v4776 = vsel %vm4772, %v4743, %v4267
      %v4777 = vsel %vm4772, %v4744, %v4269
      %v4778 = vsel %vm4772, %v4745, %v4271
      %v4779 = vsel %vm4772, %v4746, %v4273
      %v4780 = vsel %vm4772, %v4747, %v4275
      %v4781 = vsel %vm4772, %v4748, %v4277
      %v4782 = vsel %vm4772, %v4749, %v4279
      %v4783 = vsel %vm4772, %v4750, %v4281
      %v4784 = vsel %vm4772, %v4751, %v4283
      %v4785 = vsel %vm4772, %v4752, %v4285
      %v4786 = vsel %vm4772, %v4753, %v4287
      %v4787 = vsel %vm4772, %v4754, %v4289
      %v4788 = vsel %vm4772, %v4755, %v4291
      %v4789 = vsel %vm4772, %v4756, %v4293
      %v4790 = vsel %vm4772, %v4757, %v4295
      %v4791 = vsel %vm4772, %v4758, %v4297
      %v4792 = vsel %vm4772, %v4759, %v4299
      %v4793 = vsel %vm4772, %v4760, %v4301
      %v4794 = vsel %vm4772, %v4761, %v4303
      %v4795 = vsel %vm4772, %v4762, %v4305
      %v4796 = vsel %vm4772, %v4763, %v4307
      %v4797 = vsel %vm4772, %v4764, %v4309
      %v4798 = vsel %vm4772, %v4765, %v4311
      %v4799 = vsel %vm4772, %v4766, %v4313
      %v4800 = vsel %vm4772, %v4767, %v4315
      %v4801 = vsel %vm4772, %v4768, %v4317
      %v4802 = vsel %vm4772, %v4769, %v4319
      %v4803 = vsel %vm4772, %v4770, %v4321
      %v4804 = vsel %vm4772, %v4771, %v4323
      %vm4805 = vcmask 392192
      %v4806 = vsel %vm4805, %v4773, %v4357
      %v4807 = vsel %vm4805, %v4774, %v4359
      %v4808 = vsel %vm4805, %v4775, %v4361
      %v4809 = vsel %vm4805, %v4776, %v4363
      %v4810 = vsel %vm4805, %v4777, %v4365
      %v4811 = vsel %vm4805, %v4778, %v4367
      %v4812 = vsel %vm4805, %v4779, %v4369
      %v4813 = vsel %vm4805, %v4780, %v4371
      %v4814 = vsel %vm4805, %v4781, %v4373
      %v4815 = vsel %vm4805, %v4782, %v4375
      %v4816 = vsel %vm4805, %v4783, %v4377
      %v4817 = vsel %vm4805, %v4784, %v4379
      %v4818 = vsel %vm4805, %v4785, %v4381
      %v4819 = vsel %vm4805, %v4786, %v4383
      %v4820 = vsel %vm4805, %v4787, %v4385
      %v4821 = vsel %vm4805, %v4788, %v4387
      %v4822 = vsel %vm4805, %v4789, %v4389
      %v4823 = vsel %vm4805, %v4790, %v4391
      %v4824 = vsel %vm4805, %v4791, %v4393
      %v4825 = vsel %vm4805, %v4792, %v4395
      %v4826 = vsel %vm4805, %v4793, %v4397
      %v4827 = vsel %vm4805, %v4794, %v4399
      %v4828 = vsel %vm4805, %v4795, %v4401
      %v4829 = vsel %vm4805, %v4796, %v4403
      %v4830 = vsel %vm4805, %v4797, %v4405
      %v4831 = vsel %vm4805, %v4798, %v4407
      %v4832 = vsel %vm4805, %v4799, %v4409
      %v4833 = vsel %vm4805, %v4800, %v4411
      %v4834 = vsel %vm4805, %v4801, %v4413
      %v4835 = vsel %vm4805, %v4802, %v4415
      %v4836 = vsel %vm4805, %v4803, %v4417
      %v4837 = vsel %vm4805, %v4804, %v4419
      %vm4838 = vcmask 457728
      %v4839 = vsel %vm4838, %v4806, %v4453
      %v4840 = vsel %vm4838, %v4807, %v4455
      %v4841 = vsel %vm4838, %v4808, %v4457
      %v4842 = vsel %vm4838, %v4809, %v4459
      %v4843 = vsel %vm4838, %v4810, %v4461
      %v4844 = vsel %vm4838, %v4811, %v4463
      %v4845 = vsel %vm4838, %v4812, %v4465
      %v4846 = vsel %vm4838, %v4813, %v4467
      %v4847 = vsel %vm4838, %v4814, %v4469
      %v4848 = vsel %vm4838, %v4815, %v4471
      %v4849 = vsel %vm4838, %v4816, %v4473
      %v4850 = vsel %vm4838, %v4817, %v4475
      %v4851 = vsel %vm4838, %v4818, %v4477
      %v4852 = vsel %vm4838, %v4819, %v4479
      %v4853 = vsel %vm4838, %v4820, %v4481
      %v4854 = vsel %vm4838, %v4821, %v4483
      %v4855 = vsel %vm4838, %v4822, %v4485
      %v4856 = vsel %vm4838, %v4823, %v4487
      %v4857 = vsel %vm4838, %v4824, %v4489
      %v4858 = vsel %vm4838, %v4825, %v4491
      %v4859 = vsel %vm4838, %v4826, %v4493
      %v4860 = vsel %vm4838, %v4827, %v4495
      %v4861 = vsel %vm4838, %v4828, %v4497
      %v4862 = vsel %vm4838, %v4829, %v4499
      %v4863 = vsel %vm4838, %v4830, %v4501
      %v4864 = vsel %vm4838, %v4831, %v4503
      %v4865 = vsel %vm4838, %v4832, %v4505
      %v4866 = vsel %vm4838, %v4833, %v4507
      %v4867 = vsel %vm4838, %v4834, %v4509
      %v4868 = vsel %vm4838, %v4835, %v4511
      %v4869 = vsel %vm4838, %v4836, %v4513
      %v4870 = vsel %vm4838, %v4837, %v4515
      %vm4871 = vcmask 523264
      %v4872 = vsel %vm4871, %v4839, %v4549
      %v4873 = vsel %vm4871, %v4840, %v4551
      %v4874 = vsel %vm4871, %v4841, %v4553
      %v4875 = vsel %vm4871, %v4842, %v4555
      %v4876 = vsel %vm4871, %v4843, %v4557
      %v4877 = vsel %vm4871, %v4844, %v4559
      %v4878 = vsel %vm4871, %v4845, %v4561
      %v4879 = vsel %vm4871, %v4846, %v4563
      %v4880 = vsel %vm4871, %v4847, %v4565
      %v4881 = vsel %vm4871, %v4848, %v4567
      %v4882 = vsel %vm4871, %v4849, %v4569
      %v4883 = vsel %vm4871, %v4850, %v4571
      %v4884 = vsel %vm4871, %v4851, %v4573
      %v4885 = vsel %vm4871, %v4852, %v4575
      %v4886 = vsel %vm4871, %v4853, %v4577
      %v4887 = vsel %vm4871, %v4854, %v4579
      %v4888 = vsel %vm4871, %v4855, %v4581
      %v4889 = vsel %vm4871, %v4856, %v4583
      %v4890 = vsel %vm4871, %v4857, %v4585
      %v4891 = vsel %vm4871, %v4858, %v4587
      %v4892 = vsel %vm4871, %v4859, %v4589
      %v4893 = vsel %vm4871, %v4860, %v4591
      %v4894 = vsel %vm4871, %v4861, %v4593
      %v4895 = vsel %vm4871, %v4862, %v4595
      %v4896 = vsel %vm4871, %v4863, %v4597
      %v4897 = vsel %vm4871, %v4864, %v4599
      %v4898 = vsel %vm4871, %v4865, %v4601
      %v4899 = vsel %vm4871, %v4866, %v4603
      %v4900 = vsel %vm4871, %v4867, %v4605
      %v4901 = vsel %vm4871, %v4868, %v4607
      %v4902 = vsel %vm4871, %v4869, %v4609
      %v4903 = vsel %vm4871, %v4870, %v4611
      %v4904 = vld [vmem:[%s6] sm:$0xff]
      %v4905 = vld [vmem:[%s6 + $0x8] sm:$0xff]
      %v4906 = vld [vmem:[%s6 + $0x10] sm:$0xff]
      %v4907 = vld [vmem:[%s6 + $0x18] sm:$0xff]
      %v4908 = vld [vmem:[%s6 + $0x20] sm:$0xff]
      %v4909 = vld [vmem:[%s6 + $0x28] sm:$0xff]
      %v4910 = vld [vmem:[%s6 + $0x30] sm:$0xff]
      %v4911 = vld [vmem:[%s6 + $0x38] sm:$0xff]
      %v4912 = vld [vmem:[%s6 + $0x40] sm:$0xff]
      %v4913 = vld [vmem:[%s7] sm:$0x1]
      %v4915 = vlaneseq
      %v4916 = vshrl.u32 %v4915, 7
      %v4917 = vsub.s32 0, %v4916
      %v4918 = vrot.slane %v4913, %v4917
      %vm4920 = vcmask 588800
      %v4922 = vsel %vm4920, %v4872, 0
      %v4925 = vsel %vm4920, %v4873, 0
      %v4928 = vsel %vm4920, %v4874, 0
      %v4931 = vsel %vm4920, %v4875, 0
      %v4934 = vsel %vm4920, %v4876, 0
      %v4937 = vsel %vm4920, %v4877, 0
      %v4940 = vsel %vm4920, %v4878, 0
      %v4943 = vsel %vm4920, %v4879, 0
      %v4946 = vsel %vm4920, %v4880, 0
      %v4949 = vsel %vm4920, %v4881, 0
      %v4952 = vsel %vm4920, %v4882, 0
      %v4955 = vsel %vm4920, %v4883, 0
      %v4958 = vsel %vm4920, %v4884, 0
      %v4961 = vsel %vm4920, %v4885, 0
      %v4964 = vsel %vm4920, %v4886, 0
      %v4967 = vsel %vm4920, %v4887, 0
      %v4970 = vsel %vm4920, %v4888, 0
      %v4973 = vsel %vm4920, %v4889, 0
      %v4976 = vsel %vm4920, %v4890, 0
      %v4979 = vsel %vm4920, %v4891, 0
      %v4982 = vsel %vm4920, %v4892, 0
      %v4985 = vsel %vm4920, %v4893, 0
      %v4988 = vsel %vm4920, %v4894, 0
      %v4991 = vsel %vm4920, %v4895, 0
      %v4994 = vsel %vm4920, %v4896, 0
      %v4997 = vsel %vm4920, %v4897, 0
      %v5000 = vsel %vm4920, %v4898, 0
      %v5003 = vsel %vm4920, %v4899, 0
      %v5006 = vsel %vm4920, %v4900, 0
      %v5009 = vsel %vm4920, %v4901, 0
      %v5012 = vsel %vm4920, %v4902, 0
      %v5015 = vsel %vm4920, %v4903, 0
      %5017 = vmatprep.subr.mxu0 0.0
      %5018 = vmatpush1.msra.mxu0 0.0
      %5019 = vmatprep.subr.mxu0 0.0
      %5020 = vmatpush1.msra.mxu0 0.0
      %5021 = vmatprep.subr.mxu0 0.0
      %5022 = vmatpush1.msra.mxu0 0.0
      %5023 = vmatprep.subr.mxu0 0.0
      %5024 = vmatpush1.msra.mxu0 0.0
      %5025 = vmatprep.subr.mxu0 0.0
      %5026 = vmatpush1.msra.mxu0 0.0
      %5027 = vmatprep.subr.mxu0 0.0
      %5028 = vmatpush1.msra.mxu0 0.0
      %5029 = vmatprep.subr.mxu0 0.0
      %5030 = vmatpush1.msra.mxu0 0.0
      %5031 = vmatprep.subr.mxu0 0.0
      %5032 = vmatpush1.msra.mxu0 %v4912
      %5033 = vmatprep.subr.mxu0 0.0
      %5034 = vmatpush1.msra.mxu0 %v4911
      %5035 = vmatprep.subr.mxu0 0.0
      %5036 = vmatpush1.msra.mxu0 %v4910
      %5037 = vmatprep.subr.mxu0 0.0
      %5038 = vmatpush1.msra.mxu0 %v4909
      %5039 = vmatprep.subr.mxu0 0.0
      %5040 = vmatpush1.msra.mxu0 %v4908
      %5041 = vmatprep.subr.mxu0 0.0
      %5042 = vmatpush1.msra.mxu0 %v4907
      %5043 = vmatprep.subr.mxu0 0.0
      %5044 = vmatpush1.msra.mxu0 %v4906
      %5045 = vmatprep.subr.mxu0 0.0
      %5046 = vmatpush1.msra.mxu0 %v4905
      %5047 = vmatprep.subr.mxu0 0.0
      %5048 = vmatpush1.msra.mxu0 %v4904
      %5049 = vmatprep.subr.mxu0 0.0
      %5050 = vmatpush2.msra.mxu0 0.0
      %5051 = vmatprep.subr.mxu0 0.0
      %5052 = vmatpush2.msra.mxu0 0.0
      %5053 = vmatprep.subr.mxu0 0.0
      %5054 = vmatpush2.msra.mxu0 0.0
      %5055 = vmatprep.subr.mxu0 0.0
      %5056 = vmatpush2.msra.mxu0 0.0
      %5057 = vmatprep.subr.mxu0 0.0
      %5058 = vmatpush2.msra.mxu0 0.0
      %5059 = vmatprep.subr.mxu0 0.0
      %5060 = vmatpush2.msra.mxu0 0.0
      %5061 = vmatprep.subr.mxu0 0.0
      %5062 = vmatpush2.msra.mxu0 0.0
      %5063 = vmatprep.subr.mxu0 0.0
      %5064 = vmatpush2.msra.mxu0 0.0
      %5065 = vmatprep.subr.mxu0 0.0
      %5066 = vmatpush2.msra.mxu0 0.0
      %5067 = vmatprep.subr.mxu0 0.0
      %5068 = vmatpush2.msra.mxu0 0.0
      %5069 = vmatprep.subr.mxu0 0.0
      %5070 = vmatpush2.msra.mxu0 0.0
      %5071 = vmatprep.subr.mxu0 0.0
      %5072 = vmatpush2.msra.mxu0 0.0
      %5073 = vmatprep.subr.mxu0 0.0
      %5074 = vmatpush2.msra.mxu0 0.0
      %5075 = vmatprep.subr.mxu0 0.0
      %5076 = vmatpush2.msra.mxu0 0.0
      %5077 = vmatprep.subr.mxu0 0.0
      %5078 = vmatpush2.msra.mxu0 0.0
      %5079 = vmatprep.subr.mxu0 0.0
      %5080 = vmatpush2.msra.mxu0 0.0
      %5081 = vmatprep.mubr.f32.mxu0 0.0
      %5082 = vmatmul.mubr.f32.gmra.mxu0 %v4922
      %v5083 = vpop.f32.mrf.mxu0
      %v5084 = vadd.f32 %v4918, %v5083
      %v5085 = vpop.f32.mrf.mxu0
      %5086 = vmatprep.mubr.f32.mxu0 0.0
      %5087 = vmatmul.mubr.f32.gmra.mxu0 %v4925
      %v5088 = vpop.f32.mrf.mxu0
      %v5089 = vadd.f32 %v4918, %v5088
      %v5090 = vpop.f32.mrf.mxu0
      %5091 = vmatprep.mubr.f32.mxu0 0.0
      %5092 = vmatmul.mubr.f32.gmra.mxu0 %v4928
      %v5093 = vpop.f32.mrf.mxu0
      %v5094 = vadd.f32 %v4918, %v5093
      %v5095 = vpop.f32.mrf.mxu0
      %5096 = vmatprep.mubr.f32.mxu0 0.0
      %5097 = vmatmul.mubr.f32.gmra.mxu0 %v4931
      %v5098 = vpop.f32.mrf.mxu0
      %v5099 = vadd.f32 %v4918, %v5098
      %v5100 = vpop.f32.mrf.mxu0
      %5101 = vmatprep.mubr.f32.mxu0 0.0
      %5102 = vmatmul.mubr.f32.gmra.mxu0 %v4934
      %v5103 = vpop.f32.mrf.mxu0
      %v5104 = vadd.f32 %v4918, %v5103
      %v5105 = vpop.f32.mrf.mxu0
      %5106 = vmatprep.mubr.f32.mxu0 0.0
      %5107 = vmatmul.mubr.f32.gmra.mxu0 %v4937
      %v5108 = vpop.f32.mrf.mxu0
      %v5109 = vadd.f32 %v4918, %v5108
      %v5110 = vpop.f32.mrf.mxu0
      %5111 = vmatprep.mubr.f32.mxu0 0.0
      %5112 = vmatmul.mubr.f32.gmra.mxu0 %v4940
      %v5113 = vpop.f32.mrf.mxu0
      %v5114 = vadd.f32 %v4918, %v5113
      %v5115 = vpop.f32.mrf.mxu0
      %5116 = vmatprep.mubr.f32.mxu0 0.0
      %5117 = vmatmul.mubr.f32.gmra.mxu0 %v4943
      %v5118 = vpop.f32.mrf.mxu0
      %v5119 = vadd.f32 %v4918, %v5118
      %v5120 = vpop.f32.mrf.mxu0
      %5121 = vmatprep.mubr.f32.mxu0 0.0
      %5122 = vmatmul.mubr.f32.gmra.mxu0 %v4946
      %v5123 = vpop.f32.mrf.mxu0
      %v5124 = vadd.f32 %v4918, %v5123
      %v5125 = vpop.f32.mrf.mxu0
      %5126 = vmatprep.mubr.f32.mxu0 0.0
      %5127 = vmatmul.mubr.f32.gmra.mxu0 %v4949
      %v5128 = vpop.f32.mrf.mxu0
      %v5129 = vadd.f32 %v4918, %v5128
      %v5130 = vpop.f32.mrf.mxu0
      %5131 = vmatprep.mubr.f32.mxu0 0.0
      %5132 = vmatmul.mubr.f32.gmra.mxu0 %v4952
      %v5133 = vpop.f32.mrf.mxu0
      %v5134 = vadd.f32 %v4918, %v5133
      %v5135 = vpop.f32.mrf.mxu0
      %5136 = vmatprep.mubr.f32.mxu0 0.0
      %5137 = vmatmul.mubr.f32.gmra.mxu0 %v4955
      %v5138 = vpop.f32.mrf.mxu0
      %v5139 = vadd.f32 %v4918, %v5138
      %v5140 = vpop.f32.mrf.mxu0
      %5141 = vmatprep.mubr.f32.mxu0 0.0
      %5142 = vmatmul.mubr.f32.gmra.mxu0 %v4958
      %v5143 = vpop.f32.mrf.mxu0
      %v5144 = vadd.f32 %v4918, %v5143
      %v5145 = vpop.f32.mrf.mxu0
      %5146 = vmatprep.mubr.f32.mxu0 0.0
      %5147 = vmatmul.mubr.f32.gmra.mxu0 %v4961
      %v5148 = vpop.f32.mrf.mxu0
      %v5149 = vadd.f32 %v4918, %v5148
      %v5150 = vpop.f32.mrf.mxu0
      %5151 = vmatprep.mubr.f32.mxu0 0.0
      %5152 = vmatmul.mubr.f32.gmra.mxu0 %v4964
      %v5153 = vpop.f32.mrf.mxu0
      %v5154 = vadd.f32 %v4918, %v5153
      %v5155 = vpop.f32.mrf.mxu0
      %5156 = vmatprep.mubr.f32.mxu0 0.0
      %5157 = vmatmul.mubr.f32.gmra.mxu0 %v4967
      %v5158 = vpop.f32.mrf.mxu0
      %v5159 = vadd.f32 %v4918, %v5158
      %v5160 = vpop.f32.mrf.mxu0
      %5161 = vmatprep.mubr.f32.mxu0 0.0
      %5162 = vmatmul.mubr.f32.gmra.mxu0 %v4970
      %v5163 = vpop.f32.mrf.mxu0
      %v5164 = vadd.f32 %v4918, %v5163
      %v5165 = vpop.f32.mrf.mxu0
      %5166 = vmatprep.mubr.f32.mxu0 0.0
      %5167 = vmatmul.mubr.f32.gmra.mxu0 %v4973
      %v5168 = vpop.f32.mrf.mxu0
      %v5169 = vadd.f32 %v4918, %v5168
      %v5170 = vpop.f32.mrf.mxu0
      %5171 = vmatprep.mubr.f32.mxu0 0.0
      %5172 = vmatmul.mubr.f32.gmra.mxu0 %v4976
      %v5173 = vpop.f32.mrf.mxu0
      %v5174 = vadd.f32 %v4918, %v5173
      %v5175 = vpop.f32.mrf.mxu0
      %5176 = vmatprep.mubr.f32.mxu0 0.0
      %5177 = vmatmul.mubr.f32.gmra.mxu0 %v4979
      %v5178 = vpop.f32.mrf.mxu0
      %v5179 = vadd.f32 %v4918, %v5178
      %v5180 = vpop.f32.mrf.mxu0
      %5181 = vmatprep.mubr.f32.mxu0 0.0
      %5182 = vmatmul.mubr.f32.gmra.mxu0 %v4982
      %v5183 = vpop.f32.mrf.mxu0
      %v5184 = vadd.f32 %v4918, %v5183
      %v5185 = vpop.f32.mrf.mxu0
      %5186 = vmatprep.mubr.f32.mxu0 0.0
      %5187 = vmatmul.mubr.f32.gmra.mxu0 %v4985
      %v5188 = vpop.f32.mrf.mxu0
      %v5189 = vadd.f32 %v4918, %v5188
      %v5190 = vpop.f32.mrf.mxu0
      %5191 = vmatprep.mubr.f32.mxu0 0.0
      %5192 = vmatmul.mubr.f32.gmra.mxu0 %v4988
      %v5193 = vpop.f32.mrf.mxu0
      %v5194 = vadd.f32 %v4918, %v5193
      %v5195 = vpop.f32.mrf.mxu0
      %5196 = vmatprep.mubr.f32.mxu0 0.0
      %5197 = vmatmul.mubr.f32.gmra.mxu0 %v4991
      %v5198 = vpop.f32.mrf.mxu0
      %v5199 = vadd.f32 %v4918, %v5198
      %v5200 = vpop.f32.mrf.mxu0
      %5201 = vmatprep.mubr.f32.mxu0 0.0
      %5202 = vmatmul.mubr.f32.gmra.mxu0 %v4994
      %v5203 = vpop.f32.mrf.mxu0
      %v5204 = vadd.f32 %v4918, %v5203
      %v5205 = vpop.f32.mrf.mxu0
      %5206 = vmatprep.mubr.f32.mxu0 0.0
      %5207 = vmatmul.mubr.f32.gmra.mxu0 %v4997
      %v5208 = vpop.f32.mrf.mxu0
      %v5209 = vadd.f32 %v4918, %v5208
      %v5210 = vpop.f32.mrf.mxu0
      %5211 = vmatprep.mubr.f32.mxu0 0.0
      %5212 = vmatmul.mubr.f32.gmra.mxu0 %v5000
      %v5213 = vpop.f32.mrf.mxu0
      %v5214 = vadd.f32 %v4918, %v5213
      %v5215 = vpop.f32.mrf.mxu0
      %5216 = vmatprep.mubr.f32.mxu0 0.0
      %5217 = vmatmul.mubr.f32.gmra.mxu0 %v5003
      %v5218 = vpop.f32.mrf.mxu0
      %v5219 = vadd.f32 %v4918, %v5218
      %v5220 = vpop.f32.mrf.mxu0
      %5221 = vmatprep.mubr.f32.mxu0 0.0
      %5222 = vmatmul.mubr.f32.gmra.mxu0 %v5006
      %v5223 = vpop.f32.mrf.mxu0
      %v5224 = vadd.f32 %v4918, %v5223
      %v5225 = vpop.f32.mrf.mxu0
      %5226 = vmatprep.mubr.f32.mxu0 0.0
      %5227 = vmatmul.mubr.f32.gmra.mxu0 %v5009
      %v5228 = vpop.f32.mrf.mxu0
      %v5229 = vadd.f32 %v4918, %v5228
      %v5230 = vpop.f32.mrf.mxu0
      %5231 = vmatprep.mubr.f32.mxu0 0.0
      %5232 = vmatmul.mubr.f32.gmra.mxu0 %v5012
      %v5233 = vpop.f32.mrf.mxu0
      %v5234 = vadd.f32 %v4918, %v5233
      %v5235 = vpop.f32.mrf.mxu0
      %5236 = vmatprep.mubr.f32.mxu0 0.0
      %5237 = vmatmul.mubr.f32.gmra.mxu0 %v5015
      %v5238 = vpop.f32.mrf.mxu0
      %v5239 = vadd.f32 %v4918, %v5238
      %v5240 = vpop.f32.mrf.mxu0
      %5241 = vdwg.mxu0
      %v5242 = vmax.f32 %v5084, 0.0
      %v5243 = vmax.f32 %v5089, 0.0
      %v5244 = vmax.f32 %v5094, 0.0
      %v5245 = vmax.f32 %v5099, 0.0
      %v5246 = vmax.f32 %v5104, 0.0
      %v5247 = vmax.f32 %v5109, 0.0
      %v5248 = vmax.f32 %v5114, 0.0
      %v5249 = vmax.f32 %v5119, 0.0
      %v5250 = vmax.f32 %v5124, 0.0
      %v5251 = vmax.f32 %v5129, 0.0
      %v5252 = vmax.f32 %v5134, 0.0
      %v5253 = vmax.f32 %v5139, 0.0
      %v5254 = vmax.f32 %v5144, 0.0
      %v5255 = vmax.f32 %v5149, 0.0
      %v5256 = vmax.f32 %v5154, 0.0
      %v5257 = vmax.f32 %v5159, 0.0
      %v5258 = vmax.f32 %v5164, 0.0
      %v5259 = vmax.f32 %v5169, 0.0
      %v5260 = vmax.f32 %v5174, 0.0
      %v5261 = vmax.f32 %v5179, 0.0
      %v5262 = vmax.f32 %v5184, 0.0
      %v5263 = vmax.f32 %v5189, 0.0
      %v5264 = vmax.f32 %v5194, 0.0
      %v5265 = vmax.f32 %v5199, 0.0
      %v5266 = vmax.f32 %v5204, 0.0
      %v5267 = vmax.f32 %v5209, 0.0
      %v5268 = vmax.f32 %v5214, 0.0
      %v5269 = vmax.f32 %v5219, 0.0
      %v5270 = vmax.f32 %v5224, 0.0
      %v5271 = vmax.f32 %v5229, 0.0
      %v5272 = vmax.f32 %v5234, 0.0
      %v5273 = vmax.f32 %v5239, 0.0
      %v5274 = vld [vmem:[%s8] sm:$0xf]
      %v5275 = vld [vmem:[%s9] sm:$0xf]
      %5277 = vset.pattern.permute.xlu0 0
      %5278 = vperm.xlu0 %5277, %v5275
      %v5279 = vpop.permute.xlu0 %5278
      %v5282 = vsel %vm1820, %v5274, 0
      %v5285 = vsel %vm1820, %v5242, 0
      %v5288 = vsel %vm1820, %v5243, 0
      %v5291 = vsel %vm1820, %v5244, 0
      %v5294 = vsel %vm1820, %v5245, 0
      %v5297 = vsel %vm1820, %v5246, 0
      %v5300 = vsel %vm1820, %v5247, 0
      %v5303 = vsel %vm1820, %v5248, 0
      %v5306 = vsel %vm1820, %v5249, 0
      %v5309 = vsel %vm1820, %v5250, 0
      %v5312 = vsel %vm1820, %v5251, 0
      %v5315 = vsel %vm1820, %v5252, 0
      %v5318 = vsel %vm1820, %v5253, 0
      %v5321 = vsel %vm1820, %v5254, 0
      %v5324 = vsel %vm1820, %v5255, 0
      %v5327 = vsel %vm1820, %v5256, 0
      %v5330 = vsel %vm1820, %v5257, 0
      %v5333 = vsel %vm1820, %v5258, 0
      %v5336 = vsel %vm1820, %v5259, 0
      %v5339 = vsel %vm1820, %v5260, 0
      %v5342 = vsel %vm1820, %v5261, 0
      %v5345 = vsel %vm1820, %v5262, 0
      %v5348 = vsel %vm1820, %v5263, 0
      %v5351 = vsel %vm1820, %v5264, 0
      %v5354 = vsel %vm1820, %v5265, 0
      %v5357 = vsel %vm1820, %v5266, 0
      %v5360 = vsel %vm1820, %v5267, 0
      %v5363 = vsel %vm1820, %v5268, 0
      %v5366 = vsel %vm1820, %v5269, 0
      %v5369 = vsel %vm1820, %v5270, 0
      %v5372 = vsel %vm1820, %v5271, 0
      %v5375 = vsel %vm1820, %v5272, 0
      %v5378 = vsel %vm1820, %v5273, 0
      %5380 = vmatprep.subr.mxu0 0.0
      %5381 = vmatpush1.xpose.msra.mxu0 %v5330
      %5382 = vmatprep.subr.mxu0 0.0
      %5383 = vmatpush1.xpose.msra.mxu0 %v5327
      %5384 = vmatprep.subr.mxu0 0.0
      %5385 = vmatpush1.xpose.msra.mxu0 %v5324
      %5386 = vmatprep.subr.mxu0 0.0
      %5387 = vmatpush1.xpose.msra.mxu0 %v5321
      %5388 = vmatprep.subr.mxu0 0.0
      %5389 = vmatpush1.xpose.msra.mxu0 %v5318
      %5390 = vmatprep.subr.mxu0 0.0
      %5391 = vmatpush1.xpose.msra.mxu0 %v5315
      %5392 = vmatprep.subr.mxu0 0.0
      %5393 = vmatpush1.xpose.msra.mxu0 %v5312
      %5394 = vmatprep.subr.mxu0 0.0
      %5395 = vmatpush1.xpose.msra.mxu0 %v5309
      %5396 = vmatprep.subr.mxu0 0.0
      %5397 = vmatpush1.xpose.msra.mxu0 %v5306
      %5398 = vmatprep.subr.mxu0 0.0
      %5399 = vmatpush1.xpose.msra.mxu0 %v5303
      %5400 = vmatprep.subr.mxu0 0.0
      %5401 = vmatpush1.xpose.msra.mxu0 %v5300
      %5402 = vmatprep.subr.mxu0 0.0
      %5403 = vmatpush1.xpose.msra.mxu0 %v5297
      %5404 = vmatprep.subr.mxu0 0.0
      %5405 = vmatpush1.xpose.msra.mxu0 %v5294
      %5406 = vmatprep.subr.mxu0 0.0
      %5407 = vmatpush1.xpose.msra.mxu0 %v5291
      %5408 = vmatprep.subr.mxu0 0.0
      %5409 = vmatpush1.xpose.msra.mxu0 %v5288
      %5410 = vmatprep.subr.mxu0 0.0
      %5411 = vmatpush1.xpose.msra.mxu0 %v5285
      %5412 = vmatprep.subr.mxu0 0.0
      %5413 = vmatpush2.xpose.msra.mxu0 %v5378
      %5414 = vmatprep.subr.mxu0 0.0
      %5415 = vmatpush2.xpose.msra.mxu0 %v5375
      %5416 = vmatprep.subr.mxu0 0.0
      %5417 = vmatpush2.xpose.msra.mxu0 %v5372
      %5418 = vmatprep.subr.mxu0 0.0
      %5419 = vmatpush2.xpose.msra.mxu0 %v5369
      %5420 = vmatprep.subr.mxu0 0.0
      %5421 = vmatpush2.xpose.msra.mxu0 %v5366
      %5422 = vmatprep.subr.mxu0 0.0
      %5423 = vmatpush2.xpose.msra.mxu0 %v5363
      %5424 = vmatprep.subr.mxu0 0.0
      %5425 = vmatpush2.xpose.msra.mxu0 %v5360
      %5426 = vmatprep.subr.mxu0 0.0
      %5427 = vmatpush2.xpose.msra.mxu0 %v5357
      %5428 = vmatprep.subr.mxu0 0.0
      %5429 = vmatpush2.xpose.msra.mxu0 %v5354
      %5430 = vmatprep.subr.mxu0 0.0
      %5431 = vmatpush2.xpose.msra.mxu0 %v5351
      %5432 = vmatprep.subr.mxu0 0.0
      %5433 = vmatpush2.xpose.msra.mxu0 %v5348
      %5434 = vmatprep.subr.mxu0 0.0
      %5435 = vmatpush2.xpose.msra.mxu0 %v5345
      %5436 = vmatprep.subr.mxu0 0.0
      %5437 = vmatpush2.xpose.msra.mxu0 %v5342
      %5438 = vmatprep.subr.mxu0 0.0
      %5439 = vmatpush2.xpose.msra.mxu0 %v5339
      %5440 = vmatprep.subr.mxu0 0.0
      %5441 = vmatpush2.xpose.msra.mxu0 %v5336
      %5442 = vmatprep.subr.mxu0 0.0
      %5443 = vmatpush2.xpose.msra.mxu0 %v5333
      %5444 = vmatprep.mubr.f32.mxu0 0.0
      %5445 = vmatmul.mubr.f32.gmra.mxu0 %v5282
      %v5446 = vpop.f32.mrf.mxu0
      %v5447 = vadd.f32 %v5279, %v5446
      %v5448 = vpop.f32.mrf.mxu0
      %v5449 = vadd.f32 %v5279, %v5448
      %5450 = vdwg.mxu0
      %v5451 = vtanh.pop %v5447
      %v5452 = vtanh.pop %v5449
      %v5455 = vcombine.low %v5451, %v5452
      %5457 = vst [vmem:[%s412] sm:$0xff] %v5455
      %p5458 = scmp.lt.s32.totalorder %s23, 1
      %s5459 = scalar_select %p5458, %s23, 1
      %s5460 = smul.addr %s5459, 2
      %s5461 = smul.addr %s5460, 4
      %s5462 = scalar_lea.vmem %s10, %s5461
      %p5463 = scmp.lt.s32.totalorder %s23, 1
      %s5464 = scalar_select %p5463, %s23, 1
      %s5465 = scalar_lea.vmem %s11, %s5464
      // Predicated region
      $region61: #{vaegan_generator_forward.1} parent=59 // pred_check
        %p5466 = pneg %p261
      $region62: #{vaegan_generator_forward.1} parent=59 // pred_check_branch
        %5468 = sbr.rel (%p5466) target = $region64
      $region63: #{vaegan_generator_forward.1} parent=59 // pred_region
        _
      $region64: #{vaegan_generator_forward.1} parent=59 // pred_fallthru
        _
      // Predicated region
      $region65: #{vaegan_generator_forward.1} parent=59 // pred_check
        %p5469 = pneg %p287
      $region66: #{vaegan_generator_forward.1} parent=59 // pred_check_branch
        %5471 = sbr.rel (%p5469) target = $region68
      $region67: #{vaegan_generator_forward.1} parent=59 // pred_region
        _
      $region68: #{vaegan_generator_forward.1} parent=59 // pred_fallthru
        _
    $region60: #{vaegan_generator_forward.1} parent=5 // pred_fallthru
      _
    %p5472 = scmp.le.s32.totalorder 2, %s18
    // Predicated region
    $region69: #{vaegan_generator_forward.1} parent=5 // pred_check
      %p5473 = pneg %p5472
    $region70: #{vaegan_generator_forward.1} parent=5 // pred_check_branch
      %5475 = sbr.rel (%p5473) target = $region72
    $region71: #{vaegan_generator_forward.1} parent=5 // pred_region
      %s5476 = ssub.s32 %s18, 2
      // Predicated region
      $region73: #{vaegan_generator_forward.1} parent=71 // pred_check
        %p5477 = pneg %p267
      $region74: #{vaegan_generator_forward.1} parent=71 // pred_check_branch
        %5479 = sbr.rel (%p5477) target = $region76
      $region75: #{vaegan_generator_forward.1} parent=71 // pred_region
        %p5480 = scmp.lt.s32.totalorder %s24, 1
        %s5481 = scalar_select %p5480, %s24, 1
        %s5482 = smul.addr %s5481, 2
        %s5483 = smul.addr %s5482, 4
        %s5484 = scalar_lea.vmem %s10, %s5483
      $region76: #{vaegan_generator_forward.1} parent=71 // pred_fallthru
        _
      // Predicated region
      $region77: #{vaegan_generator_forward.1} parent=71 // pred_check
        %p5485 = pneg %p293
      $region78: #{vaegan_generator_forward.1} parent=71 // pred_check_branch
        %5487 = sbr.rel (%p5485) target = $region80
      $region79: #{vaegan_generator_forward.1} parent=71 // pred_region
        %p5488 = scmp.lt.s32.totalorder %s24, 1
        %s5489 = scalar_select %p5488, %s24, 1
        %s5490 = scalar_lea.vmem %s11, %s5489
      $region80: #{vaegan_generator_forward.1} parent=71 // pred_fallthru
        _
    $region72: #{vaegan_generator_forward.1} parent=5 // pred_fallthru
      _
  $region6: #{vaegan_generator_forward.1} parent=0 // loop_footer
    %s22 = sadd.s32 1, %s18
  $region7: #{vaegan_generator_forward.1} parent=0 // loop_footer_branch
    %17 = sbr.rel target = $region3
  $region8: #{vaegan_generator_forward.1} parent=0 // loop_exit
    _

</llo_original>
